<compile_context>
chip_gen: v6e
topology: v6e:2x2x1
jax: 0.10.0
libtpu: 0.0.40
codegen_flags: <defaults>
</compile_context>

<pallas_src>
import functools

import jax
import jax.numpy as jnp
from jax.experimental import pallas as pl
from jax.experimental.pallas import tpu as pltpu

EPS = 1e-5


def _round_up(a, b):
    return -(-a // b) * b


# ------------------------------ in-kernel helpers ------------------------------
def _conv9(src_bf16, w_ref, *, wp, m_out):
    """3x3 conv as 9 accumulating per-tap MXU matmuls (no materialized im2col).

    src_bf16: (CP, S) bf16 slot buffer (padded (Hp,Wp) grid at lane offset E = wp+1).
    w_ref   : (9, CP, CP) bf16, tap-major.
    Returns (CP, m_out) f32 conv output on the padded grid (halo rows are finite
    garbage; they are masked out of stats and sliced away downstream).
    """
    acc = None
    for kh in range(3):
        for kw in range(3):
            off = kh * wp + kw                                # static lane offset
            tap = jnp.dot(w_ref[kh * 3 + kw], src_bf16[:, off:off + m_out],
                          preferred_element_type=jnp.float32)
            acc = tap if acc is None else acc + tap
    return acc


def _tile_stats(y_f32, mask_int, inv_cnt, stats_ref):
    """Masked per-tile partial sum + mean-centered M2 (Chan-merged in the wrapper)."""
    ym = y_f32 * mask_int
    s = jnp.sum(ym, axis=1, keepdims=True)                    # (CP, 1)
    tile_mean = s * inv_cnt
    d = (y_f32 - tile_mean) * mask_int
    m2 = jnp.sum(d * d, axis=1, keepdims=True)                # (CP, 1)
    stats_ref[:, 0:1] = s
    stats_ref[:, 1:2] = m2


def _store_slot(y_ref, y_f32, *, e):
    """Write conv result into the slot window [e, e+m_out); zero the guard bands so
    no uninitialized (possibly NaN) bits can reach later passes."""
    cp, s_width = y_ref.shape
    m_out = y_f32.shape[1]
    y_ref[:, :e] = jnp.zeros((cp, e), y_ref.dtype)
    y_ref[:, e + m_out:] = jnp.zeros((cp, s_width - e - m_out), y_ref.dtype)
    y_ref[:, e:e + m_out] = y_f32.astype(y_ref.dtype)


# ----------------------------------- kernels -----------------------------------
def conv_stats_kernel(x_ref, w_ref, mask_ref, y_ref, stats_ref,
                      *, wp, e, m_out, inv_cnt):
    """Pass 1: conv1 on one image tile + partial BN1 statistics."""
    y = _conv9(x_ref[...], w_ref, wp=wp, m_out=m_out)
    _tile_stats(y, mask_ref[:, e:e + m_out], inv_cnt, stats_ref)
    _store_slot(y_ref, y, e=e)


def bn_relu_conv_stats_kernel(y1_ref, w_ref, mask_ref, scale_ref, shift_ref,
                              y2_ref, stats_ref, *, wp, e, m_out, inv_cnt):
    """Pass 2: fused BN1 + ReLU + halo re-zero, then conv2 + partial BN2 statistics."""
    h = jnp.maximum(
        y1_ref[...].astype(jnp.float32) * scale_ref[...] + shift_ref[...], 0.0)
    h = h * mask_ref[...]            # halo/guards -> 0: this IS conv2's zero padding
    y = _conv9(h.astype(jnp.bfloat16), w_ref, wp=wp, m_out=m_out)
    _tile_stats(y, mask_ref[:, e:e + m_out], inv_cnt, stats_ref)
    _store_slot(y2_ref, y, e=e)


def bn_residual_relu_kernel(y2_ref, x_ref, scale_ref, shift_ref, out_ref):
    """Pass 3: BN2 + residual add + ReLU (f32 output)."""
    y2 = y2_ref[...].astype(jnp.float32)
    res = x_ref[...].astype(jnp.float32)
    out_ref[...] = jnp.maximum(y2 * scale_ref[...] + shift_ref[...] + res, 0.0)


# ----------------------------------- wrapper -----------------------------------
def _finalize_bn(stats, gamma, beta, count_per_tile, total_count):
    """Merge per-tile (sum, M2) partials (Chan) -> folded scale/shift, f32."""
    sums = stats[:, :, 0]                                     # (T, CP)
    m2s = stats[:, :, 1]                                      # (T, CP)
    tile_mean = sums / count_per_tile
    gmean = jnp.sum(sums, axis=0) / total_count
    var = (jnp.sum(m2s, axis=0)
           + count_per_tile * jnp.sum((tile_mean - gmean) ** 2, axis=0)) / total_count
    scale = gamma * jax.lax.rsqrt(var + EPS)
    shift = beta - gmean * scale
    return scale.reshape(-1, 1), shift.reshape(-1, 1)


@jax.jit
def basic_block_pallas(x_nchw, w1_oihw, g1, b1, w2_oihw, g2, b2):
    """x_nchw: (N, C, H, W) float32 like PyTorch. Returns (N, C, H, W) float32."""
    N, C, H, W = x_nchw.shape
    Hp, Wp = H + 2, W + 2
    E = Wp + 1                                 # max |tap offset| on the flat padded grid
    M_out = Hp * Wp                            # conv output positions per image
    S = _round_up(M_out + 2 * E, 128)          # per-image slot width (lane-dense)
    CP = max(16, _round_up(C, 16))             # channel pad to bf16 sublane multiple

    # ---- wrapper layout plumbing: cast to bf16 FIRST, no transposes ----
    xb = x_nchw.astype(jnp.bfloat16)
    xp = jnp.pad(xb, ((0, 0), (0, CP - C), (1, 1), (1, 1)))        # (N, CP, Hp, Wp)
    x_slots = jnp.pad(xp.reshape(N, CP, M_out),
                      ((0, 0), (0, 0), (E, S - E - M_out)))        # (N, CP, S) bf16

    # interior-pixel mask on the slot layout (0 at halo / guard / slack positions)
    mask = jnp.pad(jnp.pad(jnp.ones((H, W), jnp.float32), ((1, 1), (1, 1)))
                   .reshape(1, M_out), ((0, 0), (E, S - E - M_out)))  # (1, S)

    def prep_w(w):    # OIHW -> (9, CP, CP) bf16, tap-major
        w_p = jnp.pad(w, ((0, CP - C), (0, CP - C), (0, 0), (0, 0)))
        return jnp.transpose(w_p, (2, 3, 0, 1)).reshape(9, CP, CP).astype(jnp.bfloat16)

    def prep_v(v):
        return jnp.pad(v, (0, CP - C)).astype(jnp.float32)

    w1f, w2f = prep_w(w1_oihw), prep_w(w2_oihw)
    g1p, b1p = prep_v(g1), prep_v(b1)
    g2p, b2p = prep_v(g2), prep_v(b2)

    T = N                                      # one image per tile
    inv_cnt = 1.0 / (H * W)
    params = pltpu.CompilerParams(dimension_semantics=("parallel",))

    tile_spec = pl.BlockSpec((None, CP, S), lambda i: (i, 0, 0))
    stats_spec = pl.BlockSpec((None, CP, 2), lambda i: (i, 0, 0))
    w_spec = pl.BlockSpec((9, CP, CP), lambda i: (0, 0, 0))
    mask_spec = pl.BlockSpec((1, S), lambda i: (0, 0))
    vec_spec = pl.BlockSpec((CP, 1), lambda i: (0, 0))

    # ---- pass 1: conv1 + partial BN1 stats ----
    y1_slots, stats1 = pl.pallas_call(
        functools.partial(conv_stats_kernel, wp=Wp, e=E, m_out=M_out, inv_cnt=inv_cnt),
        grid=(T,),
        in_specs=[tile_spec, w_spec, mask_spec],
        out_specs=(tile_spec, stats_spec),
        out_shape=(jax.ShapeDtypeStruct((N, CP, S), jnp.bfloat16),
                   jax.ShapeDtypeStruct((T, CP, 2), jnp.float32)),
        compiler_params=params,
    )(x_slots, w1f, mask)
    sc1, sh1 = _finalize_bn(stats1, g1p, b1p, H * W, N * H * W)

    # ---- pass 2: BN1 + ReLU fused with conv2 + partial BN2 stats ----
    y2_slots, stats2 = pl.pallas_call(
        functools.partial(bn_relu_conv_stats_kernel, wp=Wp, e=E, m_out=M_out,
                          inv_cnt=inv_cnt),
        grid=(T,),
        in_specs=[tile_spec, w_spec, mask_spec, vec_spec, vec_spec],
        out_specs=(tile_spec, stats_spec),
        out_shape=(jax.ShapeDtypeStruct((N, CP, S), jnp.bfloat16),
                   jax.ShapeDtypeStruct((T, CP, 2), jnp.float32)),
        compiler_params=params,
    )(y1_slots, w2f, mask, sc1, sh1)
    sc2, sh2 = _finalize_bn(stats2, g2p, b2p, H * W, N * H * W)

    # ---- pass 3: BN2 + residual + ReLU ----
    out_slots = pl.pallas_call(
        bn_residual_relu_kernel,
        grid=(T,),
        in_specs=[tile_spec, tile_spec, vec_spec, vec_spec],
        out_specs=tile_spec,
        out_shape=jax.ShapeDtypeStruct((N, CP, S), jnp.float32),
        compiler_params=params,
    )(y2_slots, x_slots, sc2, sh2)

    out = out_slots[:, :C, E:E + M_out].reshape(N, C, Hp, Wp)[:, :, 1:H + 1, 1:W + 1]
    return out


# ------------------------- pure-JAX reference (NCHW, like PyTorch) --------------
def basic_block_reference(x, w1, g1, b1, w2, g2, b2):
    def conv(h, w):
        return jax.lax.conv_general_dilated(
            h, w, window_strides=(1, 1), padding=((1, 1), (1, 1)),
            dimension_numbers=('NCHW', 'OIHW', 'NCHW'))

    def bn(h, g, b):
        mean = jnp.mean(h, axis=(0, 2, 3), keepdims=True)
        var = jnp.mean((h - mean) ** 2, axis=(0, 2, 3), keepdims=True)
        return ((h - mean) / jnp.sqrt(var + EPS)) * g.reshape(1, -1, 1, 1) \
               + b.reshape(1, -1, 1, 1)

    out = jax.nn.relu(bn(conv(x, w1), g1, b1))
    out = bn(conv(out, w2), g2, b2)
    return jax.nn.relu(out + x)


if __name__ == "__main__":
    key = jax.random.PRNGKey(0)
    kx, k1, k2, kg1, kb1, kg2, kb2 = jax.random.split(key, 7)

    N, C, H, W = 2, 4, 16, 16                 # inplanes = planes = 4, stride = 1
    x = jax.random.normal(kx, (N, C, H, W), jnp.float32)

    # conv3x3 weights, PyTorch OIHW shape (planes, inplanes, 3, 3), no bias
    w1 = jax.random.normal(k1, (C, C, 3, 3), jnp.float32) * 0.1
    w2 = jax.random.normal(k2, (C, C, 3, 3), jnp.float32) * 0.1
    # BatchNorm affine parameters (deterministic, non-trivial)
    g1 = 1.0 + 0.1 * jax.random.normal(kg1, (C,), jnp.float32)
    b1 = 0.1 * jax.random.normal(kb1, (C,), jnp.float32)
    g2 = 1.0 + 0.1 * jax.random.normal(kg2, (C,), jnp.float32)
    b2 = 0.1 * jax.random.normal(kb2, (C,), jnp.float32)

    out = jax.block_until_ready(basic_block_pallas(x, w1, g1, b1, w2, g2, b2))
    ref = jax.block_until_ready(basic_block_reference(x, w1, g1, b1, w2, g2, b2))

    assert out.shape == (N, C, H, W)
    max_err = float(jnp.max(jnp.abs(out - ref)))
    # tolerance accounts for bf16 activations / MXU operands (f32 reference)
    assert max_err < 5e-2, f"mismatch vs reference: {max_err}"
    print("KERNEL_OK")
</pallas_src>

<mosaic_0001>
module attributes {stable_mosaic.version = 11 : i64} {
  func.func @conv_stats_kernel(%arg0: i32, %arg1: memref<1x16x384xbf16, #tpu.memory_space<vmem>>, %arg2: memref<9x16x16xbf16, #tpu.memory_space<vmem>>, %arg3: memref<1x384xf32, #tpu.memory_space<vmem>>, %arg4: memref<1x16x384xbf16, #tpu.memory_space<vmem>>, %arg5: memref<1x16x2xf32, #tpu.memory_space<vmem>>) attributes {dimension_semantics = [#tpu.dimension_semantics<parallel>], iteration_bounds = array<i64: 2>, scalar_prefetch = 0 : i64, scratch_operands = 0 : i64, tpu.core_type = #tpu.core_type<tc>, window_params = [{transform_indices = @transform_0, window_bounds = array<i64: 1, 16, 384>}, {pipeline_mode = #tpu.pipeline_mode<synchronous>, transform_indices = @transform_1, window_bounds = array<i64: 9, 16, 16>}, {pipeline_mode = #tpu.pipeline_mode<synchronous>, transform_indices = @transform_2, window_bounds = array<i64: 1, 384>}, {transform_indices = @transform_3, window_bounds = array<i64: 1, 16, 384>}, {transform_indices = @transform_4, window_bounds = array<i64: 1, 16, 2>}]} {
    %c0 = arith.constant 0 : index
    %c0_0 = arith.constant 0 : index
    %c0_1 = arith.constant 0 : index
    %0 = vector.load %arg1[%c0, %c0_0, %c0_1] : memref<1x16x384xbf16, #tpu.memory_space<vmem>>, vector<1x16x384xbf16>
    %1 = vector.shape_cast %0 : vector<1x16x384xbf16> to vector<16x384xbf16>
    %c0_2 = arith.constant 0 : index
    %c0_3 = arith.constant 0 : index
    %c0_4 = arith.constant 0 : index
    %2 = vector.load %arg2[%c0_2, %c0_3, %c0_4] : memref<9x16x16xbf16, #tpu.memory_space<vmem>>, vector<1x16x16xbf16>
    %3 = vector.shape_cast %2 : vector<1x16x16xbf16> to vector<16x16xbf16>
    %4 = vector.extract_strided_slice %1 {offsets = [0, 0], sizes = [16, 324], strides = [1, 1]} : vector<16x384xbf16> to vector<16x324xbf16>
    %cst = arith.constant dense<0.000000e+00> : vector<16x324xf32>
    %5 = tpu.matmul %3, %4, %cst {dimension_numbers = #tpu.dot_dimension_numbers<[1], [0], [0], [1], [0, 0, 1, 1], [], []>} : vector<16x16xbf16>, vector<16x324xbf16>, vector<16x324xf32> -> vector<16x324xf32>
    %c1 = arith.constant 1 : index
    %c0_5 = arith.constant 0 : index
    %c0_6 = arith.constant 0 : index
    %6 = vector.load %arg2[%c1, %c0_5, %c0_6] : memref<9x16x16xbf16, #tpu.memory_space<vmem>>, vector<1x16x16xbf16>
    %7 = vector.shape_cast %6 : vector<1x16x16xbf16> to vector<16x16xbf16>
    %8 = vector.extract_strided_slice %1 {offsets = [0, 1], sizes = [16, 324], strides = [1, 1]} : vector<16x384xbf16> to vector<16x324xbf16>
    %cst_7 = arith.constant dense<0.000000e+00> : vector<16x324xf32>
    %9 = tpu.matmul %7, %8, %cst_7 {dimension_numbers = #tpu.dot_dimension_numbers<[1], [0], [0], [1], [0, 0, 1, 1], [], []>} : vector<16x16xbf16>, vector<16x324xbf16>, vector<16x324xf32> -> vector<16x324xf32>
    %10 = arith.addf %5, %9 : vector<16x324xf32>
    %c2 = arith.constant 2 : index
    %c0_8 = arith.constant 0 : index
    %c0_9 = arith.constant 0 : index
    %11 = vector.load %arg2[%c2, %c0_8, %c0_9] : memref<9x16x16xbf16, #tpu.memory_space<vmem>>, vector<1x16x16xbf16>
    %12 = vector.shape_cast %11 : vector<1x16x16xbf16> to vector<16x16xbf16>
    %13 = vector.extract_strided_slice %1 {offsets = [0, 2], sizes = [16, 324], strides = [1, 1]} : vector<16x384xbf16> to vector<16x324xbf16>
    %cst_10 = arith.constant dense<0.000000e+00> : vector<16x324xf32>
    %14 = tpu.matmul %12, %13, %cst_10 {dimension_numbers = #tpu.dot_dimension_numbers<[1], [0], [0], [1], [0, 0, 1, 1], [], []>} : vector<16x16xbf16>, vector<16x324xbf16>, vector<16x324xf32> -> vector<16x324xf32>
    %15 = arith.addf %10, %14 : vector<16x324xf32>
    %c3 = arith.constant 3 : index
    %c0_11 = arith.constant 0 : index
    %c0_12 = arith.constant 0 : index
    %16 = vector.load %arg2[%c3, %c0_11, %c0_12] : memref<9x16x16xbf16, #tpu.memory_space<vmem>>, vector<1x16x16xbf16>
    %17 = vector.shape_cast %16 : vector<1x16x16xbf16> to vector<16x16xbf16>
    %18 = vector.extract_strided_slice %1 {offsets = [0, 18], sizes = [16, 324], strides = [1, 1]} : vector<16x384xbf16> to vector<16x324xbf16>
    %cst_13 = arith.constant dense<0.000000e+00> : vector<16x324xf32>
    %19 = tpu.matmul %17, %18, %cst_13 {dimension_numbers = #tpu.dot_dimension_numbers<[1], [0], [0], [1], [0, 0, 1, 1], [], []>} : vector<16x16xbf16>, vector<16x324xbf16>, vector<16x324xf32> -> vector<16x324xf32>
    %20 = arith.addf %15, %19 : vector<16x324xf32>
    %c4 = arith.constant 4 : index
    %c0_14 = arith.constant 0 : index
    %c0_15 = arith.constant 0 : index
    %21 = vector.load %arg2[%c4, %c0_14, %c0_15] : memref<9x16x16xbf16, #tpu.memory_space<vmem>>, vector<1x16x16xbf16>
    %22 = vector.shape_cast %21 : vector<1x16x16xbf16> to vector<16x16xbf16>
    %23 = vector.extract_strided_slice %1 {offsets = [0, 19], sizes = [16, 324], strides = [1, 1]} : vector<16x384xbf16> to vector<16x324xbf16>
    %cst_16 = arith.constant dense<0.000000e+00> : vector<16x324xf32>
    %24 = tpu.matmul %22, %23, %cst_16 {dimension_numbers = #tpu.dot_dimension_numbers<[1], [0], [0], [1], [0, 0, 1, 1], [], []>} : vector<16x16xbf16>, vector<16x324xbf16>, vector<16x324xf32> -> vector<16x324xf32>
    %25 = arith.addf %20, %24 : vector<16x324xf32>
    %c5 = arith.constant 5 : index
    %c0_17 = arith.constant 0 : index
    %c0_18 = arith.constant 0 : index
    %26 = vector.load %arg2[%c5, %c0_17, %c0_18] : memref<9x16x16xbf16, #tpu.memory_space<vmem>>, vector<1x16x16xbf16>
    %27 = vector.shape_cast %26 : vector<1x16x16xbf16> to vector<16x16xbf16>
    %28 = vector.extract_strided_slice %1 {offsets = [0, 20], sizes = [16, 324], strides = [1, 1]} : vector<16x384xbf16> to vector<16x324xbf16>
    %cst_19 = arith.constant dense<0.000000e+00> : vector<16x324xf32>
    %29 = tpu.matmul %27, %28, %cst_19 {dimension_numbers = #tpu.dot_dimension_numbers<[1], [0], [0], [1], [0, 0, 1, 1], [], []>} : vector<16x16xbf16>, vector<16x324xbf16>, vector<16x324xf32> -> vector<16x324xf32>
    %30 = arith.addf %25, %29 : vector<16x324xf32>
    %c6 = arith.constant 6 : index
    %c0_20 = arith.constant 0 : index
    %c0_21 = arith.constant 0 : index
    %31 = vector.load %arg2[%c6, %c0_20, %c0_21] : memref<9x16x16xbf16, #tpu.memory_space<vmem>>, vector<1x16x16xbf16>
    %32 = vector.shape_cast %31 : vector<1x16x16xbf16> to vector<16x16xbf16>
    %33 = vector.extract_strided_slice %1 {offsets = [0, 36], sizes = [16, 324], strides = [1, 1]} : vector<16x384xbf16> to vector<16x324xbf16>
    %cst_22 = arith.constant dense<0.000000e+00> : vector<16x324xf32>
    %34 = tpu.matmul %32, %33, %cst_22 {dimension_numbers = #tpu.dot_dimension_numbers<[1], [0], [0], [1], [0, 0, 1, 1], [], []>} : vector<16x16xbf16>, vector<16x324xbf16>, vector<16x324xf32> -> vector<16x324xf32>
    %35 = arith.addf %30, %34 : vector<16x324xf32>
    %c7 = arith.constant 7 : index
    %c0_23 = arith.constant 0 : index
    %c0_24 = arith.constant 0 : index
    %36 = vector.load %arg2[%c7, %c0_23, %c0_24] : memref<9x16x16xbf16, #tpu.memory_space<vmem>>, vector<1x16x16xbf16>
    %37 = vector.shape_cast %36 : vector<1x16x16xbf16> to vector<16x16xbf16>
    %38 = vector.extract_strided_slice %1 {offsets = [0, 37], sizes = [16, 324], strides = [1, 1]} : vector<16x384xbf16> to vector<16x324xbf16>
    %cst_25 = arith.constant dense<0.000000e+00> : vector<16x324xf32>
    %39 = tpu.matmul %37, %38, %cst_25 {dimension_numbers = #tpu.dot_dimension_numbers<[1], [0], [0], [1], [0, 0, 1, 1], [], []>} : vector<16x16xbf16>, vector<16x324xbf16>, vector<16x324xf32> -> vector<16x324xf32>
    %40 = arith.addf %35, %39 : vector<16x324xf32>
    %c8 = arith.constant 8 : index
    %c0_26 = arith.constant 0 : index
    %c0_27 = arith.constant 0 : index
    %41 = vector.load %arg2[%c8, %c0_26, %c0_27] : memref<9x16x16xbf16, #tpu.memory_space<vmem>>, vector<1x16x16xbf16>
    %42 = vector.shape_cast %41 : vector<1x16x16xbf16> to vector<16x16xbf16>
    %43 = vector.extract_strided_slice %1 {offsets = [0, 38], sizes = [16, 324], strides = [1, 1]} : vector<16x384xbf16> to vector<16x324xbf16>
    %cst_28 = arith.constant dense<0.000000e+00> : vector<16x324xf32>
    %44 = tpu.matmul %42, %43, %cst_28 {dimension_numbers = #tpu.dot_dimension_numbers<[1], [0], [0], [1], [0, 0, 1, 1], [], []>} : vector<16x16xbf16>, vector<16x324xbf16>, vector<16x324xf32> -> vector<16x324xf32>
    %45 = arith.addf %40, %44 : vector<16x324xf32>
    %c0_29 = arith.constant 0 : index
    %c19 = arith.constant 19 : index
    %46 = vector.load %arg3[%c0_29, %c19] : memref<1x384xf32, #tpu.memory_space<vmem>>, vector<1x324xf32>
    %47 = vector.broadcast %46 : vector<1x324xf32> to vector<16x324xf32>
    %48 = arith.mulf %45, %47 : vector<16x324xf32>
    %cst_30 = arith.constant dense<0.000000e+00> : vector<16xf32>
    %49 = vector.multi_reduction <add>, %48, %cst_30 [1] : vector<16x324xf32> to vector<16xf32>
    %50 = vector.shape_cast %49 : vector<16xf32> to vector<16x1xf32>
    %cst_31 = arith.constant 3.906250e-03 : f32
    %51 = vector.broadcast %cst_31 : f32 to vector<16x1xf32>
    %52 = arith.mulf %50, %51 : vector<16x1xf32>
    %53 = vector.broadcast %52 : vector<16x1xf32> to vector<16x324xf32>
    %54 = arith.subf %45, %53 : vector<16x324xf32>
    %55 = vector.broadcast %46 : vector<1x324xf32> to vector<16x324xf32>
    %56 = arith.mulf %54, %55 : vector<16x324xf32>
    %57 = arith.mulf %56, %56 : vector<16x324xf32>
    %cst_32 = arith.constant dense<0.000000e+00> : vector<16xf32>
    %58 = vector.multi_reduction <add>, %57, %cst_32 [1] : vector<16x324xf32> to vector<16xf32>
    %59 = vector.shape_cast %58 : vector<16xf32> to vector<16x1xf32>
    %c0_33 = arith.constant 0 : index
    %c0_34 = arith.constant 0 : index
    %c0_35 = arith.constant 0 : index
    %60 = vector.load %arg5[%c0_33, %c0_34, %c0_35] : memref<1x16x2xf32, #tpu.memory_space<vmem>>, vector<1x16x1xf32>
    %61 = vector.shape_cast %60 : vector<1x16x1xf32> to vector<16x1xf32>
    %62 = vector.shape_cast %50 : vector<16x1xf32> to vector<1x16x1xf32>
    tpu.vector_store %arg5[%c0_33, %c0_34, %c0_35], %62 {strides = array<i32>} : memref<1x16x2xf32, #tpu.memory_space<vmem>>, vector<1x16x1xf32>,
    %c0_36 = arith.constant 0 : index
    %c0_37 = arith.constant 0 : index
    %c1_38 = arith.constant 1 : index
    %63 = vector.load %arg5[%c0_36, %c0_37, %c1_38] : memref<1x16x2xf32, #tpu.memory_space<vmem>>, vector<1x16x1xf32>
    %64 = vector.shape_cast %63 : vector<1x16x1xf32> to vector<16x1xf32>
    %65 = vector.shape_cast %59 : vector<16x1xf32> to vector<1x16x1xf32>
    tpu.vector_store %arg5[%c0_36, %c0_37, %c1_38], %65 {strides = array<i32>} : memref<1x16x2xf32, #tpu.memory_space<vmem>>, vector<1x16x1xf32>,
    %cst_39 = arith.constant 0.000000e+00 : bf16
    %66 = vector.broadcast %cst_39 : bf16 to vector<16x19xbf16>
    %c0_40 = arith.constant 0 : index
    %c0_41 = arith.constant 0 : index
    %c0_42 = arith.constant 0 : index
    %67 = vector.load %arg4[%c0_40, %c0_41, %c0_42] : memref<1x16x384xbf16, #tpu.memory_space<vmem>>, vector<1x16x19xbf16>
    %68 = vector.shape_cast %67 : vector<1x16x19xbf16> to vector<16x19xbf16>
    %69 = vector.shape_cast %66 : vector<16x19xbf16> to vector<1x16x19xbf16>
    tpu.vector_store %arg4[%c0_40, %c0_41, %c0_42], %69 {strides = array<i32>} : memref<1x16x384xbf16, #tpu.memory_space<vmem>>, vector<1x16x19xbf16>,
    %cst_43 = arith.constant 0.000000e+00 : bf16
    %70 = vector.broadcast %cst_43 : bf16 to vector<16x41xbf16>
    %c0_44 = arith.constant 0 : index
    %c0_45 = arith.constant 0 : index
    %c343 = arith.constant 343 : index
    %71 = vector.load %arg4[%c0_44, %c0_45, %c343] : memref<1x16x384xbf16, #tpu.memory_space<vmem>>, vector<1x16x41xbf16>
    %72 = vector.shape_cast %71 : vector<1x16x41xbf16> to vector<16x41xbf16>
    %73 = vector.shape_cast %70 : vector<16x41xbf16> to vector<1x16x41xbf16>
    tpu.vector_store %arg4[%c0_44, %c0_45, %c343], %73 {strides = array<i32>} : memref<1x16x384xbf16, #tpu.memory_space<vmem>>, vector<1x16x41xbf16>,
    %74 = arith.truncf %45 : vector<16x324xf32> to vector<16x324xbf16>
    %c0_46 = arith.constant 0 : index
    %c0_47 = arith.constant 0 : index
    %c19_48 = arith.constant 19 : index
    %75 = vector.load %arg4[%c0_46, %c0_47, %c19_48] : memref<1x16x384xbf16, #tpu.memory_space<vmem>>, vector<1x16x324xbf16>
    %76 = vector.shape_cast %75 : vector<1x16x324xbf16> to vector<16x324xbf16>
    %77 = vector.shape_cast %74 : vector<16x324xbf16> to vector<1x16x324xbf16>
    tpu.vector_store %arg4[%c0_46, %c0_47, %c19_48], %77 {strides = array<i32>} : memref<1x16x384xbf16, #tpu.memory_space<vmem>>, vector<1x16x324xbf16>,
    return
  }
  func.func @transform_0(%arg0: i32) -> (i32, i32, i32) {
    %c0_i32 = arith.constant 0 : i32
    %c0_i32_0 = arith.constant 0 : i32
    %c0_i32_1 = arith.constant 0 : i32
    return %arg0, %c0_i32, %c0_i32_0 : i32, i32, i32
  }
  func.func @transform_1(%arg0: i32) -> (i32, i32, i32) {
    %c0_i32 = arith.constant 0 : i32
    %c0_i32_0 = arith.constant 0 : i32
    %c0_i32_1 = arith.constant 0 : i32
    %c0_i32_2 = arith.constant 0 : i32
    return %c0_i32, %c0_i32_0, %c0_i32_1 : i32, i32, i32
  }
  func.func @transform_2(%arg0: i32) -> (i32, i32) {
    %c0_i32 = arith.constant 0 : i32
    %c0_i32_0 = arith.constant 0 : i32
    %c0_i32_1 = arith.constant 0 : i32
    return %c0_i32, %c0_i32_0 : i32, i32
  }
  func.func @transform_3(%arg0: i32) -> (i32, i32, i32) {
    %c0_i32 = arith.constant 0 : i32
    %c0_i32_0 = arith.constant 0 : i32
    %c0_i32_1 = arith.constant 0 : i32
    return %arg0, %c0_i32, %c0_i32_0 : i32, i32, i32
  }
  func.func @transform_4(%arg0: i32) -> (i32, i32, i32) {
    %c0_i32 = arith.constant 0 : i32
    %c0_i32_0 = arith.constant 0 : i32
    %c0_i32_1 = arith.constant 0 : i32
    return %arg0, %c0_i32, %c0_i32_0 : i32, i32, i32
  }
}

module attributes {stable_mosaic.version = 11 : i64} {
  func.func @bn_residual_relu_kernel(%arg0: i32, %arg1: memref<1x16x384xbf16, #tpu.memory_space<vmem>>, %arg2: memref<1x16x384xbf16, #tpu.memory_space<vmem>>, %arg3: memref<16x1xf32, #tpu.memory_space<vmem>>, %arg4: memref<16x1xf32, #tpu.memory_space<vmem>>, %arg5: memref<1x16x384xf32, #tpu.memory_space<vmem>>) attributes {dimension_semantics = [#tpu.dimension_semantics<parallel>], iteration_bounds = array<i64: 2>, scalar_prefetch = 0 : i64, scratch_operands = 0 : i64, tpu.core_type = #tpu.core_type<tc>, window_params = [{transform_indices = @transform_0, window_bounds = array<i64: 1, 16, 384>}, {transform_indices = @transform_1, window_bounds = array<i64: 1, 16, 384>}, {pipeline_mode = #tpu.pipeline_mode<synchronous>, transform_indices = @transform_2, window_bounds = array<i64: 16, 1>}, {pipeline_mode = #tpu.pipeline_mode<synchronous>, transform_indices = @transform_3, window_bounds = array<i64: 16, 1>}, {transform_indices = @transform_4, window_bounds = array<i64: 1, 16, 384>}]} {
    %c0 = arith.constant 0 : index
    %c0_0 = arith.constant 0 : index
    %c0_1 = arith.constant 0 : index
    %0 = vector.load %arg1[%c0, %c0_0, %c0_1] : memref<1x16x384xbf16, #tpu.memory_space<vmem>>, vector<1x16x384xbf16>
    %1 = vector.shape_cast %0 : vector<1x16x384xbf16> to vector<16x384xbf16>
    %2 = arith.extf %1 : vector<16x384xbf16> to vector<16x384xf32>
    %c0_2 = arith.constant 0 : index
    %c0_3 = arith.constant 0 : index
    %c0_4 = arith.constant 0 : index
    %3 = vector.load %arg2[%c0_2, %c0_3, %c0_4] : memref<1x16x384xbf16, #tpu.memory_space<vmem>>, vector<1x16x384xbf16>
    %4 = vector.shape_cast %3 : vector<1x16x384xbf16> to vector<16x384xbf16>
    %5 = arith.extf %4 : vector<16x384xbf16> to vector<16x384xf32>
    %c0_5 = arith.constant 0 : index
    %c0_6 = arith.constant 0 : index
    %6 = vector.load %arg3[%c0_5, %c0_6] : memref<16x1xf32, #tpu.memory_space<vmem>>, vector<16x1xf32>
    %7 = vector.broadcast %6 : vector<16x1xf32> to vector<16x384xf32>
    %8 = arith.mulf %2, %7 : vector<16x384xf32>
    %c0_7 = arith.constant 0 : index
    %c0_8 = arith.constant 0 : index
    %9 = vector.load %arg4[%c0_7, %c0_8] : memref<16x1xf32, #tpu.memory_space<vmem>>, vector<16x1xf32>
    %10 = vector.broadcast %9 : vector<16x1xf32> to vector<16x384xf32>
    %11 = arith.addf %8, %10 : vector<16x384xf32>
    %12 = arith.addf %11, %5 : vector<16x384xf32>
    %cst = arith.constant 0.000000e+00 : f32
    %13 = vector.broadcast %cst : f32 to vector<16x384xf32>
    %14 = arith.maximumf %12, %13 : vector<16x384xf32>
    %c0_9 = arith.constant 0 : index
    %c0_10 = arith.constant 0 : index
    %c0_11 = arith.constant 0 : index
    %15 = vector.load %arg5[%c0_9, %c0_10, %c0_11] : memref<1x16x384xf32, #tpu.memory_space<vmem>>, vector<1x16x384xf32>
    %16 = vector.shape_cast %15 : vector<1x16x384xf32> to vector<16x384xf32>
    %17 = vector.shape_cast %14 : vector<16x384xf32> to vector<1x16x384xf32>
    tpu.vector_store %arg5[%c0_9, %c0_10, %c0_11], %17 {strides = array<i32>} : memref<1x16x384xf32, #tpu.memory_space<vmem>>, vector<1x16x384xf32>,
    return
  }
  func.func @transform_0(%arg0: i32) -> (i32, i32, i32) {
    %c0_i32 = arith.constant 0 : i32
    %c0_i32_0 = arith.constant 0 : i32
    %c0_i32_1 = arith.constant 0 : i32
    return %arg0, %c0_i32, %c0_i32_0 : i32, i32, i32
  }
  func.func @transform_1(%arg0: i32) -> (i32, i32, i32) {
    %c0_i32 = arith.constant 0 : i32
    %c0_i32_0 = arith.constant 0 : i32
    %c0_i32_1 = arith.constant 0 : i32
    return %arg0, %c0_i32, %c0_i32_0 : i32, i32, i32
  }
  func.func @transform_2(%arg0: i32) -> (i32, i32) {
    %c0_i32 = arith.constant 0 : i32
    %c0_i32_0 = arith.constant 0 : i32
    %c0_i32_1 = arith.constant 0 : i32
    return %c0_i32, %c0_i32_0 : i32, i32
  }
  func.func @transform_3(%arg0: i32) -> (i32, i32) {
    %c0_i32 = arith.constant 0 : i32
    %c0_i32_0 = arith.constant 0 : i32
    %c0_i32_1 = arith.constant 0 : i32
    return %c0_i32, %c0_i32_0 : i32, i32
  }
  func.func @transform_4(%arg0: i32) -> (i32, i32, i32) {
    %c0_i32 = arith.constant 0 : i32
    %c0_i32_0 = arith.constant 0 : i32
    %c0_i32_1 = arith.constant 0 : i32
    return %arg0, %c0_i32, %c0_i32_0 : i32, i32, i32
  }
}

module attributes {stable_mosaic.version = 11 : i64} {
  func.func @bn_relu_conv_stats_kernel(%arg0: i32, %arg1: memref<1x16x384xbf16, #tpu.memory_space<vmem>>, %arg2: memref<9x16x16xbf16, #tpu.memory_space<vmem>>, %arg3: memref<1x384xf32, #tpu.memory_space<vmem>>, %arg4: memref<16x1xf32, #tpu.memory_space<vmem>>, %arg5: memref<16x1xf32, #tpu.memory_space<vmem>>, %arg6: memref<1x16x384xbf16, #tpu.memory_space<vmem>>, %arg7: memref<1x16x2xf32, #tpu.memory_space<vmem>>) attributes {dimension_semantics = [#tpu.dimension_semantics<parallel>], iteration_bounds = array<i64: 2>, scalar_prefetch = 0 : i64, scratch_operands = 0 : i64, tpu.core_type = #tpu.core_type<tc>, window_params = [{transform_indices = @transform_0, window_bounds = array<i64: 1, 16, 384>}, {pipeline_mode = #tpu.pipeline_mode<synchronous>, transform_indices = @transform_1, window_bounds = array<i64: 9, 16, 16>}, {pipeline_mode = #tpu.pipeline_mode<synchronous>, transform_indices = @transform_2, window_bounds = array<i64: 1, 384>}, {pipeline_mode = #tpu.pipeline_mode<synchronous>, transform_indices = @transform_3, window_bounds = array<i64: 16, 1>}, {pipeline_mode = #tpu.pipeline_mode<synchronous>, transform_indices = @transform_4, window_bounds = array<i64: 16, 1>}, {transform_indices = @transform_5, window_bounds = array<i64: 1, 16, 384>}, {transform_indices = @transform_6, window_bounds = array<i64: 1, 16, 2>}]} {
    %c0 = arith.constant 0 : index
    %c0_0 = arith.constant 0 : index
    %c0_1 = arith.constant 0 : index
    %0 = vector.load %arg1[%c0, %c0_0, %c0_1] : memref<1x16x384xbf16, #tpu.memory_space<vmem>>, vector<1x16x384xbf16>
    %1 = vector.shape_cast %0 : vector<1x16x384xbf16> to vector<16x384xbf16>
    %2 = arith.extf %1 : vector<16x384xbf16> to vector<16x384xf32>
    %c0_2 = arith.constant 0 : index
    %c0_3 = arith.constant 0 : index
    %3 = vector.load %arg4[%c0_2, %c0_3] : memref<16x1xf32, #tpu.memory_space<vmem>>, vector<16x1xf32>
    %4 = vector.broadcast %3 : vector<16x1xf32> to vector<16x384xf32>
    %5 = arith.mulf %2, %4 : vector<16x384xf32>
    %c0_4 = arith.constant 0 : index
    %c0_5 = arith.constant 0 : index
    %6 = vector.load %arg5[%c0_4, %c0_5] : memref<16x1xf32, #tpu.memory_space<vmem>>, vector<16x1xf32>
    %7 = vector.broadcast %6 : vector<16x1xf32> to vector<16x384xf32>
    %8 = arith.addf %5, %7 : vector<16x384xf32>
    %cst = arith.constant 0.000000e+00 : f32
    %9 = vector.broadcast %cst : f32 to vector<16x384xf32>
    %10 = arith.maximumf %8, %9 : vector<16x384xf32>
    %c0_6 = arith.constant 0 : index
    %c0_7 = arith.constant 0 : index
    %11 = vector.load %arg3[%c0_6, %c0_7] : memref<1x384xf32, #tpu.memory_space<vmem>>, vector<1x384xf32>
    %12 = vector.broadcast %11 : vector<1x384xf32> to vector<16x384xf32>
    %13 = arith.mulf %10, %12 : vector<16x384xf32>
    %14 = arith.truncf %13 : vector<16x384xf32> to vector<16x384xbf16>
    %c0_8 = arith.constant 0 : index
    %c0_9 = arith.constant 0 : index
    %c0_10 = arith.constant 0 : index
    %15 = vector.load %arg2[%c0_8, %c0_9, %c0_10] : memref<9x16x16xbf16, #tpu.memory_space<vmem>>, vector<1x16x16xbf16>
    %16 = vector.shape_cast %15 : vector<1x16x16xbf16> to vector<16x16xbf16>
    %17 = vector.extract_strided_slice %14 {offsets = [0, 0], sizes = [16, 324], strides = [1, 1]} : vector<16x384xbf16> to vector<16x324xbf16>
    %cst_11 = arith.constant dense<0.000000e+00> : vector<16x324xf32>
    %18 = tpu.matmul %16, %17, %cst_11 {dimension_numbers = #tpu.dot_dimension_numbers<[1], [0], [0], [1], [0, 0, 1, 1], [], []>} : vector<16x16xbf16>, vector<16x324xbf16>, vector<16x324xf32> -> vector<16x324xf32>
    %c1 = arith.constant 1 : index
    %c0_12 = arith.constant 0 : index
    %c0_13 = arith.constant 0 : index
    %19 = vector.load %arg2[%c1, %c0_12, %c0_13] : memref<9x16x16xbf16, #tpu.memory_space<vmem>>, vector<1x16x16xbf16>
    %20 = vector.shape_cast %19 : vector<1x16x16xbf16> to vector<16x16xbf16>
    %21 = vector.extract_strided_slice %14 {offsets = [0, 1], sizes = [16, 324], strides = [1, 1]} : vector<16x384xbf16> to vector<16x324xbf16>
    %cst_14 = arith.constant dense<0.000000e+00> : vector<16x324xf32>
    %22 = tpu.matmul %20, %21, %cst_14 {dimension_numbers = #tpu.dot_dimension_numbers<[1], [0], [0], [1], [0, 0, 1, 1], [], []>} : vector<16x16xbf16>, vector<16x324xbf16>, vector<16x324xf32> -> vector<16x324xf32>
    %23 = arith.addf %18, %22 : vector<16x324xf32>
    %c2 = arith.constant 2 : index
    %c0_15 = arith.constant 0 : index
    %c0_16 = arith.constant 0 : index
    %24 = vector.load %arg2[%c2, %c0_15, %c0_16] : memref<9x16x16xbf16, #tpu.memory_space<vmem>>, vector<1x16x16xbf16>
    %25 = vector.shape_cast %24 : vector<1x16x16xbf16> to vector<16x16xbf16>
    %26 = vector.extract_strided_slice %14 {offsets = [0, 2], sizes = [16, 324], strides = [1, 1]} : vector<16x384xbf16> to vector<16x324xbf16>
    %cst_17 = arith.constant dense<0.000000e+00> : vector<16x324xf32>
    %27 = tpu.matmul %25, %26, %cst_17 {dimension_numbers = #tpu.dot_dimension_numbers<[1], [0], [0], [1], [0, 0, 1, 1], [], []>} : vector<16x16xbf16>, vector<16x324xbf16>, vector<16x324xf32> -> vector<16x324xf32>
    %28 = arith.addf %23, %27 : vector<16x324xf32>
    %c3 = arith.constant 3 : index
    %c0_18 = arith.constant 0 : index
    %c0_19 = arith.constant 0 : index
    %29 = vector.load %arg2[%c3, %c0_18, %c0_19] : memref<9x16x16xbf16, #tpu.memory_space<vmem>>, vector<1x16x16xbf16>
    %30 = vector.shape_cast %29 : vector<1x16x16xbf16> to vector<16x16xbf16>
    %31 = vector.extract_strided_slice %14 {offsets = [0, 18], sizes = [16, 324], strides = [1, 1]} : vector<16x384xbf16> to vector<16x324xbf16>
    %cst_20 = arith.constant dense<0.000000e+00> : vector<16x324xf32>
    %32 = tpu.matmul %30, %31, %cst_20 {dimension_numbers = #tpu.dot_dimension_numbers<[1], [0], [0], [1], [0, 0, 1, 1], [], []>} : vector<16x16xbf16>, vector<16x324xbf16>, vector<16x324xf32> -> vector<16x324xf32>
    %33 = arith.addf %28, %32 : vector<16x324xf32>
    %c4 = arith.constant 4 : index
    %c0_21 = arith.constant 0 : index
    %c0_22 = arith.constant 0 : index
    %34 = vector.load %arg2[%c4, %c0_21, %c0_22] : memref<9x16x16xbf16, #tpu.memory_space<vmem>>, vector<1x16x16xbf16>
    %35 = vector.shape_cast %34 : vector<1x16x16xbf16> to vector<16x16xbf16>
    %36 = vector.extract_strided_slice %14 {offsets = [0, 19], sizes = [16, 324], strides = [1, 1]} : vector<16x384xbf16> to vector<16x324xbf16>
    %cst_23 = arith.constant dense<0.000000e+00> : vector<16x324xf32>
    %37 = tpu.matmul %35, %36, %cst_23 {dimension_numbers = #tpu.dot_dimension_numbers<[1], [0], [0], [1], [0, 0, 1, 1], [], []>} : vector<16x16xbf16>, vector<16x324xbf16>, vector<16x324xf32> -> vector<16x324xf32>
    %38 = arith.addf %33, %37 : vector<16x324xf32>
    %c5 = arith.constant 5 : index
    %c0_24 = arith.constant 0 : index
    %c0_25 = arith.constant 0 : index
    %39 = vector.load %arg2[%c5, %c0_24, %c0_25] : memref<9x16x16xbf16, #tpu.memory_space<vmem>>, vector<1x16x16xbf16>
    %40 = vector.shape_cast %39 : vector<1x16x16xbf16> to vector<16x16xbf16>
    %41 = vector.extract_strided_slice %14 {offsets = [0, 20], sizes = [16, 324], strides = [1, 1]} : vector<16x384xbf16> to vector<16x324xbf16>
    %cst_26 = arith.constant dense<0.000000e+00> : vector<16x324xf32>
    %42 = tpu.matmul %40, %41, %cst_26 {dimension_numbers = #tpu.dot_dimension_numbers<[1], [0], [0], [1], [0, 0, 1, 1], [], []>} : vector<16x16xbf16>, vector<16x324xbf16>, vector<16x324xf32> -> vector<16x324xf32>
    %43 = arith.addf %38, %42 : vector<16x324xf32>
    %c6 = arith.constant 6 : index
    %c0_27 = arith.constant 0 : index
    %c0_28 = arith.constant 0 : index
    %44 = vector.load %arg2[%c6, %c0_27, %c0_28] : memref<9x16x16xbf16, #tpu.memory_space<vmem>>, vector<1x16x16xbf16>
    %45 = vector.shape_cast %44 : vector<1x16x16xbf16> to vector<16x16xbf16>
    %46 = vector.extract_strided_slice %14 {offsets = [0, 36], sizes = [16, 324], strides = [1, 1]} : vector<16x384xbf16> to vector<16x324xbf16>
    %cst_29 = arith.constant dense<0.000000e+00> : vector<16x324xf32>
    %47 = tpu.matmul %45, %46, %cst_29 {dimension_numbers = #tpu.dot_dimension_numbers<[1], [0], [0], [1], [0, 0, 1, 1], [], []>} : vector<16x16xbf16>, vector<16x324xbf16>, vector<16x324xf32> -> vector<16x324xf32>
    %48 = arith.addf %43, %47 : vector<16x324xf32>
    %c7 = arith.constant 7 : index
    %c0_30 = arith.constant 0 : index
    %c0_31 = arith.constant 0 : index
    %49 = vector.load %arg2[%c7, %c0_30, %c0_31] : memref<9x16x16xbf16, #tpu.memory_space<vmem>>, vector<1x16x16xbf16>
    %50 = vector.shape_cast %49 : vector<1x16x16xbf16> to vector<16x16xbf16>
    %51 = vector.extract_strided_slice %14 {offsets = [0, 37], sizes = [16, 324], strides = [1, 1]} : vector<16x384xbf16> to vector<16x324xbf16>
    %cst_32 = arith.constant dense<0.000000e+00> : vector<16x324xf32>
    %52 = tpu.matmul %50, %51, %cst_32 {dimension_numbers = #tpu.dot_dimension_numbers<[1], [0], [0], [1], [0, 0, 1, 1], [], []>} : vector<16x16xbf16>, vector<16x324xbf16>, vector<16x324xf32> -> vector<16x324xf32>
    %53 = arith.addf %48, %52 : vector<16x324xf32>
    %c8 = arith.constant 8 : index
    %c0_33 = arith.constant 0 : index
    %c0_34 = arith.constant 0 : index
    %54 = vector.load %arg2[%c8, %c0_33, %c0_34] : memref<9x16x16xbf16, #tpu.memory_space<vmem>>, vector<1x16x16xbf16>
    %55 = vector.shape_cast %54 : vector<1x16x16xbf16> to vector<16x16xbf16>
    %56 = vector.extract_strided_slice %14 {offsets = [0, 38], sizes = [16, 324], strides = [1, 1]} : vector<16x384xbf16> to vector<16x324xbf16>
    %cst_35 = arith.constant dense<0.000000e+00> : vector<16x324xf32>
    %57 = tpu.matmul %55, %56, %cst_35 {dimension_numbers = #tpu.dot_dimension_numbers<[1], [0], [0], [1], [0, 0, 1, 1], [], []>} : vector<16x16xbf16>, vector<16x324xbf16>, vector<16x324xf32> -> vector<16x324xf32>
    %58 = arith.addf %53, %57 : vector<16x324xf32>
    %c0_36 = arith.constant 0 : index
    %c19 = arith.constant 19 : index
    %59 = vector.load %arg3[%c0_36, %c19] : memref<1x384xf32, #tpu.memory_space<vmem>>, vector<1x324xf32>
    %60 = vector.broadcast %59 : vector<1x324xf32> to vector<16x324xf32>
    %61 = arith.mulf %58, %60 : vector<16x324xf32>
    %cst_37 = arith.constant dense<0.000000e+00> : vector<16xf32>
    %62 = vector.multi_reduction <add>, %61, %cst_37 [1] : vector<16x324xf32> to vector<16xf32>
    %63 = vector.shape_cast %62 : vector<16xf32> to vector<16x1xf32>
    %cst_38 = arith.constant 3.906250e-03 : f32
    %64 = vector.broadcast %cst_38 : f32 to vector<16x1xf32>
    %65 = arith.mulf %63, %64 : vector<16x1xf32>
    %66 = vector.broadcast %65 : vector<16x1xf32> to vector<16x324xf32>
    %67 = arith.subf %58, %66 : vector<16x324xf32>
    %68 = vector.broadcast %59 : vector<1x324xf32> to vector<16x324xf32>
    %69 = arith.mulf %67, %68 : vector<16x324xf32>
    %70 = arith.mulf %69, %69 : vector<16x324xf32>
    %cst_39 = arith.constant dense<0.000000e+00> : vector<16xf32>
    %71 = vector.multi_reduction <add>, %70, %cst_39 [1] : vector<16x324xf32> to vector<16xf32>
    %72 = vector.shape_cast %71 : vector<16xf32> to vector<16x1xf32>
    %c0_40 = arith.constant 0 : index
    %c0_41 = arith.constant 0 : index
    %c0_42 = arith.constant 0 : index
    %73 = vector.load %arg7[%c0_40, %c0_41, %c0_42] : memref<1x16x2xf32, #tpu.memory_space<vmem>>, vector<1x16x1xf32>
    %74 = vector.shape_cast %73 : vector<1x16x1xf32> to vector<16x1xf32>
    %75 = vector.shape_cast %63 : vector<16x1xf32> to vector<1x16x1xf32>
    tpu.vector_store %arg7[%c0_40, %c0_41, %c0_42], %75 {strides = array<i32>} : memref<1x16x2xf32, #tpu.memory_space<vmem>>, vector<1x16x1xf32>,
    %c0_43 = arith.constant 0 : index
    %c0_44 = arith.constant 0 : index
    %c1_45 = arith.constant 1 : index
    %76 = vector.load %arg7[%c0_43, %c0_44, %c1_45] : memref<1x16x2xf32, #tpu.memory_space<vmem>>, vector<1x16x1xf32>
    %77 = vector.shape_cast %76 : vector<1x16x1xf32> to vector<16x1xf32>
    %78 = vector.shape_cast %72 : vector<16x1xf32> to vector<1x16x1xf32>
    tpu.vector_store %arg7[%c0_43, %c0_44, %c1_45], %78 {strides = array<i32>} : memref<1x16x2xf32, #tpu.memory_space<vmem>>, vector<1x16x1xf32>,
    %cst_46 = arith.constant 0.000000e+00 : bf16
    %79 = vector.broadcast %cst_46 : bf16 to vector<16x19xbf16>
    %c0_47 = arith.constant 0 : index
    %c0_48 = arith.constant 0 : index
    %c0_49 = arith.constant 0 : index
    %80 = vector.load %arg6[%c0_47, %c0_48, %c0_49] : memref<1x16x384xbf16, #tpu.memory_space<vmem>>, vector<1x16x19xbf16>
    %81 = vector.shape_cast %80 : vector<1x16x19xbf16> to vector<16x19xbf16>
    %82 = vector.shape_cast %79 : vector<16x19xbf16> to vector<1x16x19xbf16>
    tpu.vector_store %arg6[%c0_47, %c0_48, %c0_49], %82 {strides = array<i32>} : memref<1x16x384xbf16, #tpu.memory_space<vmem>>, vector<1x16x19xbf16>,
    %cst_50 = arith.constant 0.000000e+00 : bf16
    %83 = vector.broadcast %cst_50 : bf16 to vector<16x41xbf16>
    %c0_51 = arith.constant 0 : index
    %c0_52 = arith.constant 0 : index
    %c343 = arith.constant 343 : index
    %84 = vector.load %arg6[%c0_51, %c0_52, %c343] : memref<1x16x384xbf16, #tpu.memory_space<vmem>>, vector<1x16x41xbf16>
    %85 = vector.shape_cast %84 : vector<1x16x41xbf16> to vector<16x41xbf16>
    %86 = vector.shape_cast %83 : vector<16x41xbf16> to vector<1x16x41xbf16>
    tpu.vector_store %arg6[%c0_51, %c0_52, %c343], %86 {strides = array<i32>} : memref<1x16x384xbf16, #tpu.memory_space<vmem>>, vector<1x16x41xbf16>,
    %87 = arith.truncf %58 : vector<16x324xf32> to vector<16x324xbf16>
    %c0_53 = arith.constant 0 : index
    %c0_54 = arith.constant 0 : index
    %c19_55 = arith.constant 19 : index
    %88 = vector.load %arg6[%c0_53, %c0_54, %c19_55] : memref<1x16x384xbf16, #tpu.memory_space<vmem>>, vector<1x16x324xbf16>
    %89 = vector.shape_cast %88 : vector<1x16x324xbf16> to vector<16x324xbf16>
    %90 = vector.shape_cast %87 : vector<16x324xbf16> to vector<1x16x324xbf16>
    tpu.vector_store %arg6[%c0_53, %c0_54, %c19_55], %90 {strides = array<i32>} : memref<1x16x384xbf16, #tpu.memory_space<vmem>>, vector<1x16x324xbf16>,
    return
  }
  func.func @transform_0(%arg0: i32) -> (i32, i32, i32) {
    %c0_i32 = arith.constant 0 : i32
    %c0_i32_0 = arith.constant 0 : i32
    %c0_i32_1 = arith.constant 0 : i32
    return %arg0, %c0_i32, %c0_i32_0 : i32, i32, i32
  }
  func.func @transform_1(%arg0: i32) -> (i32, i32, i32) {
    %c0_i32 = arith.constant 0 : i32
    %c0_i32_0 = arith.constant 0 : i32
    %c0_i32_1 = arith.constant 0 : i32
    %c0_i32_2 = arith.constant 0 : i32
    return %c0_i32, %c0_i32_0, %c0_i32_1 : i32, i32, i32
  }
  func.func @transform_2(%arg0: i32) -> (i32, i32) {
    %c0_i32 = arith.constant 0 : i32
    %c0_i32_0 = arith.constant 0 : i32
    %c0_i32_1 = arith.constant 0 : i32
    return %c0_i32, %c0_i32_0 : i32, i32
  }
  func.func @transform_3(%arg0: i32) -> (i32, i32) {
    %c0_i32 = arith.constant 0 : i32
    %c0_i32_0 = arith.constant 0 : i32
    %c0_i32_1 = arith.constant 0 : i32
    return %c0_i32, %c0_i32_0 : i32, i32
  }
  func.func @transform_4(%arg0: i32) -> (i32, i32) {
    %c0_i32 = arith.constant 0 : i32
    %c0_i32_0 = arith.constant 0 : i32
    %c0_i32_1 = arith.constant 0 : i32
    return %c0_i32, %c0_i32_0 : i32, i32
  }
  func.func @transform_5(%arg0: i32) -> (i32, i32, i32) {
    %c0_i32 = arith.constant 0 : i32
    %c0_i32_0 = arith.constant 0 : i32
    %c0_i32_1 = arith.constant 0 : i32
    return %arg0, %c0_i32, %c0_i32_0 : i32, i32, i32
  }
  func.func @transform_6(%arg0: i32) -> (i32, i32, i32) {
    %c0_i32 = arith.constant 0 : i32
    %c0_i32_0 = arith.constant 0 : i32
    %c0_i32_1 = arith.constant 0 : i32
    return %arg0, %c0_i32, %c0_i32_0 : i32, i32, i32
  }
}

</mosaic_0001>

<llo_original>
// kernel: basic_block_pallas.5
$region0: #{basic_block_pallas.5}
  #allocation0 [shape = 'u32[]', space=smem, size = 0x4, offset = 0x4, fixed_abs, tag = 'smem constant byte address 0x4 - core index']
  #allocation1 [shape = 'u32[144,128]{1,0:T(1,128)}', space=vmem, size = 0x12000, scoped, tag = 'internal scratch']
  %s0 = inlined_call_operand.vmem [shape: bf16[2,16,384], index: 0, kind: input, shape index: {}]
  %s1 = inlined_call_operand.vmem [shape: bf16[2,16,384], index: 1, kind: input, shape index: {}]
  %s2 = inlined_call_operand.vmem [shape: f32[16,1], index: 2, kind: input, shape index: {}]
  %s3 = inlined_call_operand.vmem [shape: f32[16,1], index: 3, kind: input, shape index: {}]
  %s4 = inlined_call_operand.vmem [shape: f32[2,16,384], index: 4, kind: output, shape index: {}]
  %s5 = sld [smem:[#allocation0]]
  $region49: #{basic_block_pallas.5} parent=0
    _
  %s7 = ssub.s32 1, %s5
  %s8 = scalar_select 0, %s7, %s5
  loop: start=0, step=1, limit=4
  $region2: #{basic_block_pallas.5} parent=0 // loop_pre_header
    _
  $region3: #{basic_block_pallas.5} parent=0 // loop_header
    %s10 = sphi 0, %s14
    %p11 = scmp.ge.s32.totalorder %s10, 4
    %s20 = sphi 0, %s22
    %s23 = sphi 0, %s20
    %s24 = sphi 0, %s23
    %s40 = sphi 0, %s24
    %s46 = sphi 0, %s48
    %s49 = sphi 0, %s46
    %s50 = sphi 0, %s49
    %s66 = sphi 0, %s50
    %s70 = sphi 0, %s70
    %s72 = sphi 0, %s70
    %s73 = sphi 0, %s72
    %s87 = sphi 0, %s73
    %s91 = sphi 0, %s91
    %s93 = sphi 0, %s91
    %s94 = sphi 0, %s93
    %s108 = sphi 0, %s94
    %s114 = sphi 0, %s116
    %s117 = sphi 0, %s114
    %s118 = sphi 0, %s117
    %s134 = sphi 0, %s118
  $region4: #{basic_block_pallas.5} parent=0 // loop_header_branch
    %13 = sbr.rel (%p11) target = $region8
  $region5: #{basic_block_pallas.5} parent=0 // loop_body
    %s15 = ssub.s32 %s10, 1
    %s16 = ssub.s32 %s10, 2
    %s17 = sadd.s32 %s10, 1
    %s18 = ssub.s32 %s10, %s17
    %p19 = scmp.eq.s32.totalorder %s18, 0
    %s21 = sadd.s32 %s20, 1
    %s22 = scalar_select %p19, %s20, %s21
    %p25 = pneg %p19
    %p26 = scmp.eq.s32.totalorder %s10, 1
    %p27 = por %p25, %p26
    %p28 = scmp.ne.s32.totalorder %s20, %s23
    %p29 = scmp.eq.s32.totalorder %s10, 0
    %p30 = por %p28, %p29
    %p31 = scmp.ne.s32.totalorder %s20, %s23
    %p32 = scmp.eq.s32.totalorder %s15, 1
    %p33 = por %p31, %p32
    %p34 = scmp.ne.s32.totalorder %s23, %s24
    %p35 = scmp.eq.s32.totalorder %s15, 0
    %p36 = por %p34, %p35
    %p37 = scmp.ne.s32.totalorder %s23, %s24
    %p38 = scmp.eq.s32.totalorder %s16, 1
    %p39 = por %p37, %p38
    %p41 = scmp.ne.s32.totalorder %s24, %s40
    %p42 = scmp.eq.s32.totalorder %s16, 0
    %p43 = por %p41, %p42
    %s44 = ssub.s32 %s10, %s17
    %p45 = scmp.eq.s32.totalorder %s44, 0
    %s47 = sadd.s32 %s46, 1
    %s48 = scalar_select %p45, %s46, %s47
    %p51 = pneg %p45
    %p52 = scmp.eq.s32.totalorder %s10, 1
    %p53 = por %p51, %p52
    %p54 = scmp.ne.s32.totalorder %s46, %s49
    %p55 = scmp.eq.s32.totalorder %s10, 0
    %p56 = por %p54, %p55
    %p57 = scmp.ne.s32.totalorder %s46, %s49
    %p58 = scmp.eq.s32.totalorder %s15, 1
    %p59 = por %p57, %p58
    %p60 = scmp.ne.s32.totalorder %s49, %s50
    %p61 = scmp.eq.s32.totalorder %s15, 0
    %p62 = por %p60, %p61
    %p63 = scmp.ne.s32.totalorder %s49, %s50
    %p64 = scmp.eq.s32.totalorder %s16, 1
    %p65 = por %p63, %p64
    %p67 = scmp.ne.s32.totalorder %s50, %s66
    %p68 = scmp.eq.s32.totalorder %s16, 0
    %p69 = por %p67, %p68
    %s71 = sadd.s32 %s70, 1
    %p74 = scmp.eq.s32.totalorder %s10, 1
    %p75 = scmp.ne.s32.totalorder %s70, %s72
    %p76 = scmp.eq.s32.totalorder %s10, 0
    %p77 = por %p75, %p76
    %p78 = scmp.ne.s32.totalorder %s70, %s72
    %p79 = scmp.eq.s32.totalorder %s15, 1
    %p80 = por %p78, %p79
    %p81 = scmp.ne.s32.totalorder %s72, %s73
    %p82 = scmp.eq.s32.totalorder %s15, 0
    %p83 = por %p81, %p82
    %p84 = scmp.ne.s32.totalorder %s72, %s73
    %p85 = scmp.eq.s32.totalorder %s16, 1
    %p86 = por %p84, %p85
    %p88 = scmp.ne.s32.totalorder %s73, %s87
    %p89 = scmp.eq.s32.totalorder %s16, 0
    %p90 = por %p88, %p89
    %s92 = sadd.s32 %s91, 1
    %p95 = scmp.eq.s32.totalorder %s10, 1
    %p96 = scmp.ne.s32.totalorder %s91, %s93
    %p97 = scmp.eq.s32.totalorder %s10, 0
    %p98 = por %p96, %p97
    %p99 = scmp.ne.s32.totalorder %s91, %s93
    %p100 = scmp.eq.s32.totalorder %s15, 1
    %p101 = por %p99, %p100
    %p102 = scmp.ne.s32.totalorder %s93, %s94
    %p103 = scmp.eq.s32.totalorder %s15, 0
    %p104 = por %p102, %p103
    %p105 = scmp.ne.s32.totalorder %s93, %s94
    %p106 = scmp.eq.s32.totalorder %s16, 1
    %p107 = por %p105, %p106
    %p109 = scmp.ne.s32.totalorder %s94, %s108
    %p110 = scmp.eq.s32.totalorder %s16, 0
    %p111 = por %p109, %p110
    %s112 = ssub.s32 %s10, %s17
    %p113 = scmp.eq.s32.totalorder %s112, 0
    %s115 = sadd.s32 %s114, 1
    %s116 = scalar_select %p113, %s114, %s115
    %p119 = pneg %p113
    %p120 = scmp.eq.s32.totalorder %s10, 1
    %p121 = por %p119, %p120
    %p122 = scmp.ne.s32.totalorder %s114, %s117
    %p123 = scmp.eq.s32.totalorder %s10, 0
    %p124 = por %p122, %p123
    %p125 = scmp.ne.s32.totalorder %s114, %s117
    %p126 = scmp.eq.s32.totalorder %s15, 1
    %p127 = por %p125, %p126
    %p128 = scmp.ne.s32.totalorder %s117, %s118
    %p129 = scmp.eq.s32.totalorder %s15, 0
    %p130 = por %p128, %p129
    %p131 = scmp.ne.s32.totalorder %s117, %s118
    %p132 = scmp.eq.s32.totalorder %s16, 1
    %p133 = por %p131, %p132
    %p135 = scmp.ne.s32.totalorder %s118, %s134
    %p136 = scmp.eq.s32.totalorder %s16, 0
    %p137 = por %p135, %p136
    %p138 = scmp.le.s32.totalorder 1, %s10
    %p139 = scmp.lt.s32.totalorder %s10, 3
    %p140 = pnand %p138, %p139
    %p141 = pneg %p140
    // Predicated region
    $region9: #{basic_block_pallas.5} parent=5 // pred_check
      _
    $region10: #{basic_block_pallas.5} parent=5 // pred_check_branch
      %143 = sbr.rel (%p140) target = $region12
    $region11: #{basic_block_pallas.5} parent=5 // pred_region
      %s144 = ssub.s32 %s10, 1
      // Predicated region
      $region13: #{basic_block_pallas.5} parent=11 // pred_check
        %p145 = pneg %p83
      $region14: #{basic_block_pallas.5} parent=11 // pred_check_branch
        %147 = sbr.rel (%p145) target = $region16
      $region15: #{basic_block_pallas.5} parent=11 // pred_region
        _
      $region16: #{basic_block_pallas.5} parent=11 // pred_fallthru
        _
      // Predicated region
      $region17: #{basic_block_pallas.5} parent=11 // pred_check
        %p148 = pneg %p104
      $region18: #{basic_block_pallas.5} parent=11 // pred_check_branch
        %150 = sbr.rel (%p148) target = $region20
      $region19: #{basic_block_pallas.5} parent=11 // pred_region
        _
      $region20: #{basic_block_pallas.5} parent=11 // pred_fallthru
        _
    $region12: #{basic_block_pallas.5} parent=5 // pred_fallthru
      _
    %p151 = scmp.lt.s32.totalorder %s10, 2
    // Predicated region
    $region21: #{basic_block_pallas.5} parent=5 // pred_check
      %p152 = pneg %p151
    $region22: #{basic_block_pallas.5} parent=5 // pred_check_branch
      %154 = sbr.rel (%p152) target = $region24
    $region23: #{basic_block_pallas.5} parent=5 // pred_region
      // Predicated region
      $region25: #{basic_block_pallas.5} parent=23 // pred_check
        %p155 = pneg %p30
      $region26: #{basic_block_pallas.5} parent=23 // pred_check_branch
        %157 = sbr.rel (%p155) target = $region28
      $region27: #{basic_block_pallas.5} parent=23 // pred_region
        %p158 = scmp.lt.s32.totalorder %s10, 1
        %s159 = scalar_select %p158, %s10, 1
        %s160 = smul.addr %s159, 6
        %s161 = smul.addr %s160, 4
        %s162 = scalar_lea.vmem %s0, %s161
      $region28: #{basic_block_pallas.5} parent=23 // pred_fallthru
        _
      // Predicated region
      $region29: #{basic_block_pallas.5} parent=23 // pred_check
        %p163 = pneg %p56
      $region30: #{basic_block_pallas.5} parent=23 // pred_check_branch
        %165 = sbr.rel (%p163) target = $region32
      $region31: #{basic_block_pallas.5} parent=23 // pred_region
        %p166 = scmp.lt.s32.totalorder %s10, 1
        %s167 = scalar_select %p166, %s10, 1
        %s168 = smul.addr %s167, 6
        %s169 = smul.addr %s168, 4
        %s170 = scalar_lea.vmem %s1, %s169
      $region32: #{basic_block_pallas.5} parent=23 // pred_fallthru
        _
    $region24: #{basic_block_pallas.5} parent=5 // pred_fallthru
      _
    %p171 = scmp.le.s32.totalorder 1, %s10
    %p172 = scmp.lt.s32.totalorder %s10, 3
    %p173 = pnand %p171, %p172
    %p174 = pneg %p173
    // Predicated region
    $region33: #{basic_block_pallas.5} parent=5 // pred_check
      _
    $region34: #{basic_block_pallas.5} parent=5 // pred_check_branch
      %176 = sbr.rel (%p173) target = $region36
    $region35: #{basic_block_pallas.5} parent=5 // pred_region
      %s177 = ssub.s32 %s10, 1
      %p178 = scmp.lt.s32.totalorder %s15, 1
      %s179 = scalar_select %p178, %s15, 1
      %s180 = smul.addr %s179, 6
      %s181 = smul.addr %s180, 4
      %s182 = scalar_lea.vmem %s0, %s181
      %p183 = pneg %p36
      %p184 = pneg %p33
      %p185 = scmp.lt.s32.totalorder %s15, 1
      %s186 = scalar_select %p185, %s15, 1
      %s187 = smul.addr %s186, 6
      %s188 = smul.addr %s187, 4
      %s189 = scalar_lea.vmem %s1, %s188
      %p190 = pneg %p62
      %p191 = pneg %p59
      %p192 = pneg %p83
      %p193 = pneg %p80
      %p194 = pneg %p104
      %p195 = pneg %p101
      %p196 = pneg %p130
      %p197 = pneg %p127
      %p198 = scmp.lt.s32.totalorder %s15, 1
      %s199 = scalar_select %p198, %s15, 1
      %s200 = smul.addr %s199, 6
      %s201 = smul.addr %s200, 8
      %s202 = scalar_lea.vmem %s4, %s201
      %p203 = scmp.lt.s32.totalorder %s15, 1
      %s204 = scalar_select %p203, %s15, 1
      %s205 = smul.addr %s204, 6
      %s206 = smul.addr %s205, 4
      %s207 = scalar_lea.vmem %s0, %s206
      %p208 = scmp.lt.s32.totalorder %s15, 1
      %s209 = scalar_select %p208, %s15, 1
      %s210 = smul.addr %s209, 6
      %s211 = smul.addr %s210, 4
      %s212 = scalar_lea.vmem %s1, %s211
      %p213 = scmp.lt.s32.totalorder %s15, 1
      %s214 = scalar_select %p213, %s15, 1
      %s215 = smul.addr %s214, 6
      %s216 = smul.addr %s215, 8
      %s217 = scalar_lea.vmem %s4, %s216
      %v218 = vld [vmem:[%s207] sm:$0xff]
      %v219 = vld [vmem:[%s207 + $0x8] sm:$0xf]
      %v220 = vld [vmem:[%s207 + $0xc] sm:$0xff]
      %v221 = vld [vmem:[%s207 + $0x14] sm:$0xf]
      %v222 = vunpack.c.l.bf16 %v218
      %v223 = vunpack.c.h.bf16 %v218
      %v224 = vunpack.c.l.bf16 %v219
      %v225 = vunpack.c.l.bf16 %v220
      %v226 = vunpack.c.h.bf16 %v220
      %v227 = vunpack.c.l.bf16 %v221
      %v228 = vld [vmem:[%s212] sm:$0xff]
      %v229 = vld [vmem:[%s212 + $0x8] sm:$0xf]
      %v230 = vld [vmem:[%s212 + $0xc] sm:$0xff]
      %v231 = vld [vmem:[%s212 + $0x14] sm:$0xf]
      %v232 = vunpack.c.l.bf16 %v228
      %v233 = vunpack.c.h.bf16 %v228
      %v234 = vunpack.c.l.bf16 %v229
      %v235 = vunpack.c.l.bf16 %v230
      %v236 = vunpack.c.h.bf16 %v230
      %v237 = vunpack.c.l.bf16 %v231
      %v238 = vld [vmem:[%s2] sm:$0xff]
      %v239 = vld [vmem:[%s2 + $0x8] sm:$0xff]
      %241 = vset.pattern.permute.xlu0 0
      %242 = vperm.xlu0 %241, %v238
      %v243 = vpop.permute.xlu0 %242
      %246 = vset.pattern.permute.xlu0 0
      %247 = vperm.xlu0 %246, %v239
      %v248 = vpop.permute.xlu0 %247
      %v250 = vmul.f32 %v222, %v243
      %v251 = vmul.f32 %v223, %v243
      %v252 = vmul.f32 %v224, %v243
      %v253 = vmul.f32 %v225, %v248
      %v254 = vmul.f32 %v226, %v248
      %v255 = vmul.f32 %v227, %v248
      %v256 = vld [vmem:[%s3] sm:$0xff]
      %v257 = vld [vmem:[%s3 + $0x8] sm:$0xff]
      %259 = vset.pattern.permute.xlu0 0
      %260 = vperm.xlu0 %259, %v256
      %v261 = vpop.permute.xlu0 %260
      %264 = vset.pattern.permute.xlu0 0
      %265 = vperm.xlu0 %264, %v257
      %v266 = vpop.permute.xlu0 %265
      %v268 = vadd.f32 %v250, %v261
      %v269 = vadd.f32 %v251, %v261
      %v270 = vadd.f32 %v252, %v261
      %v271 = vadd.f32 %v253, %v266
      %v272 = vadd.f32 %v254, %v266
      %v273 = vadd.f32 %v255, %v266
      %v274 = vadd.f32 %v268, %v232
      %v275 = vadd.f32 %v269, %v233
      %v276 = vadd.f32 %v270, %v234
      %v277 = vadd.f32 %v271, %v235
      %v278 = vadd.f32 %v272, %v236
      %v279 = vadd.f32 %v273, %v237
      %v280 = vmax.f32 %v274, 0.0
      %v281 = vmax.f32 %v275, 0.0
      %v282 = vmax.f32 %v276, 0.0
      %v283 = vmax.f32 %v277, 0.0
      %v284 = vmax.f32 %v278, 0.0
      %v285 = vmax.f32 %v279, 0.0
      %286 = vst [vmem:[%s217] sm:$0xff] %v280
      %287 = vst [vmem:[%s217 + $0x8] sm:$0xff] %v281
      %288 = vst [vmem:[%s217 + $0x10] sm:$0xff] %v282
      %289 = vst [vmem:[%s217 + $0x18] sm:$0xff] %v283
      %290 = vst [vmem:[%s217 + $0x20] sm:$0xff] %v284
      %291 = vst [vmem:[%s217 + $0x28] sm:$0xff] %v285
      %p292 = scmp.lt.s32.totalorder %s15, 1
      %s293 = scalar_select %p292, %s15, 1
      %s294 = smul.addr %s293, 6
      %s295 = smul.addr %s294, 8
      %s296 = scalar_lea.vmem %s4, %s295
      // Predicated region
      $region37: #{basic_block_pallas.5} parent=35 // pred_check
        %p297 = pneg %p127
      $region38: #{basic_block_pallas.5} parent=35 // pred_check_branch
        %299 = sbr.rel (%p297) target = $region40
      $region39: #{basic_block_pallas.5} parent=35 // pred_region
        _
      $region40: #{basic_block_pallas.5} parent=35 // pred_fallthru
        _
    $region36: #{basic_block_pallas.5} parent=5 // pred_fallthru
      _
    %p300 = scmp.le.s32.totalorder 2, %s10
    // Predicated region
    $region41: #{basic_block_pallas.5} parent=5 // pred_check
      %p301 = pneg %p300
    $region42: #{basic_block_pallas.5} parent=5 // pred_check_branch
      %303 = sbr.rel (%p301) target = $region44
    $region43: #{basic_block_pallas.5} parent=5 // pred_region
      %s304 = ssub.s32 %s10, 2
      // Predicated region
      $region45: #{basic_block_pallas.5} parent=43 // pred_check
        %p305 = pneg %p133
      $region46: #{basic_block_pallas.5} parent=43 // pred_check_branch
        %307 = sbr.rel (%p305) target = $region48
      $region47: #{basic_block_pallas.5} parent=43 // pred_region
        %p308 = scmp.lt.s32.totalorder %s16, 1
        %s309 = scalar_select %p308, %s16, 1
        %s310 = smul.addr %s309, 6
        %s311 = smul.addr %s310, 8
        %s312 = scalar_lea.vmem %s4, %s311
      $region48: #{basic_block_pallas.5} parent=43 // pred_fallthru
        _
    $region44: #{basic_block_pallas.5} parent=5 // pred_fallthru
      _
  $region6: #{basic_block_pallas.5} parent=0 // loop_footer
    %s14 = sadd.s32 1, %s10
  $region7: #{basic_block_pallas.5} parent=0 // loop_footer_branch
    %9 = sbr.rel target = $region3
  $region8: #{basic_block_pallas.5} parent=0 // loop_exit
    _

// kernel: basic_block_pallas.3
$region0: #{basic_block_pallas.3}
  #allocation0 [shape = 'u32[]', space=smem, size = 0x4, offset = 0x4, fixed_abs, tag = 'smem constant byte address 0x4 - core index']
  #allocation1 [shape = 'u32[144,128]{1,0:T(1,128)}', space=vmem, size = 0x12000, scoped, tag = 'internal scratch']
  %s0 = inlined_call_operand.vmem [shape: bf16[2,16,384], index: 0, kind: input, shape index: {}]
  %s1 = inlined_call_operand.vmem [shape: bf16[9,16,16], index: 1, kind: input, shape index: {}]
  %s2 = inlined_call_operand.vmem [shape: f32[1,384], index: 2, kind: input, shape index: {}]
  %s3 = inlined_call_operand.vmem [shape: bf16[2,16,384], index: 3, kind: output, shape index: {0}]
  %s4 = inlined_call_operand.vmem [shape: f32[2,16,2], index: 4, kind: output, shape index: {1}]
  %5 = xla_tuple %s3, %s4
  %s6 = sld [smem:[#allocation0]]
  $region53: #{basic_block_pallas.3} parent=0
    _
  %s8 = ssub.s32 1, %s6
  %s9 = scalar_select 0, %s8, %s6
  loop: start=0, step=1, limit=4
  $region2: #{basic_block_pallas.3} parent=0 // loop_pre_header
    _
  $region3: #{basic_block_pallas.3} parent=0 // loop_header
    %s11 = sphi 0, %s15
    %p12 = scmp.ge.s32.totalorder %s11, 4
    %s21 = sphi 0, %s23
    %s24 = sphi 0, %s21
    %s25 = sphi 0, %s24
    %s41 = sphi 0, %s25
    %s45 = sphi 0, %s45
    %s47 = sphi 0, %s45
    %s48 = sphi 0, %s47
    %s62 = sphi 0, %s48
    %s66 = sphi 0, %s66
    %s68 = sphi 0, %s66
    %s69 = sphi 0, %s68
    %s83 = sphi 0, %s69
    %s89 = sphi 0, %s91
    %s92 = sphi 0, %s89
    %s93 = sphi 0, %s92
    %s109 = sphi 0, %s93
    %s115 = sphi 0, %s117
    %s118 = sphi 0, %s115
    %s119 = sphi 0, %s118
    %s135 = sphi 0, %s119
  $region4: #{basic_block_pallas.3} parent=0 // loop_header_branch
    %14 = sbr.rel (%p12) target = $region8
  $region5: #{basic_block_pallas.3} parent=0 // loop_body
    %s16 = ssub.s32 %s11, 1
    %s17 = ssub.s32 %s11, 2
    %s18 = sadd.s32 %s11, 1
    %s19 = ssub.s32 %s11, %s18
    %p20 = scmp.eq.s32.totalorder %s19, 0
    %s22 = sadd.s32 %s21, 1
    %s23 = scalar_select %p20, %s21, %s22
    %p26 = pneg %p20
    %p27 = scmp.eq.s32.totalorder %s11, 1
    %p28 = por %p26, %p27
    %p29 = scmp.ne.s32.totalorder %s21, %s24
    %p30 = scmp.eq.s32.totalorder %s11, 0
    %p31 = por %p29, %p30
    %p32 = scmp.ne.s32.totalorder %s21, %s24
    %p33 = scmp.eq.s32.totalorder %s16, 1
    %p34 = por %p32, %p33
    %p35 = scmp.ne.s32.totalorder %s24, %s25
    %p36 = scmp.eq.s32.totalorder %s16, 0
    %p37 = por %p35, %p36
    %p38 = scmp.ne.s32.totalorder %s24, %s25
    %p39 = scmp.eq.s32.totalorder %s17, 1
    %p40 = por %p38, %p39
    %p42 = scmp.ne.s32.totalorder %s25, %s41
    %p43 = scmp.eq.s32.totalorder %s17, 0
    %p44 = por %p42, %p43
    %s46 = sadd.s32 %s45, 1
    %p49 = scmp.eq.s32.totalorder %s11, 1
    %p50 = scmp.ne.s32.totalorder %s45, %s47
    %p51 = scmp.eq.s32.totalorder %s11, 0
    %p52 = por %p50, %p51
    %p53 = scmp.ne.s32.totalorder %s45, %s47
    %p54 = scmp.eq.s32.totalorder %s16, 1
    %p55 = por %p53, %p54
    %p56 = scmp.ne.s32.totalorder %s47, %s48
    %p57 = scmp.eq.s32.totalorder %s16, 0
    %p58 = por %p56, %p57
    %p59 = scmp.ne.s32.totalorder %s47, %s48
    %p60 = scmp.eq.s32.totalorder %s17, 1
    %p61 = por %p59, %p60
    %p63 = scmp.ne.s32.totalorder %s48, %s62
    %p64 = scmp.eq.s32.totalorder %s17, 0
    %p65 = por %p63, %p64
    %s67 = sadd.s32 %s66, 1
    %p70 = scmp.eq.s32.totalorder %s11, 1
    %p71 = scmp.ne.s32.totalorder %s66, %s68
    %p72 = scmp.eq.s32.totalorder %s11, 0
    %p73 = por %p71, %p72
    %p74 = scmp.ne.s32.totalorder %s66, %s68
    %p75 = scmp.eq.s32.totalorder %s16, 1
    %p76 = por %p74, %p75
    %p77 = scmp.ne.s32.totalorder %s68, %s69
    %p78 = scmp.eq.s32.totalorder %s16, 0
    %p79 = por %p77, %p78
    %p80 = scmp.ne.s32.totalorder %s68, %s69
    %p81 = scmp.eq.s32.totalorder %s17, 1
    %p82 = por %p80, %p81
    %p84 = scmp.ne.s32.totalorder %s69, %s83
    %p85 = scmp.eq.s32.totalorder %s17, 0
    %p86 = por %p84, %p85
    %s87 = ssub.s32 %s11, %s18
    %p88 = scmp.eq.s32.totalorder %s87, 0
    %s90 = sadd.s32 %s89, 1
    %s91 = scalar_select %p88, %s89, %s90
    %p94 = pneg %p88
    %p95 = scmp.eq.s32.totalorder %s11, 1
    %p96 = por %p94, %p95
    %p97 = scmp.ne.s32.totalorder %s89, %s92
    %p98 = scmp.eq.s32.totalorder %s11, 0
    %p99 = por %p97, %p98
    %p100 = scmp.ne.s32.totalorder %s89, %s92
    %p101 = scmp.eq.s32.totalorder %s16, 1
    %p102 = por %p100, %p101
    %p103 = scmp.ne.s32.totalorder %s92, %s93
    %p104 = scmp.eq.s32.totalorder %s16, 0
    %p105 = por %p103, %p104
    %p106 = scmp.ne.s32.totalorder %s92, %s93
    %p107 = scmp.eq.s32.totalorder %s17, 1
    %p108 = por %p106, %p107
    %p110 = scmp.ne.s32.totalorder %s93, %s109
    %p111 = scmp.eq.s32.totalorder %s17, 0
    %p112 = por %p110, %p111
    %s113 = ssub.s32 %s11, %s18
    %p114 = scmp.eq.s32.totalorder %s113, 0
    %s116 = sadd.s32 %s115, 1
    %s117 = scalar_select %p114, %s115, %s116
    %p120 = pneg %p114
    %p121 = scmp.eq.s32.totalorder %s11, 1
    %p122 = por %p120, %p121
    %p123 = scmp.ne.s32.totalorder %s115, %s118
    %p124 = scmp.eq.s32.totalorder %s11, 0
    %p125 = por %p123, %p124
    %p126 = scmp.ne.s32.totalorder %s115, %s118
    %p127 = scmp.eq.s32.totalorder %s16, 1
    %p128 = por %p126, %p127
    %p129 = scmp.ne.s32.totalorder %s118, %s119
    %p130 = scmp.eq.s32.totalorder %s16, 0
    %p131 = por %p129, %p130
    %p132 = scmp.ne.s32.totalorder %s118, %s119
    %p133 = scmp.eq.s32.totalorder %s17, 1
    %p134 = por %p132, %p133
    %p136 = scmp.ne.s32.totalorder %s119, %s135
    %p137 = scmp.eq.s32.totalorder %s17, 0
    %p138 = por %p136, %p137
    %p139 = scmp.le.s32.totalorder 1, %s11
    %p140 = scmp.lt.s32.totalorder %s11, 3
    %p141 = pnand %p139, %p140
    %p142 = pneg %p141
    // Predicated region
    $region9: #{basic_block_pallas.3} parent=5 // pred_check
      _
    $region10: #{basic_block_pallas.3} parent=5 // pred_check_branch
      %144 = sbr.rel (%p141) target = $region12
    $region11: #{basic_block_pallas.3} parent=5 // pred_region
      %s145 = ssub.s32 %s11, 1
      // Predicated region
      $region13: #{basic_block_pallas.3} parent=11 // pred_check
        %p146 = pneg %p58
      $region14: #{basic_block_pallas.3} parent=11 // pred_check_branch
        %148 = sbr.rel (%p146) target = $region16
      $region15: #{basic_block_pallas.3} parent=11 // pred_region
        _
      $region16: #{basic_block_pallas.3} parent=11 // pred_fallthru
        _
      // Predicated region
      $region17: #{basic_block_pallas.3} parent=11 // pred_check
        %p149 = pneg %p79
      $region18: #{basic_block_pallas.3} parent=11 // pred_check_branch
        %151 = sbr.rel (%p149) target = $region20
      $region19: #{basic_block_pallas.3} parent=11 // pred_region
        _
      $region20: #{basic_block_pallas.3} parent=11 // pred_fallthru
        _
    $region12: #{basic_block_pallas.3} parent=5 // pred_fallthru
      _
    %p152 = scmp.lt.s32.totalorder %s11, 2
    // Predicated region
    $region21: #{basic_block_pallas.3} parent=5 // pred_check
      %p153 = pneg %p152
    $region22: #{basic_block_pallas.3} parent=5 // pred_check_branch
      %155 = sbr.rel (%p153) target = $region24
    $region23: #{basic_block_pallas.3} parent=5 // pred_region
      // Predicated region
      $region25: #{basic_block_pallas.3} parent=23 // pred_check
        %p156 = pneg %p31
      $region26: #{basic_block_pallas.3} parent=23 // pred_check_branch
        %158 = sbr.rel (%p156) target = $region28
      $region27: #{basic_block_pallas.3} parent=23 // pred_region
        %p159 = scmp.lt.s32.totalorder %s11, 1
        %s160 = scalar_select %p159, %s11, 1
        %s161 = smul.addr %s160, 6
        %s162 = smul.addr %s161, 4
        %s163 = scalar_lea.vmem %s0, %s162
      $region28: #{basic_block_pallas.3} parent=23 // pred_fallthru
        _
    $region24: #{basic_block_pallas.3} parent=5 // pred_fallthru
      _
    %p164 = scmp.le.s32.totalorder 1, %s11
    %p165 = scmp.lt.s32.totalorder %s11, 3
    %p166 = pnand %p164, %p165
    %p167 = pneg %p166
    // Predicated region
    $region29: #{basic_block_pallas.3} parent=5 // pred_check
      _
    $region30: #{basic_block_pallas.3} parent=5 // pred_check_branch
      %169 = sbr.rel (%p166) target = $region32
    $region31: #{basic_block_pallas.3} parent=5 // pred_region
      %s170 = ssub.s32 %s11, 1
      %p171 = scmp.lt.s32.totalorder %s16, 1
      %s172 = scalar_select %p171, %s16, 1
      %s173 = smul.addr %s172, 6
      %s174 = smul.addr %s173, 4
      %s175 = scalar_lea.vmem %s0, %s174
      %p176 = pneg %p37
      %p177 = pneg %p34
      %p178 = pneg %p58
      %p179 = pneg %p55
      %p180 = pneg %p79
      %p181 = pneg %p76
      %p182 = pneg %p105
      %p183 = pneg %p102
      %p184 = scmp.lt.s32.totalorder %s16, 1
      %s185 = scalar_select %p184, %s16, 1
      %s186 = smul.addr %s185, 6
      %s187 = smul.addr %s186, 4
      %s188 = scalar_lea.vmem %s3, %s187
      %p189 = pneg %p131
      %p190 = pneg %p128
      %p191 = scmp.lt.s32.totalorder %s16, 1
      %s192 = scalar_select %p191, %s16, 1
      %s193 = smul.addr %s192, 2
      %s194 = smul.addr %s193, 8
      %s195 = scalar_lea.vmem %s4, %s194
      %p196 = scmp.lt.s32.totalorder %s16, 1
      %s197 = scalar_select %p196, %s16, 1
      %s198 = smul.addr %s197, 6
      %s199 = smul.addr %s198, 4
      %s200 = scalar_lea.vmem %s0, %s199
      %p201 = scmp.lt.s32.totalorder %s16, 1
      %s202 = scalar_select %p201, %s16, 1
      %s203 = smul.addr %s202, 6
      %s204 = smul.addr %s203, 4
      %s205 = scalar_lea.vmem %s3, %s204
      %p206 = scmp.lt.s32.totalorder %s16, 1
      %s207 = scalar_select %p206, %s16, 1
      %s208 = smul.addr %s207, 2
      %s209 = smul.addr %s208, 8
      %s210 = scalar_lea.vmem %s4, %s209
      %v212 = vld [vmem:[%s200] sm:$0xff]
      %v213 = vld [vmem:[%s200 + $0x8] sm:$0xf]
      %v214 = vld [vmem:[%s200 + $0xc] sm:$0xff]
      %v215 = vld [vmem:[%s200 + $0x14] sm:$0xf]
      %v216 = vld [vmem:[%s1] sm:$0xf]
      %v217 = vld [vmem:[%s1 + $0x4] sm:$0xf]
      %s218 = scalar_lea.vmem %s1, 8
      %v219 = vld [vmem:[%s218] sm:$0xf]
      %v220 = vld [vmem:[%s218 + $0x4] sm:$0xf]
      %v223 = vunpack.c.l.b16 %v219
      %v224 = vunpack.c.l.b16 %v220
      %v225 = vpack.c.b16 %v224, %v223
      %v230 = vunpack.c.l.b16 %v212
      %v231 = vunpack.c.h.b16 %v212
      %v232 = vunpack.c.l.b16 %v213
      %v233 = vunpack.c.l.b16 %v214
      %v234 = vunpack.c.h.b16 %v214
      %v235 = vunpack.c.l.b16 %v215
      %v236 = vpack.c.b16 %v233, %v230
      %v237 = vpack.c.b16 %v234, %v231
      %v238 = vpack.c.b16 %v235, %v232
      %239 = vrot.lane.b32.xlu0 %v236, 127
      %v240 = vpop.permute.xlu0 %239
      %241 = vrot.lane.b32.xlu0 %v237, 127
      %v242 = vpop.permute.xlu0 %241
      %243 = vrot.lane.b32.xlu0 %v238, 127
      %v244 = vpop.permute.xlu0 %243
      %vm245 = vcmask 1039360
      %v246 = vsel %vm245, %v240, %v242
      %v247 = vsel %vm245, %v242, %v244
      %vm251 = vcmask 130048
      %v253 = vsel %vm251, %v225, 0
      %255 = vmatprep.subr.bf16.mxu0 0
      %256 = vmatpush1.bf16.msra.mxu0 0
      %257 = vmatprep.subr.bf16.mxu0 0
      %258 = vmatpush1.bf16.msra.mxu0 0
      %259 = vmatprep.subr.bf16.mxu0 0
      %260 = vmatpush1.bf16.msra.mxu0 0
      %261 = vmatprep.subr.bf16.mxu0 0
      %262 = vmatpush1.bf16.msra.mxu0 0
      %263 = vmatprep.subr.bf16.mxu0 0
      %264 = vmatpush1.bf16.msra.mxu0 0
      %265 = vmatprep.subr.bf16.mxu0 0
      %266 = vmatpush1.bf16.msra.mxu0 0
      %267 = vmatprep.subr.bf16.mxu0 0
      %268 = vmatpush1.bf16.msra.mxu0 0
      %269 = vmatprep.subr.bf16.mxu0 %v247
      %270 = vmatpush1.bf16.msra.mxu0 %v246
      %271 = vmatprep.subr.bf16.mxu0 0
      %272 = vmatpush2.bf16.msra.mxu0 0
      %273 = vmatprep.subr.bf16.mxu0 0
      %274 = vmatpush2.bf16.msra.mxu0 0
      %275 = vmatprep.subr.bf16.mxu0 0
      %276 = vmatpush2.bf16.msra.mxu0 0
      %277 = vmatprep.subr.bf16.mxu0 0
      %278 = vmatpush2.bf16.msra.mxu0 0
      %279 = vmatprep.subr.bf16.mxu0 0
      %280 = vmatpush2.bf16.msra.mxu0 0
      %281 = vmatprep.subr.bf16.mxu0 0
      %282 = vmatpush2.bf16.msra.mxu0 0
      %283 = vmatprep.subr.bf16.mxu0 0
      %284 = vmatpush2.bf16.msra.mxu0 0
      %285 = vmatprep.subr.bf16.mxu0 0
      %286 = vmatpush2.bf16.msra.mxu0 0
      %287 = vmatprep.mubr.bf16.mxu0 0
      %288 = vmatmul.mubr.bf16.gmra.mxu0 %v253
      %v289 = vpop.f32.mrf.mxu0
      %v290 = vadd.f32 0.0, %v289
      %v291 = vpop.f32.mrf.mxu0
      %v292 = vadd.f32 0.0, %v291
      %v293 = vpop.f32.mrf.mxu0
      %v294 = vadd.f32 0.0, %v293
      %v295 = vpop.f32.mrf.mxu0
      %v296 = vadd.f32 0.0, %v295
      %297 = vdwg.mxu0
      %298 = vmatprep.subr.bf16.mxu0 0
      %299 = vmatpush1.bf16.msra.mxu0 0
      %300 = vmatprep.subr.bf16.mxu0 0
      %301 = vmatpush1.bf16.msra.mxu0 0
      %302 = vmatprep.subr.bf16.mxu0 0
      %303 = vmatpush1.bf16.msra.mxu0 0
      %304 = vmatprep.subr.bf16.mxu0 0
      %305 = vmatpush1.bf16.msra.mxu0 0
      %306 = vmatprep.subr.bf16.mxu0 0
      %307 = vmatpush1.bf16.msra.mxu0 0
      %308 = vmatprep.subr.bf16.mxu0 0
      %309 = vmatpush1.bf16.msra.mxu0 0
      %310 = vmatprep.subr.bf16.mxu0 0
      %311 = vmatpush1.bf16.msra.mxu0 0
      %312 = vmatprep.subr.bf16.mxu0 0
      %313 = vmatpush1.bf16.msra.mxu0 %v244
      %314 = vmatprep.subr.bf16.mxu0 0
      %315 = vmatpush2.bf16.msra.mxu0 0
      %316 = vmatprep.subr.bf16.mxu0 0
      %317 = vmatpush2.bf16.msra.mxu0 0
      %318 = vmatprep.subr.bf16.mxu0 0
      %319 = vmatpush2.bf16.msra.mxu0 0
      %320 = vmatprep.subr.bf16.mxu0 0
      %321 = vmatpush2.bf16.msra.mxu0 0
      %322 = vmatprep.subr.bf16.mxu0 0
      %323 = vmatpush2.bf16.msra.mxu0 0
      %324 = vmatprep.subr.bf16.mxu0 0
      %325 = vmatpush2.bf16.msra.mxu0 0
      %326 = vmatprep.subr.bf16.mxu0 0
      %327 = vmatpush2.bf16.msra.mxu0 0
      %328 = vmatprep.subr.bf16.mxu0 0
      %329 = vmatpush2.bf16.msra.mxu0 0
      %330 = vmatprep.mubr.bf16.mxu0 0
      %331 = vmatmul.mubr.bf16.gmra.mxu0 %v253
      %v332 = vpop.f32.mrf.mxu0
      %v333 = vadd.f32 0.0, %v332
      %v334 = vpop.f32.mrf.mxu0
      %v335 = vpop.f32.mrf.mxu0
      %v336 = vadd.f32 0.0, %v335
      %v337 = vpop.f32.mrf.mxu0
      %338 = vdwg.mxu0
      %v341 = vunpack.c.l.b16 %v216
      %v342 = vunpack.c.l.b16 %v217
      %v343 = vpack.c.b16 %v342, %v341
      %v348 = vsel %vm251, %v343, 0
      %350 = vmatprep.subr.bf16.mxu0 0
      %351 = vmatpush1.bf16.msra.mxu0 0
      %352 = vmatprep.subr.bf16.mxu0 0
      %353 = vmatpush1.bf16.msra.mxu0 0
      %354 = vmatprep.subr.bf16.mxu0 0
      %355 = vmatpush1.bf16.msra.mxu0 0
      %356 = vmatprep.subr.bf16.mxu0 0
      %357 = vmatpush1.bf16.msra.mxu0 0
      %358 = vmatprep.subr.bf16.mxu0 0
      %359 = vmatpush1.bf16.msra.mxu0 0
      %360 = vmatprep.subr.bf16.mxu0 0
      %361 = vmatpush1.bf16.msra.mxu0 0
      %362 = vmatprep.subr.bf16.mxu0 0
      %363 = vmatpush1.bf16.msra.mxu0 0
      %364 = vmatprep.subr.bf16.mxu0 %v237
      %365 = vmatpush1.bf16.msra.mxu0 %v236
      %366 = vmatprep.subr.bf16.mxu0 0
      %367 = vmatpush2.bf16.msra.mxu0 0
      %368 = vmatprep.subr.bf16.mxu0 0
      %369 = vmatpush2.bf16.msra.mxu0 0
      %370 = vmatprep.subr.bf16.mxu0 0
      %371 = vmatpush2.bf16.msra.mxu0 0
      %372 = vmatprep.subr.bf16.mxu0 0
      %373 = vmatpush2.bf16.msra.mxu0 0
      %374 = vmatprep.subr.bf16.mxu0 0
      %375 = vmatpush2.bf16.msra.mxu0 0
      %376 = vmatprep.subr.bf16.mxu0 0
      %377 = vmatpush2.bf16.msra.mxu0 0
      %378 = vmatprep.subr.bf16.mxu0 0
      %379 = vmatpush2.bf16.msra.mxu0 0
      %380 = vmatprep.subr.bf16.mxu0 0
      %381 = vmatpush2.bf16.msra.mxu0 0
      %382 = vmatprep.mubr.bf16.mxu0 0
      %383 = vmatmul.mubr.bf16.gmra.mxu0 %v348
      %v384 = vpop.f32.mrf.mxu0
      %v385 = vadd.f32 %v290, %v384
      %v386 = vpop.f32.mrf.mxu0
      %v387 = vadd.f32 %v292, %v386
      %v388 = vpop.f32.mrf.mxu0
      %v389 = vadd.f32 %v294, %v388
      %v390 = vpop.f32.mrf.mxu0
      %v391 = vadd.f32 %v296, %v390
      %392 = vdwg.mxu0
      %393 = vmatprep.subr.bf16.mxu0 0
      %394 = vmatpush1.bf16.msra.mxu0 0
      %395 = vmatprep.subr.bf16.mxu0 0
      %396 = vmatpush1.bf16.msra.mxu0 0
      %397 = vmatprep.subr.bf16.mxu0 0
      %398 = vmatpush1.bf16.msra.mxu0 0
      %399 = vmatprep.subr.bf16.mxu0 0
      %400 = vmatpush1.bf16.msra.mxu0 0
      %401 = vmatprep.subr.bf16.mxu0 0
      %402 = vmatpush1.bf16.msra.mxu0 0
      %403 = vmatprep.subr.bf16.mxu0 0
      %404 = vmatpush1.bf16.msra.mxu0 0
      %405 = vmatprep.subr.bf16.mxu0 0
      %406 = vmatpush1.bf16.msra.mxu0 0
      %407 = vmatprep.subr.bf16.mxu0 0
      %408 = vmatpush1.bf16.msra.mxu0 %v238
      %409 = vmatprep.subr.bf16.mxu0 0
      %410 = vmatpush2.bf16.msra.mxu0 0
      %411 = vmatprep.subr.bf16.mxu0 0
      %412 = vmatpush2.bf16.msra.mxu0 0
      %413 = vmatprep.subr.bf16.mxu0 0
      %414 = vmatpush2.bf16.msra.mxu0 0
      %415 = vmatprep.subr.bf16.mxu0 0
      %416 = vmatpush2.bf16.msra.mxu0 0
      %417 = vmatprep.subr.bf16.mxu0 0
      %418 = vmatpush2.bf16.msra.mxu0 0
      %419 = vmatprep.subr.bf16.mxu0 0
      %420 = vmatpush2.bf16.msra.mxu0 0
      %421 = vmatprep.subr.bf16.mxu0 0
      %422 = vmatpush2.bf16.msra.mxu0 0
      %423 = vmatprep.subr.bf16.mxu0 0
      %424 = vmatpush2.bf16.msra.mxu0 0
      %425 = vmatprep.mubr.bf16.mxu0 0
      %426 = vmatmul.mubr.bf16.gmra.mxu0 %v348
      %v427 = vpop.f32.mrf.mxu0
      %v428 = vadd.f32 %v333, %v427
      %v429 = vpop.f32.mrf.mxu0
      %v430 = vpop.f32.mrf.mxu0
      %v431 = vadd.f32 %v336, %v430
      %v432 = vpop.f32.mrf.mxu0
      %433 = vdwg.mxu0
      %s434 = scalar_lea.vmem %s1, 16
      %v435 = vld [vmem:[%s434] sm:$0xf]
      %v436 = vld [vmem:[%s434 + $0x4] sm:$0xf]
      %v439 = vunpack.c.l.b16 %v435
      %v440 = vunpack.c.l.b16 %v436
      %v441 = vpack.c.b16 %v440, %v439
      %442 = vrot.lane.b32.xlu0 %v236, 126
      %v443 = vpop.permute.xlu0 %442
      %444 = vrot.lane.b32.xlu0 %v237, 126
      %v445 = vpop.permute.xlu0 %444
      %446 = vrot.lane.b32.xlu0 %v238, 126
      %v447 = vpop.permute.xlu0 %446
      %vm448 = vcmask 1031168
      %v449 = vsel %vm448, %v443, %v445
      %v450 = vsel %vm448, %v445, %v447
      %v455 = vsel %vm251, %v441, 0
      %457 = vmatprep.subr.bf16.mxu0 0
      %458 = vmatpush1.bf16.msra.mxu0 0
      %459 = vmatprep.subr.bf16.mxu0 0
      %460 = vmatpush1.bf16.msra.mxu0 0
      %461 = vmatprep.subr.bf16.mxu0 0
      %462 = vmatpush1.bf16.msra.mxu0 0
      %463 = vmatprep.subr.bf16.mxu0 0
      %464 = vmatpush1.bf16.msra.mxu0 0
      %465 = vmatprep.subr.bf16.mxu0 0
      %466 = vmatpush1.bf16.msra.mxu0 0
      %467 = vmatprep.subr.bf16.mxu0 0
      %468 = vmatpush1.bf16.msra.mxu0 0
      %469 = vmatprep.subr.bf16.mxu0 0
      %470 = vmatpush1.bf16.msra.mxu0 0
      %471 = vmatprep.subr.bf16.mxu0 %v450
      %472 = vmatpush1.bf16.msra.mxu0 %v449
      %473 = vmatprep.subr.bf16.mxu0 0
      %474 = vmatpush2.bf16.msra.mxu0 0
      %475 = vmatprep.subr.bf16.mxu0 0
      %476 = vmatpush2.bf16.msra.mxu0 0
      %477 = vmatprep.subr.bf16.mxu0 0
      %478 = vmatpush2.bf16.msra.mxu0 0
      %479 = vmatprep.subr.bf16.mxu0 0
      %480 = vmatpush2.bf16.msra.mxu0 0
      %481 = vmatprep.subr.bf16.mxu0 0
      %482 = vmatpush2.bf16.msra.mxu0 0
      %483 = vmatprep.subr.bf16.mxu0 0
      %484 = vmatpush2.bf16.msra.mxu0 0
      %485 = vmatprep.subr.bf16.mxu0 0
      %486 = vmatpush2.bf16.msra.mxu0 0
      %487 = vmatprep.subr.bf16.mxu0 0
      %488 = vmatpush2.bf16.msra.mxu0 0
      %489 = vmatprep.mubr.bf16.mxu0 0
      %490 = vmatmul.mubr.bf16.gmra.mxu0 %v455
      %v491 = vpop.f32.mrf.mxu0
      %v492 = vadd.f32 0.0, %v491
      %v493 = vpop.f32.mrf.mxu0
      %v494 = vadd.f32 0.0, %v493
      %v495 = vpop.f32.mrf.mxu0
      %v496 = vadd.f32 0.0, %v495
      %v497 = vpop.f32.mrf.mxu0
      %v498 = vadd.f32 0.0, %v497
      %499 = vdwg.mxu0
      %500 = vmatprep.subr.bf16.mxu0 0
      %501 = vmatpush1.bf16.msra.mxu0 0
      %502 = vmatprep.subr.bf16.mxu0 0
      %503 = vmatpush1.bf16.msra.mxu0 0
      %504 = vmatprep.subr.bf16.mxu0 0
      %505 = vmatpush1.bf16.msra.mxu0 0
      %506 = vmatprep.subr.bf16.mxu0 0
      %507 = vmatpush1.bf16.msra.mxu0 0
      %508 = vmatprep.subr.bf16.mxu0 0
      %509 = vmatpush1.bf16.msra.mxu0 0
      %510 = vmatprep.subr.bf16.mxu0 0
      %511 = vmatpush1.bf16.msra.mxu0 0
      %512 = vmatprep.subr.bf16.mxu0 0
      %513 = vmatpush1.bf16.msra.mxu0 0
      %514 = vmatprep.subr.bf16.mxu0 0
      %515 = vmatpush1.bf16.msra.mxu0 %v447
      %516 = vmatprep.subr.bf16.mxu0 0
      %517 = vmatpush2.bf16.msra.mxu0 0
      %518 = vmatprep.subr.bf16.mxu0 0
      %519 = vmatpush2.bf16.msra.mxu0 0
      %520 = vmatprep.subr.bf16.mxu0 0
      %521 = vmatpush2.bf16.msra.mxu0 0
      %522 = vmatprep.subr.bf16.mxu0 0
      %523 = vmatpush2.bf16.msra.mxu0 0
      %524 = vmatprep.subr.bf16.mxu0 0
      %525 = vmatpush2.bf16.msra.mxu0 0
      %526 = vmatprep.subr.bf16.mxu0 0
      %527 = vmatpush2.bf16.msra.mxu0 0
      %528 = vmatprep.subr.bf16.mxu0 0
      %529 = vmatpush2.bf16.msra.mxu0 0
      %530 = vmatprep.subr.bf16.mxu0 0
      %531 = vmatpush2.bf16.msra.mxu0 0
      %532 = vmatprep.mubr.bf16.mxu0 0
      %533 = vmatmul.mubr.bf16.gmra.mxu0 %v455
      %v534 = vpop.f32.mrf.mxu0
      %v535 = vadd.f32 0.0, %v534
      %v536 = vpop.f32.mrf.mxu0
      %v537 = vpop.f32.mrf.mxu0
      %v538 = vadd.f32 0.0, %v537
      %v539 = vpop.f32.mrf.mxu0
      %540 = vdwg.mxu0
      %v541 = vadd.f32 %v385, %v492
      %v542 = vadd.f32 %v387, %v494
      %v543 = vadd.f32 %v428, %v535
      %v544 = vadd.f32 %v389, %v496
      %v545 = vadd.f32 %v391, %v498
      %v546 = vadd.f32 %v431, %v538
      %s547 = scalar_lea.vmem %s1, 24
      %v548 = vld [vmem:[%s547] sm:$0xf]
      %v549 = vld [vmem:[%s547 + $0x4] sm:$0xf]
      %v552 = vunpack.c.l.b16 %v548
      %v553 = vunpack.c.l.b16 %v549
      %v554 = vpack.c.b16 %v553, %v552
      %555 = vrot.lane.b32.xlu0 %v236, 110
      %v556 = vpop.permute.xlu0 %555
      %557 = vrot.lane.b32.xlu0 %v237, 110
      %v558 = vpop.permute.xlu0 %557
      %559 = vrot.lane.b32.xlu0 %v238, 110
      %v560 = vpop.permute.xlu0 %559
      %vm561 = vcmask 900096
      %v562 = vsel %vm561, %v556, %v558
      %v563 = vsel %vm561, %v558, %v560
      %v568 = vsel %vm251, %v554, 0
      %570 = vmatprep.subr.bf16.mxu0 0
      %571 = vmatpush1.bf16.msra.mxu0 0
      %572 = vmatprep.subr.bf16.mxu0 0
      %573 = vmatpush1.bf16.msra.mxu0 0
      %574 = vmatprep.subr.bf16.mxu0 0
      %575 = vmatpush1.bf16.msra.mxu0 0
      %576 = vmatprep.subr.bf16.mxu0 0
      %577 = vmatpush1.bf16.msra.mxu0 0
      %578 = vmatprep.subr.bf16.mxu0 0
      %579 = vmatpush1.bf16.msra.mxu0 0
      %580 = vmatprep.subr.bf16.mxu0 0
      %581 = vmatpush1.bf16.msra.mxu0 0
      %582 = vmatprep.subr.bf16.mxu0 0
      %583 = vmatpush1.bf16.msra.mxu0 0
      %584 = vmatprep.subr.bf16.mxu0 %v563
      %585 = vmatpush1.bf16.msra.mxu0 %v562
      %586 = vmatprep.subr.bf16.mxu0 0
      %587 = vmatpush2.bf16.msra.mxu0 0
      %588 = vmatprep.subr.bf16.mxu0 0
      %589 = vmatpush2.bf16.msra.mxu0 0
      %590 = vmatprep.subr.bf16.mxu0 0
      %591 = vmatpush2.bf16.msra.mxu0 0
      %592 = vmatprep.subr.bf16.mxu0 0
      %593 = vmatpush2.bf16.msra.mxu0 0
      %594 = vmatprep.subr.bf16.mxu0 0
      %595 = vmatpush2.bf16.msra.mxu0 0
      %596 = vmatprep.subr.bf16.mxu0 0
      %597 = vmatpush2.bf16.msra.mxu0 0
      %598 = vmatprep.subr.bf16.mxu0 0
      %599 = vmatpush2.bf16.msra.mxu0 0
      %600 = vmatprep.subr.bf16.mxu0 0
      %601 = vmatpush2.bf16.msra.mxu0 0
      %602 = vmatprep.mubr.bf16.mxu0 0
      %603 = vmatmul.mubr.bf16.gmra.mxu0 %v568
      %v604 = vpop.f32.mrf.mxu0
      %v605 = vadd.f32 0.0, %v604
      %v606 = vpop.f32.mrf.mxu0
      %v607 = vadd.f32 0.0, %v606
      %v608 = vpop.f32.mrf.mxu0
      %v609 = vadd.f32 0.0, %v608
      %v610 = vpop.f32.mrf.mxu0
      %v611 = vadd.f32 0.0, %v610
      %612 = vdwg.mxu0
      %613 = vmatprep.subr.bf16.mxu0 0
      %614 = vmatpush1.bf16.msra.mxu0 0
      %615 = vmatprep.subr.bf16.mxu0 0
      %616 = vmatpush1.bf16.msra.mxu0 0
      %617 = vmatprep.subr.bf16.mxu0 0
      %618 = vmatpush1.bf16.msra.mxu0 0
      %619 = vmatprep.subr.bf16.mxu0 0
      %620 = vmatpush1.bf16.msra.mxu0 0
      %621 = vmatprep.subr.bf16.mxu0 0
      %622 = vmatpush1.bf16.msra.mxu0 0
      %623 = vmatprep.subr.bf16.mxu0 0
      %624 = vmatpush1.bf16.msra.mxu0 0
      %625 = vmatprep.subr.bf16.mxu0 0
      %626 = vmatpush1.bf16.msra.mxu0 0
      %627 = vmatprep.subr.bf16.mxu0 0
      %628 = vmatpush1.bf16.msra.mxu0 %v560
      %629 = vmatprep.subr.bf16.mxu0 0
      %630 = vmatpush2.bf16.msra.mxu0 0
      %631 = vmatprep.subr.bf16.mxu0 0
      %632 = vmatpush2.bf16.msra.mxu0 0
      %633 = vmatprep.subr.bf16.mxu0 0
      %634 = vmatpush2.bf16.msra.mxu0 0
      %635 = vmatprep.subr.bf16.mxu0 0
      %636 = vmatpush2.bf16.msra.mxu0 0
      %637 = vmatprep.subr.bf16.mxu0 0
      %638 = vmatpush2.bf16.msra.mxu0 0
      %639 = vmatprep.subr.bf16.mxu0 0
      %640 = vmatpush2.bf16.msra.mxu0 0
      %641 = vmatprep.subr.bf16.mxu0 0
      %642 = vmatpush2.bf16.msra.mxu0 0
      %643 = vmatprep.subr.bf16.mxu0 0
      %644 = vmatpush2.bf16.msra.mxu0 0
      %645 = vmatprep.mubr.bf16.mxu0 0
      %646 = vmatmul.mubr.bf16.gmra.mxu0 %v568
      %v647 = vpop.f32.mrf.mxu0
      %v648 = vadd.f32 0.0, %v647
      %v649 = vpop.f32.mrf.mxu0
      %v650 = vpop.f32.mrf.mxu0
      %v651 = vadd.f32 0.0, %v650
      %v652 = vpop.f32.mrf.mxu0
      %653 = vdwg.mxu0
      %v654 = vadd.f32 %v541, %v605
      %v655 = vadd.f32 %v542, %v607
      %v656 = vadd.f32 %v543, %v648
      %v657 = vadd.f32 %v544, %v609
      %v658 = vadd.f32 %v545, %v611
      %v659 = vadd.f32 %v546, %v651
      %s660 = scalar_lea.vmem %s1, 32
      %v661 = vld [vmem:[%s660] sm:$0xf]
      %v662 = vld [vmem:[%s660 + $0x4] sm:$0xf]
      %v665 = vunpack.c.l.b16 %v661
      %v666 = vunpack.c.l.b16 %v662
      %v667 = vpack.c.b16 %v666, %v665
      %668 = vrot.lane.b32.xlu0 %v236, 109
      %v669 = vpop.permute.xlu0 %668
      %670 = vrot.lane.b32.xlu0 %v237, 109
      %v671 = vpop.permute.xlu0 %670
      %672 = vrot.lane.b32.xlu0 %v238, 109
      %v673 = vpop.permute.xlu0 %672
      %vm674 = vcmask 891904
      %v675 = vsel %vm674, %v669, %v671
      %v676 = vsel %vm674, %v671, %v673
      %v681 = vsel %vm251, %v667, 0
      %683 = vmatprep.subr.bf16.mxu0 0
      %684 = vmatpush1.bf16.msra.mxu0 0
      %685 = vmatprep.subr.bf16.mxu0 0
      %686 = vmatpush1.bf16.msra.mxu0 0
      %687 = vmatprep.subr.bf16.mxu0 0
      %688 = vmatpush1.bf16.msra.mxu0 0
      %689 = vmatprep.subr.bf16.mxu0 0
      %690 = vmatpush1.bf16.msra.mxu0 0
      %691 = vmatprep.subr.bf16.mxu0 0
      %692 = vmatpush1.bf16.msra.mxu0 0
      %693 = vmatprep.subr.bf16.mxu0 0
      %694 = vmatpush1.bf16.msra.mxu0 0
      %695 = vmatprep.subr.bf16.mxu0 0
      %696 = vmatpush1.bf16.msra.mxu0 0
      %697 = vmatprep.subr.bf16.mxu0 %v676
      %698 = vmatpush1.bf16.msra.mxu0 %v675
      %699 = vmatprep.subr.bf16.mxu0 0
      %700 = vmatpush2.bf16.msra.mxu0 0
      %701 = vmatprep.subr.bf16.mxu0 0
      %702 = vmatpush2.bf16.msra.mxu0 0
      %703 = vmatprep.subr.bf16.mxu0 0
      %704 = vmatpush2.bf16.msra.mxu0 0
      %705 = vmatprep.subr.bf16.mxu0 0
      %706 = vmatpush2.bf16.msra.mxu0 0
      %707 = vmatprep.subr.bf16.mxu0 0
      %708 = vmatpush2.bf16.msra.mxu0 0
      %709 = vmatprep.subr.bf16.mxu0 0
      %710 = vmatpush2.bf16.msra.mxu0 0
      %711 = vmatprep.subr.bf16.mxu0 0
      %712 = vmatpush2.bf16.msra.mxu0 0
      %713 = vmatprep.subr.bf16.mxu0 0
      %714 = vmatpush2.bf16.msra.mxu0 0
      %715 = vmatprep.mubr.bf16.mxu0 0
      %716 = vmatmul.mubr.bf16.gmra.mxu0 %v681
      %v717 = vpop.f32.mrf.mxu0
      %v718 = vadd.f32 0.0, %v717
      %v719 = vpop.f32.mrf.mxu0
      %v720 = vadd.f32 0.0, %v719
      %v721 = vpop.f32.mrf.mxu0
      %v722 = vadd.f32 0.0, %v721
      %v723 = vpop.f32.mrf.mxu0
      %v724 = vadd.f32 0.0, %v723
      %725 = vdwg.mxu0
      %726 = vmatprep.subr.bf16.mxu0 0
      %727 = vmatpush1.bf16.msra.mxu0 0
      %728 = vmatprep.subr.bf16.mxu0 0
      %729 = vmatpush1.bf16.msra.mxu0 0
      %730 = vmatprep.subr.bf16.mxu0 0
      %731 = vmatpush1.bf16.msra.mxu0 0
      %732 = vmatprep.subr.bf16.mxu0 0
      %733 = vmatpush1.bf16.msra.mxu0 0
      %734 = vmatprep.subr.bf16.mxu0 0
      %735 = vmatpush1.bf16.msra.mxu0 0
      %736 = vmatprep.subr.bf16.mxu0 0
      %737 = vmatpush1.bf16.msra.mxu0 0
      %738 = vmatprep.subr.bf16.mxu0 0
      %739 = vmatpush1.bf16.msra.mxu0 0
      %740 = vmatprep.subr.bf16.mxu0 0
      %741 = vmatpush1.bf16.msra.mxu0 %v673
      %742 = vmatprep.subr.bf16.mxu0 0
      %743 = vmatpush2.bf16.msra.mxu0 0
      %744 = vmatprep.subr.bf16.mxu0 0
      %745 = vmatpush2.bf16.msra.mxu0 0
      %746 = vmatprep.subr.bf16.mxu0 0
      %747 = vmatpush2.bf16.msra.mxu0 0
      %748 = vmatprep.subr.bf16.mxu0 0
      %749 = vmatpush2.bf16.msra.mxu0 0
      %750 = vmatprep.subr.bf16.mxu0 0
      %751 = vmatpush2.bf16.msra.mxu0 0
      %752 = vmatprep.subr.bf16.mxu0 0
      %753 = vmatpush2.bf16.msra.mxu0 0
      %754 = vmatprep.subr.bf16.mxu0 0
      %755 = vmatpush2.bf16.msra.mxu0 0
      %756 = vmatprep.subr.bf16.mxu0 0
      %757 = vmatpush2.bf16.msra.mxu0 0
      %758 = vmatprep.mubr.bf16.mxu0 0
      %759 = vmatmul.mubr.bf16.gmra.mxu0 %v681
      %v760 = vpop.f32.mrf.mxu0
      %v761 = vadd.f32 0.0, %v760
      %v762 = vpop.f32.mrf.mxu0
      %v763 = vpop.f32.mrf.mxu0
      %v764 = vadd.f32 0.0, %v763
      %v765 = vpop.f32.mrf.mxu0
      %766 = vdwg.mxu0
      %v767 = vadd.f32 %v654, %v718
      %v768 = vadd.f32 %v655, %v720
      %v769 = vadd.f32 %v656, %v761
      %v770 = vadd.f32 %v657, %v722
      %v771 = vadd.f32 %v658, %v724
      %v772 = vadd.f32 %v659, %v764
      %s773 = scalar_lea.vmem %s1, 40
      %v774 = vld [vmem:[%s773] sm:$0xf]
      %v775 = vld [vmem:[%s773 + $0x4] sm:$0xf]
      %v778 = vunpack.c.l.b16 %v774
      %v779 = vunpack.c.l.b16 %v775
      %v780 = vpack.c.b16 %v779, %v778
      %781 = vrot.lane.b32.xlu0 %v236, 108
      %v782 = vpop.permute.xlu0 %781
      %783 = vrot.lane.b32.xlu0 %v237, 108
      %v784 = vpop.permute.xlu0 %783
      %785 = vrot.lane.b32.xlu0 %v238, 108
      %v786 = vpop.permute.xlu0 %785
      %vm787 = vcmask 883712
      %v788 = vsel %vm787, %v782, %v784
      %v789 = vsel %vm787, %v784, %v786
      %v794 = vsel %vm251, %v780, 0
      %796 = vmatprep.subr.bf16.mxu0 0
      %797 = vmatpush1.bf16.msra.mxu0 0
      %798 = vmatprep.subr.bf16.mxu0 0
      %799 = vmatpush1.bf16.msra.mxu0 0
      %800 = vmatprep.subr.bf16.mxu0 0
      %801 = vmatpush1.bf16.msra.mxu0 0
      %802 = vmatprep.subr.bf16.mxu0 0
      %803 = vmatpush1.bf16.msra.mxu0 0
      %804 = vmatprep.subr.bf16.mxu0 0
      %805 = vmatpush1.bf16.msra.mxu0 0
      %806 = vmatprep.subr.bf16.mxu0 0
      %807 = vmatpush1.bf16.msra.mxu0 0
      %808 = vmatprep.subr.bf16.mxu0 0
      %809 = vmatpush1.bf16.msra.mxu0 0
      %810 = vmatprep.subr.bf16.mxu0 %v789
      %811 = vmatpush1.bf16.msra.mxu0 %v788
      %812 = vmatprep.subr.bf16.mxu0 0
      %813 = vmatpush2.bf16.msra.mxu0 0
      %814 = vmatprep.subr.bf16.mxu0 0
      %815 = vmatpush2.bf16.msra.mxu0 0
      %816 = vmatprep.subr.bf16.mxu0 0
      %817 = vmatpush2.bf16.msra.mxu0 0
      %818 = vmatprep.subr.bf16.mxu0 0
      %819 = vmatpush2.bf16.msra.mxu0 0
      %820 = vmatprep.subr.bf16.mxu0 0
      %821 = vmatpush2.bf16.msra.mxu0 0
      %822 = vmatprep.subr.bf16.mxu0 0
      %823 = vmatpush2.bf16.msra.mxu0 0
      %824 = vmatprep.subr.bf16.mxu0 0
      %825 = vmatpush2.bf16.msra.mxu0 0
      %826 = vmatprep.subr.bf16.mxu0 0
      %827 = vmatpush2.bf16.msra.mxu0 0
      %828 = vmatprep.mubr.bf16.mxu0 0
      %829 = vmatmul.mubr.bf16.gmra.mxu0 %v794
      %v830 = vpop.f32.mrf.mxu0
      %v831 = vadd.f32 0.0, %v830
      %v832 = vpop.f32.mrf.mxu0
      %v833 = vadd.f32 0.0, %v832
      %v834 = vpop.f32.mrf.mxu0
      %v835 = vadd.f32 0.0, %v834
      %v836 = vpop.f32.mrf.mxu0
      %v837 = vadd.f32 0.0, %v836
      %838 = vdwg.mxu0
      %839 = vmatprep.subr.bf16.mxu0 0
      %840 = vmatpush1.bf16.msra.mxu0 0
      %841 = vmatprep.subr.bf16.mxu0 0
      %842 = vmatpush1.bf16.msra.mxu0 0
      %843 = vmatprep.subr.bf16.mxu0 0
      %844 = vmatpush1.bf16.msra.mxu0 0
      %845 = vmatprep.subr.bf16.mxu0 0
      %846 = vmatpush1.bf16.msra.mxu0 0
      %847 = vmatprep.subr.bf16.mxu0 0
      %848 = vmatpush1.bf16.msra.mxu0 0
      %849 = vmatprep.subr.bf16.mxu0 0
      %850 = vmatpush1.bf16.msra.mxu0 0
      %851 = vmatprep.subr.bf16.mxu0 0
      %852 = vmatpush1.bf16.msra.mxu0 0
      %853 = vmatprep.subr.bf16.mxu0 0
      %854 = vmatpush1.bf16.msra.mxu0 %v786
      %855 = vmatprep.subr.bf16.mxu0 0
      %856 = vmatpush2.bf16.msra.mxu0 0
      %857 = vmatprep.subr.bf16.mxu0 0
      %858 = vmatpush2.bf16.msra.mxu0 0
      %859 = vmatprep.subr.bf16.mxu0 0
      %860 = vmatpush2.bf16.msra.mxu0 0
      %861 = vmatprep.subr.bf16.mxu0 0
      %862 = vmatpush2.bf16.msra.mxu0 0
      %863 = vmatprep.subr.bf16.mxu0 0
      %864 = vmatpush2.bf16.msra.mxu0 0
      %865 = vmatprep.subr.bf16.mxu0 0
      %866 = vmatpush2.bf16.msra.mxu0 0
      %867 = vmatprep.subr.bf16.mxu0 0
      %868 = vmatpush2.bf16.msra.mxu0 0
      %869 = vmatprep.subr.bf16.mxu0 0
      %870 = vmatpush2.bf16.msra.mxu0 0
      %871 = vmatprep.mubr.bf16.mxu0 0
      %872 = vmatmul.mubr.bf16.gmra.mxu0 %v794
      %v873 = vpop.f32.mrf.mxu0
      %v874 = vadd.f32 0.0, %v873
      %v875 = vpop.f32.mrf.mxu0
      %v876 = vpop.f32.mrf.mxu0
      %v877 = vadd.f32 0.0, %v876
      %v878 = vpop.f32.mrf.mxu0
      %879 = vdwg.mxu0
      %v880 = vadd.f32 %v767, %v831
      %v881 = vadd.f32 %v768, %v833
      %v882 = vadd.f32 %v769, %v874
      %v883 = vadd.f32 %v770, %v835
      %v884 = vadd.f32 %v771, %v837
      %v885 = vadd.f32 %v772, %v877
      %s886 = scalar_lea.vmem %s1, 48
      %v887 = vld [vmem:[%s886] sm:$0xf]
      %v888 = vld [vmem:[%s886 + $0x4] sm:$0xf]
      %v891 = vunpack.c.l.b16 %v887
      %v892 = vunpack.c.l.b16 %v888
      %v893 = vpack.c.b16 %v892, %v891
      %894 = vrot.lane.b32.xlu0 %v236, 92
      %v895 = vpop.permute.xlu0 %894
      %896 = vrot.lane.b32.xlu0 %v237, 92
      %v897 = vpop.permute.xlu0 %896
      %898 = vrot.lane.b32.xlu0 %v238, 92
      %v899 = vpop.permute.xlu0 %898
      %vm900 = vcmask 752640
      %v901 = vsel %vm900, %v895, %v897
      %v902 = vsel %vm900, %v897, %v899
      %v907 = vsel %vm251, %v893, 0
      %909 = vmatprep.subr.bf16.mxu0 0
      %910 = vmatpush1.bf16.msra.mxu0 0
      %911 = vmatprep.subr.bf16.mxu0 0
      %912 = vmatpush1.bf16.msra.mxu0 0
      %913 = vmatprep.subr.bf16.mxu0 0
      %914 = vmatpush1.bf16.msra.mxu0 0
      %915 = vmatprep.subr.bf16.mxu0 0
      %916 = vmatpush1.bf16.msra.mxu0 0
      %917 = vmatprep.subr.bf16.mxu0 0
      %918 = vmatpush1.bf16.msra.mxu0 0
      %919 = vmatprep.subr.bf16.mxu0 0
      %920 = vmatpush1.bf16.msra.mxu0 0
      %921 = vmatprep.subr.bf16.mxu0 0
      %922 = vmatpush1.bf16.msra.mxu0 0
      %923 = vmatprep.subr.bf16.mxu0 %v902
      %924 = vmatpush1.bf16.msra.mxu0 %v901
      %925 = vmatprep.subr.bf16.mxu0 0
      %926 = vmatpush2.bf16.msra.mxu0 0
      %927 = vmatprep.subr.bf16.mxu0 0
      %928 = vmatpush2.bf16.msra.mxu0 0
      %929 = vmatprep.subr.bf16.mxu0 0
      %930 = vmatpush2.bf16.msra.mxu0 0
      %931 = vmatprep.subr.bf16.mxu0 0
      %932 = vmatpush2.bf16.msra.mxu0 0
      %933 = vmatprep.subr.bf16.mxu0 0
      %934 = vmatpush2.bf16.msra.mxu0 0
      %935 = vmatprep.subr.bf16.mxu0 0
      %936 = vmatpush2.bf16.msra.mxu0 0
      %937 = vmatprep.subr.bf16.mxu0 0
      %938 = vmatpush2.bf16.msra.mxu0 0
      %939 = vmatprep.subr.bf16.mxu0 0
      %940 = vmatpush2.bf16.msra.mxu0 0
      %941 = vmatprep.mubr.bf16.mxu0 0
      %942 = vmatmul.mubr.bf16.gmra.mxu0 %v907
      %v943 = vpop.f32.mrf.mxu0
      %v944 = vadd.f32 0.0, %v943
      %v945 = vpop.f32.mrf.mxu0
      %v946 = vadd.f32 0.0, %v945
      %v947 = vpop.f32.mrf.mxu0
      %v948 = vadd.f32 0.0, %v947
      %v949 = vpop.f32.mrf.mxu0
      %v950 = vadd.f32 0.0, %v949
      %951 = vdwg.mxu0
      %952 = vmatprep.subr.bf16.mxu0 0
      %953 = vmatpush1.bf16.msra.mxu0 0
      %954 = vmatprep.subr.bf16.mxu0 0
      %955 = vmatpush1.bf16.msra.mxu0 0
      %956 = vmatprep.subr.bf16.mxu0 0
      %957 = vmatpush1.bf16.msra.mxu0 0
      %958 = vmatprep.subr.bf16.mxu0 0
      %959 = vmatpush1.bf16.msra.mxu0 0
      %960 = vmatprep.subr.bf16.mxu0 0
      %961 = vmatpush1.bf16.msra.mxu0 0
      %962 = vmatprep.subr.bf16.mxu0 0
      %963 = vmatpush1.bf16.msra.mxu0 0
      %964 = vmatprep.subr.bf16.mxu0 0
      %965 = vmatpush1.bf16.msra.mxu0 0
      %966 = vmatprep.subr.bf16.mxu0 0
      %967 = vmatpush1.bf16.msra.mxu0 %v899
      %968 = vmatprep.subr.bf16.mxu0 0
      %969 = vmatpush2.bf16.msra.mxu0 0
      %970 = vmatprep.subr.bf16.mxu0 0
      %971 = vmatpush2.bf16.msra.mxu0 0
      %972 = vmatprep.subr.bf16.mxu0 0
      %973 = vmatpush2.bf16.msra.mxu0 0
      %974 = vmatprep.subr.bf16.mxu0 0
      %975 = vmatpush2.bf16.msra.mxu0 0
      %976 = vmatprep.subr.bf16.mxu0 0
      %977 = vmatpush2.bf16.msra.mxu0 0
      %978 = vmatprep.subr.bf16.mxu0 0
      %979 = vmatpush2.bf16.msra.mxu0 0
      %980 = vmatprep.subr.bf16.mxu0 0
      %981 = vmatpush2.bf16.msra.mxu0 0
      %982 = vmatprep.subr.bf16.mxu0 0
      %983 = vmatpush2.bf16.msra.mxu0 0
      %984 = vmatprep.mubr.bf16.mxu0 0
      %985 = vmatmul.mubr.bf16.gmra.mxu0 %v907
      %v986 = vpop.f32.mrf.mxu0
      %v987 = vadd.f32 0.0, %v986
      %v988 = vpop.f32.mrf.mxu0
      %v989 = vpop.f32.mrf.mxu0
      %v990 = vadd.f32 0.0, %v989
      %v991 = vpop.f32.mrf.mxu0
      %992 = vdwg.mxu0
      %v993 = vadd.f32 %v880, %v944
      %v994 = vadd.f32 %v881, %v946
      %v995 = vadd.f32 %v882, %v987
      %v996 = vadd.f32 %v883, %v948
      %v997 = vadd.f32 %v884, %v950
      %v998 = vadd.f32 %v885, %v990
      %s999 = scalar_lea.vmem %s1, 56
      %v1000 = vld [vmem:[%s999] sm:$0xf]
      %v1001 = vld [vmem:[%s999 + $0x4] sm:$0xf]
      %v1004 = vunpack.c.l.b16 %v1000
      %v1005 = vunpack.c.l.b16 %v1001
      %v1006 = vpack.c.b16 %v1005, %v1004
      %1007 = vrot.lane.b32.xlu0 %v236, 91
      %v1008 = vpop.permute.xlu0 %1007
      %1009 = vrot.lane.b32.xlu0 %v237, 91
      %v1010 = vpop.permute.xlu0 %1009
      %1011 = vrot.lane.b32.xlu0 %v238, 91
      %v1012 = vpop.permute.xlu0 %1011
      %vm1013 = vcmask 744448
      %v1014 = vsel %vm1013, %v1008, %v1010
      %v1015 = vsel %vm1013, %v1010, %v1012
      %v1020 = vsel %vm251, %v1006, 0
      %1022 = vmatprep.subr.bf16.mxu0 0
      %1023 = vmatpush1.bf16.msra.mxu0 0
      %1024 = vmatprep.subr.bf16.mxu0 0
      %1025 = vmatpush1.bf16.msra.mxu0 0
      %1026 = vmatprep.subr.bf16.mxu0 0
      %1027 = vmatpush1.bf16.msra.mxu0 0
      %1028 = vmatprep.subr.bf16.mxu0 0
      %1029 = vmatpush1.bf16.msra.mxu0 0
      %1030 = vmatprep.subr.bf16.mxu0 0
      %1031 = vmatpush1.bf16.msra.mxu0 0
      %1032 = vmatprep.subr.bf16.mxu0 0
      %1033 = vmatpush1.bf16.msra.mxu0 0
      %1034 = vmatprep.subr.bf16.mxu0 0
      %1035 = vmatpush1.bf16.msra.mxu0 0
      %1036 = vmatprep.subr.bf16.mxu0 %v1015
      %1037 = vmatpush1.bf16.msra.mxu0 %v1014
      %1038 = vmatprep.subr.bf16.mxu0 0
      %1039 = vmatpush2.bf16.msra.mxu0 0
      %1040 = vmatprep.subr.bf16.mxu0 0
      %1041 = vmatpush2.bf16.msra.mxu0 0
      %1042 = vmatprep.subr.bf16.mxu0 0
      %1043 = vmatpush2.bf16.msra.mxu0 0
      %1044 = vmatprep.subr.bf16.mxu0 0
      %1045 = vmatpush2.bf16.msra.mxu0 0
      %1046 = vmatprep.subr.bf16.mxu0 0
      %1047 = vmatpush2.bf16.msra.mxu0 0
      %1048 = vmatprep.subr.bf16.mxu0 0
      %1049 = vmatpush2.bf16.msra.mxu0 0
      %1050 = vmatprep.subr.bf16.mxu0 0
      %1051 = vmatpush2.bf16.msra.mxu0 0
      %1052 = vmatprep.subr.bf16.mxu0 0
      %1053 = vmatpush2.bf16.msra.mxu0 0
      %1054 = vmatprep.mubr.bf16.mxu0 0
      %1055 = vmatmul.mubr.bf16.gmra.mxu0 %v1020
      %v1056 = vpop.f32.mrf.mxu0
      %v1057 = vadd.f32 0.0, %v1056
      %v1058 = vpop.f32.mrf.mxu0
      %v1059 = vadd.f32 0.0, %v1058
      %v1060 = vpop.f32.mrf.mxu0
      %v1061 = vadd.f32 0.0, %v1060
      %v1062 = vpop.f32.mrf.mxu0
      %v1063 = vadd.f32 0.0, %v1062
      %1064 = vdwg.mxu0
      %1065 = vmatprep.subr.bf16.mxu0 0
      %1066 = vmatpush1.bf16.msra.mxu0 0
      %1067 = vmatprep.subr.bf16.mxu0 0
      %1068 = vmatpush1.bf16.msra.mxu0 0
      %1069 = vmatprep.subr.bf16.mxu0 0
      %1070 = vmatpush1.bf16.msra.mxu0 0
      %1071 = vmatprep.subr.bf16.mxu0 0
      %1072 = vmatpush1.bf16.msra.mxu0 0
      %1073 = vmatprep.subr.bf16.mxu0 0
      %1074 = vmatpush1.bf16.msra.mxu0 0
      %1075 = vmatprep.subr.bf16.mxu0 0
      %1076 = vmatpush1.bf16.msra.mxu0 0
      %1077 = vmatprep.subr.bf16.mxu0 0
      %1078 = vmatpush1.bf16.msra.mxu0 0
      %1079 = vmatprep.subr.bf16.mxu0 0
      %1080 = vmatpush1.bf16.msra.mxu0 %v1012
      %1081 = vmatprep.subr.bf16.mxu0 0
      %1082 = vmatpush2.bf16.msra.mxu0 0
      %1083 = vmatprep.subr.bf16.mxu0 0
      %1084 = vmatpush2.bf16.msra.mxu0 0
      %1085 = vmatprep.subr.bf16.mxu0 0
      %1086 = vmatpush2.bf16.msra.mxu0 0
      %1087 = vmatprep.subr.bf16.mxu0 0
      %1088 = vmatpush2.bf16.msra.mxu0 0
      %1089 = vmatprep.subr.bf16.mxu0 0
      %1090 = vmatpush2.bf16.msra.mxu0 0
      %1091 = vmatprep.subr.bf16.mxu0 0
      %1092 = vmatpush2.bf16.msra.mxu0 0
      %1093 = vmatprep.subr.bf16.mxu0 0
      %1094 = vmatpush2.bf16.msra.mxu0 0
      %1095 = vmatprep.subr.bf16.mxu0 0
      %1096 = vmatpush2.bf16.msra.mxu0 0
      %1097 = vmatprep.mubr.bf16.mxu0 0
      %1098 = vmatmul.mubr.bf16.gmra.mxu0 %v1020
      %v1099 = vpop.f32.mrf.mxu0
      %v1100 = vadd.f32 0.0, %v1099
      %v1101 = vpop.f32.mrf.mxu0
      %v1102 = vpop.f32.mrf.mxu0
      %v1103 = vadd.f32 0.0, %v1102
      %v1104 = vpop.f32.mrf.mxu0
      %1105 = vdwg.mxu0
      %v1106 = vadd.f32 %v993, %v1057
      %v1107 = vadd.f32 %v994, %v1059
      %v1108 = vadd.f32 %v995, %v1100
      %v1109 = vadd.f32 %v996, %v1061
      %v1110 = vadd.f32 %v997, %v1063
      %v1111 = vadd.f32 %v998, %v1103
      %s1112 = scalar_lea.vmem %s1, 64
      %v1113 = vld [vmem:[%s1112] sm:$0xf]
      %v1114 = vld [vmem:[%s1112 + $0x4] sm:$0xf]
      %v1117 = vunpack.c.l.b16 %v1113
      %v1118 = vunpack.c.l.b16 %v1114
      %v1119 = vpack.c.b16 %v1118, %v1117
      %1120 = vrot.lane.b32.xlu0 %v236, 90
      %v1121 = vpop.permute.xlu0 %1120
      %1122 = vrot.lane.b32.xlu0 %v237, 90
      %v1123 = vpop.permute.xlu0 %1122
      %1124 = vrot.lane.b32.xlu0 %v238, 90
      %v1125 = vpop.permute.xlu0 %1124
      %vm1126 = vcmask 736256
      %v1127 = vsel %vm1126, %v1121, %v1123
      %v1128 = vsel %vm1126, %v1123, %v1125
      %v1133 = vsel %vm251, %v1119, 0
      %1135 = vmatprep.subr.bf16.mxu0 0
      %1136 = vmatpush1.bf16.msra.mxu0 0
      %1137 = vmatprep.subr.bf16.mxu0 0
      %1138 = vmatpush1.bf16.msra.mxu0 0
      %1139 = vmatprep.subr.bf16.mxu0 0
      %1140 = vmatpush1.bf16.msra.mxu0 0
      %1141 = vmatprep.subr.bf16.mxu0 0
      %1142 = vmatpush1.bf16.msra.mxu0 0
      %1143 = vmatprep.subr.bf16.mxu0 0
      %1144 = vmatpush1.bf16.msra.mxu0 0
      %1145 = vmatprep.subr.bf16.mxu0 0
      %1146 = vmatpush1.bf16.msra.mxu0 0
      %1147 = vmatprep.subr.bf16.mxu0 0
      %1148 = vmatpush1.bf16.msra.mxu0 0
      %1149 = vmatprep.subr.bf16.mxu0 %v1128
      %1150 = vmatpush1.bf16.msra.mxu0 %v1127
      %1151 = vmatprep.subr.bf16.mxu0 0
      %1152 = vmatpush2.bf16.msra.mxu0 0
      %1153 = vmatprep.subr.bf16.mxu0 0
      %1154 = vmatpush2.bf16.msra.mxu0 0
      %1155 = vmatprep.subr.bf16.mxu0 0
      %1156 = vmatpush2.bf16.msra.mxu0 0
      %1157 = vmatprep.subr.bf16.mxu0 0
      %1158 = vmatpush2.bf16.msra.mxu0 0
      %1159 = vmatprep.subr.bf16.mxu0 0
      %1160 = vmatpush2.bf16.msra.mxu0 0
      %1161 = vmatprep.subr.bf16.mxu0 0
      %1162 = vmatpush2.bf16.msra.mxu0 0
      %1163 = vmatprep.subr.bf16.mxu0 0
      %1164 = vmatpush2.bf16.msra.mxu0 0
      %1165 = vmatprep.subr.bf16.mxu0 0
      %1166 = vmatpush2.bf16.msra.mxu0 0
      %1167 = vmatprep.mubr.bf16.mxu0 0
      %1168 = vmatmul.mubr.bf16.gmra.mxu0 %v1133
      %v1169 = vpop.f32.mrf.mxu0
      %v1170 = vadd.f32 0.0, %v1169
      %v1171 = vpop.f32.mrf.mxu0
      %v1172 = vadd.f32 0.0, %v1171
      %v1173 = vpop.f32.mrf.mxu0
      %v1174 = vadd.f32 0.0, %v1173
      %v1175 = vpop.f32.mrf.mxu0
      %v1176 = vadd.f32 0.0, %v1175
      %1177 = vdwg.mxu0
      %1178 = vmatprep.subr.bf16.mxu0 0
      %1179 = vmatpush1.bf16.msra.mxu0 0
      %1180 = vmatprep.subr.bf16.mxu0 0
      %1181 = vmatpush1.bf16.msra.mxu0 0
      %1182 = vmatprep.subr.bf16.mxu0 0
      %1183 = vmatpush1.bf16.msra.mxu0 0
      %1184 = vmatprep.subr.bf16.mxu0 0
      %1185 = vmatpush1.bf16.msra.mxu0 0
      %1186 = vmatprep.subr.bf16.mxu0 0
      %1187 = vmatpush1.bf16.msra.mxu0 0
      %1188 = vmatprep.subr.bf16.mxu0 0
      %1189 = vmatpush1.bf16.msra.mxu0 0
      %1190 = vmatprep.subr.bf16.mxu0 0
      %1191 = vmatpush1.bf16.msra.mxu0 0
      %1192 = vmatprep.subr.bf16.mxu0 0
      %1193 = vmatpush1.bf16.msra.mxu0 %v1125
      %1194 = vmatprep.subr.bf16.mxu0 0
      %1195 = vmatpush2.bf16.msra.mxu0 0
      %1196 = vmatprep.subr.bf16.mxu0 0
      %1197 = vmatpush2.bf16.msra.mxu0 0
      %1198 = vmatprep.subr.bf16.mxu0 0
      %1199 = vmatpush2.bf16.msra.mxu0 0
      %1200 = vmatprep.subr.bf16.mxu0 0
      %1201 = vmatpush2.bf16.msra.mxu0 0
      %1202 = vmatprep.subr.bf16.mxu0 0
      %1203 = vmatpush2.bf16.msra.mxu0 0
      %1204 = vmatprep.subr.bf16.mxu0 0
      %1205 = vmatpush2.bf16.msra.mxu0 0
      %1206 = vmatprep.subr.bf16.mxu0 0
      %1207 = vmatpush2.bf16.msra.mxu0 0
      %1208 = vmatprep.subr.bf16.mxu0 0
      %1209 = vmatpush2.bf16.msra.mxu0 0
      %1210 = vmatprep.mubr.bf16.mxu0 0
      %1211 = vmatmul.mubr.bf16.gmra.mxu0 %v1133
      %v1212 = vpop.f32.mrf.mxu0
      %v1213 = vadd.f32 0.0, %v1212
      %v1214 = vpop.f32.mrf.mxu0
      %v1215 = vpop.f32.mrf.mxu0
      %v1216 = vadd.f32 0.0, %v1215
      %v1217 = vpop.f32.mrf.mxu0
      %1218 = vdwg.mxu0
      %v1219 = vadd.f32 %v1106, %v1170
      %v1220 = vadd.f32 %v1107, %v1172
      %v1221 = vadd.f32 %v1108, %v1213
      %v1222 = vadd.f32 %v1109, %v1174
      %v1223 = vadd.f32 %v1110, %v1176
      %v1224 = vadd.f32 %v1111, %v1216
      %v1225 = vld [vmem:[%s2] sm:$0x7]
      %v1227 = vlaneseq
      %v1228 = vshrl.u32 %v1227, 7
      %v1229 = vsub.s32 0, %v1228
      %v1230 = vrot.slane %v1225, %v1229
      %v1231 = vlaneseq
      %v1232 = vshrl.u32 %v1231, 7
      %v1233 = vsub.s32 1, %v1232
      %v1234 = vrot.slane %v1225, %v1233
      %v1235 = vlaneseq
      %v1236 = vshrl.u32 %v1235, 7
      %v1237 = vsub.s32 2, %v1236
      %v1238 = vrot.slane %v1225, %v1237
      %1239 = vrot.lane.b32.xlu0 %v1230, 109
      %v1240 = vpop.permute.xlu0 %1239
      %1241 = vrot.lane.b32.xlu0 %v1234, 109
      %v1242 = vpop.permute.xlu0 %1241
      %1243 = vrot.lane.b32.xlu0 %v1238, 109
      %v1244 = vpop.permute.xlu0 %1243
      %vm1245 = vcmask 891904
      %v1246 = vsel %vm1245, %v1240, %v1242
      %v1247 = vsel %vm1245, %v1242, %v1244
      %v1251 = vmul.f32 %v1219, %v1246
      %v1252 = vmul.f32 %v1220, %v1247
      %v1253 = vmul.f32 %v1221, %v1244
      %v1254 = vmul.f32 %v1222, %v1246
      %v1255 = vmul.f32 %v1223, %v1247
      %v1256 = vmul.f32 %v1224, %v1244
      %v1257 = vadd.f32 %v1251, %v1252
      %vm1258 = vcmask 556032
      %v1259 = vsel %vm1258, %v1253, 0.0
      %v1260 = vadd.f32 %v1257, %v1259
      %1261 = vadd.xlane.f32.xlu0 %v1260
      %v1262 = vpop.xlane.xlu0 %1261
      %v1263 = vadd.f32 %v1254, %v1255
      %v1264 = vsel %vm1258, %v1256, 0.0
      %v1265 = vadd.f32 %v1263, %v1264
      %1266 = vadd.xlane.f32.xlu0 %v1265
      %v1267 = vpop.xlane.xlu0 %1266
      %v1268 = vmul.f32 %v1262, 0.00390625
      %v1269 = vmul.f32 %v1267, 0.00390625
      %v1270 = vsub.f32 %v1219, %v1268
      %v1271 = vsub.f32 %v1220, %v1268
      %v1272 = vsub.f32 %v1221, %v1268
      %v1273 = vsub.f32 %v1222, %v1269
      %v1274 = vsub.f32 %v1223, %v1269
      %v1275 = vsub.f32 %v1224, %v1269
      %v1276 = vmul.f32 %v1270, %v1246
      %v1277 = vmul.f32 %v1271, %v1247
      %v1278 = vmul.f32 %v1272, %v1244
      %v1279 = vmul.f32 %v1273, %v1246
      %v1280 = vmul.f32 %v1274, %v1247
      %v1281 = vmul.f32 %v1275, %v1244
      %v1282 = vmul.f32 %v1276, %v1276
      %v1283 = vmul.f32 %v1277, %v1277
      %v1284 = vmul.f32 %v1278, %v1278
      %v1285 = vmul.f32 %v1279, %v1279
      %v1286 = vmul.f32 %v1280, %v1280
      %v1287 = vmul.f32 %v1281, %v1281
      %v1288 = vadd.f32 %v1282, %v1283
      %v1289 = vsel %vm1258, %v1284, 0.0
      %v1290 = vadd.f32 %v1288, %v1289
      %1291 = vadd.xlane.f32.xlu0 %v1290
      %v1292 = vpop.xlane.xlu0 %1291
      %v1293 = vadd.f32 %v1285, %v1286
      %v1294 = vsel %vm1258, %v1287, 0.0
      %v1295 = vadd.f32 %v1293, %v1294
      %1296 = vadd.xlane.f32.xlu0 %v1295
      %v1297 = vpop.xlane.xlu0 %1296
      %vm1298 = vcmask 7168
      %1299 = vst.msk [vmem:[%s210] sm:$0xff] %vm1298, %v1262
      %1300 = vst.msk [vmem:[%s210 + $0x8] sm:$0xff] %vm1298, %v1267
      %vm1301 = vcmask 15368
      %1302 = vst.msk [vmem:[%s210] sm:$0xff] %vm1301, %v1292
      %1303 = vst.msk [vmem:[%s210 + $0x8] sm:$0xff] %vm1301, %v1297
      %vm1304 = vcmask 150528
      %1305 = vst.msk [vmem:[%s205] sm:$0xf] %vm1304, 0
      %1306 = vst.msk [vmem:[%s205 + $0xc] sm:$0xf] %vm1304, 0
      %vm1307 = vcmask 1044152
      %1308 = vst.msk [vmem:[%s205 + $0x8] sm:$0xf] %vm1307, 0
      %1309 = vst.msk [vmem:[%s205 + $0x14] sm:$0xf] %vm1307, 0
      %v1310 = vpack.c.bf16 %v1222, %v1219
      %v1311 = vpack.c.bf16 %v1223, %v1220
      %v1312 = vpack.c.bf16 %v1224, %v1221
      %v1316 = vunpack.c.l.b16 %v1310
      %v1317 = vunpack.c.l.b16 %v1311
      %v1318 = vunpack.c.l.b16 %v1312
      %v1319 = vunpack.c.h.b16 %v1310
      %v1320 = vunpack.c.h.b16 %v1311
      %v1321 = vunpack.c.h.b16 %v1312
      %v1322 = vpack.c.b16 %v1317, %v1316
      %v1323 = vpack.c.b16 %v1318, %v1318
      %v1324 = vpack.c.b16 %v1320, %v1319
      %v1325 = vpack.c.b16 %v1321, %v1321
      %1326 = vrot.lane.b32.xlu0 %v1322, 19
      %v1327 = vpop.permute.xlu0 %1326
      %1328 = vrot.lane.b32.xlu0 %v1323, 19
      %v1329 = vpop.permute.xlu0 %1328
      %1330 = vrot.lane.b32.xlu0 %v1324, 19
      %v1331 = vpop.permute.xlu0 %1330
      %1332 = vrot.lane.b32.xlu0 %v1325, 19
      %v1333 = vpop.permute.xlu0 %1332
      %v1334 = vrot.slane %v1327, 4
      %v1335 = vrot.slane %v1331, 4
      %vm1336 = vcmask 154624
      %v1337 = vsel %vm1336, %v1334, %v1327
      %v1338 = vsel %vm1336, %v1334, %v1329
      %v1339 = vsel %vm1336, %v1335, %v1331
      %v1340 = vsel %vm1336, %v1335, %v1333
      %vm1345 = vcmask 1043608
      %vm1346 = vcmask 1047556
      %vm1347 = vmor %vm1346, %vm1345
      %1348 = vst.msk [vmem:[%s205] sm:$0xff] %vm1347, %v1337
      %vm1349 = vcmask 707584
      %1350 = vst.msk [vmem:[%s205 + $0x8] sm:$0xf] %vm1349, %v1338
      %1351 = vst.msk [vmem:[%s205 + $0xc] sm:$0xff] %vm1347, %v1339
      %1352 = vst.msk [vmem:[%s205 + $0x14] sm:$0xf] %vm1349, %v1340
      %p1353 = scmp.lt.s32.totalorder %s16, 1
      %s1354 = scalar_select %p1353, %s16, 1
      %s1355 = smul.addr %s1354, 6
      %s1356 = smul.addr %s1355, 4
      %s1357 = scalar_lea.vmem %s3, %s1356
      %p1358 = scmp.lt.s32.totalorder %s16, 1
      %s1359 = scalar_select %p1358, %s16, 1
      %s1360 = smul.addr %s1359, 2
      %s1361 = smul.addr %s1360, 8
      %s1362 = scalar_lea.vmem %s4, %s1361
      // Predicated region
      $region33: #{basic_block_pallas.3} parent=31 // pred_check
        %p1363 = pneg %p102
      $region34: #{basic_block_pallas.3} parent=31 // pred_check_branch
        %1365 = sbr.rel (%p1363) target = $region36
      $region35: #{basic_block_pallas.3} parent=31 // pred_region
        _
      $region36: #{basic_block_pallas.3} parent=31 // pred_fallthru
        _
      // Predicated region
      $region37: #{basic_block_pallas.3} parent=31 // pred_check
        %p1366 = pneg %p128
      $region38: #{basic_block_pallas.3} parent=31 // pred_check_branch
        %1368 = sbr.rel (%p1366) target = $region40
      $region39: #{basic_block_pallas.3} parent=31 // pred_region
        _
      $region40: #{basic_block_pallas.3} parent=31 // pred_fallthru
        _
    $region32: #{basic_block_pallas.3} parent=5 // pred_fallthru
      _
    %p1369 = scmp.le.s32.totalorder 2, %s11
    // Predicated region
    $region41: #{basic_block_pallas.3} parent=5 // pred_check
      %p1370 = pneg %p1369
    $region42: #{basic_block_pallas.3} parent=5 // pred_check_branch
      %1372 = sbr.rel (%p1370) target = $region44
    $region43: #{basic_block_pallas.3} parent=5 // pred_region
      %s1373 = ssub.s32 %s11, 2
      // Predicated region
      $region45: #{basic_block_pallas.3} parent=43 // pred_check
        %p1374 = pneg %p108
      $region46: #{basic_block_pallas.3} parent=43 // pred_check_branch
        %1376 = sbr.rel (%p1374) target = $region48
      $region47: #{basic_block_pallas.3} parent=43 // pred_region
        %p1377 = scmp.lt.s32.totalorder %s17, 1
        %s1378 = scalar_select %p1377, %s17, 1
        %s1379 = smul.addr %s1378, 6
        %s1380 = smul.addr %s1379, 4
        %s1381 = scalar_lea.vmem %s3, %s1380
      $region48: #{basic_block_pallas.3} parent=43 // pred_fallthru
        _
      // Predicated region
      $region49: #{basic_block_pallas.3} parent=43 // pred_check
        %p1382 = pneg %p134
      $region50: #{basic_block_pallas.3} parent=43 // pred_check_branch
        %1384 = sbr.rel (%p1382) target = $region52
      $region51: #{basic_block_pallas.3} parent=43 // pred_region
        %p1385 = scmp.lt.s32.totalorder %s17, 1
        %s1386 = scalar_select %p1385, %s17, 1
        %s1387 = smul.addr %s1386, 2
        %s1388 = smul.addr %s1387, 8
        %s1389 = scalar_lea.vmem %s4, %s1388
      $region52: #{basic_block_pallas.3} parent=43 // pred_fallthru
        _
    $region44: #{basic_block_pallas.3} parent=5 // pred_fallthru
      _
  $region6: #{basic_block_pallas.3} parent=0 // loop_footer
    %s15 = sadd.s32 1, %s11
  $region7: #{basic_block_pallas.3} parent=0 // loop_footer_branch
    %10 = sbr.rel target = $region3
  $region8: #{basic_block_pallas.3} parent=0 // loop_exit
    _

// kernel: basic_block_pallas.4
$region0: #{basic_block_pallas.4}
  #allocation0 [shape = 'u32[]', space=smem, size = 0x4, offset = 0x4, fixed_abs, tag = 'smem constant byte address 0x4 - core index']
  #allocation1 [shape = 'u32[144,128]{1,0:T(1,128)}', space=vmem, size = 0x12000, scoped, tag = 'internal scratch']
  %s0 = inlined_call_operand.vmem [shape: bf16[2,16,384], index: 0, kind: input, shape index: {}]
  %s1 = inlined_call_operand.vmem [shape: bf16[9,16,16], index: 1, kind: input, shape index: {}]
  %s2 = inlined_call_operand.vmem [shape: f32[1,384], index: 2, kind: input, shape index: {}]
  %s3 = inlined_call_operand.vmem [shape: f32[16,1], index: 3, kind: input, shape index: {}]
  %s4 = inlined_call_operand.vmem [shape: f32[16,1], index: 4, kind: input, shape index: {}]
  %s5 = inlined_call_operand.vmem [shape: bf16[2,16,384], index: 5, kind: output, shape index: {0}]
  %s6 = inlined_call_operand.vmem [shape: f32[2,16,2], index: 6, kind: output, shape index: {1}]
  %7 = xla_tuple %s5, %s6
  %s8 = sld [smem:[#allocation0]]
  $region61: #{basic_block_pallas.4} parent=0
    _
  %s10 = ssub.s32 1, %s8
  %s11 = scalar_select 0, %s10, %s8
  loop: start=0, step=1, limit=4
  $region2: #{basic_block_pallas.4} parent=0 // loop_pre_header
    _
  $region3: #{basic_block_pallas.4} parent=0 // loop_header
    %s13 = sphi 0, %s17
    %p14 = scmp.ge.s32.totalorder %s13, 4
    %s23 = sphi 0, %s25
    %s26 = sphi 0, %s23
    %s27 = sphi 0, %s26
    %s43 = sphi 0, %s27
    %s47 = sphi 0, %s47
    %s49 = sphi 0, %s47
    %s50 = sphi 0, %s49
    %s64 = sphi 0, %s50
    %s68 = sphi 0, %s68
    %s70 = sphi 0, %s68
    %s71 = sphi 0, %s70
    %s85 = sphi 0, %s71
    %s89 = sphi 0, %s89
    %s91 = sphi 0, %s89
    %s92 = sphi 0, %s91
    %s106 = sphi 0, %s92
    %s110 = sphi 0, %s110
    %s112 = sphi 0, %s110
    %s113 = sphi 0, %s112
    %s127 = sphi 0, %s113
    %s133 = sphi 0, %s135
    %s136 = sphi 0, %s133
    %s137 = sphi 0, %s136
    %s153 = sphi 0, %s137
    %s159 = sphi 0, %s161
    %s162 = sphi 0, %s159
    %s163 = sphi 0, %s162
    %s179 = sphi 0, %s163
  $region4: #{basic_block_pallas.4} parent=0 // loop_header_branch
    %16 = sbr.rel (%p14) target = $region8
  $region5: #{basic_block_pallas.4} parent=0 // loop_body
    %s18 = ssub.s32 %s13, 1
    %s19 = ssub.s32 %s13, 2
    %s20 = sadd.s32 %s13, 1
    %s21 = ssub.s32 %s13, %s20
    %p22 = scmp.eq.s32.totalorder %s21, 0
    %s24 = sadd.s32 %s23, 1
    %s25 = scalar_select %p22, %s23, %s24
    %p28 = pneg %p22
    %p29 = scmp.eq.s32.totalorder %s13, 1
    %p30 = por %p28, %p29
    %p31 = scmp.ne.s32.totalorder %s23, %s26
    %p32 = scmp.eq.s32.totalorder %s13, 0
    %p33 = por %p31, %p32
    %p34 = scmp.ne.s32.totalorder %s23, %s26
    %p35 = scmp.eq.s32.totalorder %s18, 1
    %p36 = por %p34, %p35
    %p37 = scmp.ne.s32.totalorder %s26, %s27
    %p38 = scmp.eq.s32.totalorder %s18, 0
    %p39 = por %p37, %p38
    %p40 = scmp.ne.s32.totalorder %s26, %s27
    %p41 = scmp.eq.s32.totalorder %s19, 1
    %p42 = por %p40, %p41
    %p44 = scmp.ne.s32.totalorder %s27, %s43
    %p45 = scmp.eq.s32.totalorder %s19, 0
    %p46 = por %p44, %p45
    %s48 = sadd.s32 %s47, 1
    %p51 = scmp.eq.s32.totalorder %s13, 1
    %p52 = scmp.ne.s32.totalorder %s47, %s49
    %p53 = scmp.eq.s32.totalorder %s13, 0
    %p54 = por %p52, %p53
    %p55 = scmp.ne.s32.totalorder %s47, %s49
    %p56 = scmp.eq.s32.totalorder %s18, 1
    %p57 = por %p55, %p56
    %p58 = scmp.ne.s32.totalorder %s49, %s50
    %p59 = scmp.eq.s32.totalorder %s18, 0
    %p60 = por %p58, %p59
    %p61 = scmp.ne.s32.totalorder %s49, %s50
    %p62 = scmp.eq.s32.totalorder %s19, 1
    %p63 = por %p61, %p62
    %p65 = scmp.ne.s32.totalorder %s50, %s64
    %p66 = scmp.eq.s32.totalorder %s19, 0
    %p67 = por %p65, %p66
    %s69 = sadd.s32 %s68, 1
    %p72 = scmp.eq.s32.totalorder %s13, 1
    %p73 = scmp.ne.s32.totalorder %s68, %s70
    %p74 = scmp.eq.s32.totalorder %s13, 0
    %p75 = por %p73, %p74
    %p76 = scmp.ne.s32.totalorder %s68, %s70
    %p77 = scmp.eq.s32.totalorder %s18, 1
    %p78 = por %p76, %p77
    %p79 = scmp.ne.s32.totalorder %s70, %s71
    %p80 = scmp.eq.s32.totalorder %s18, 0
    %p81 = por %p79, %p80
    %p82 = scmp.ne.s32.totalorder %s70, %s71
    %p83 = scmp.eq.s32.totalorder %s19, 1
    %p84 = por %p82, %p83
    %p86 = scmp.ne.s32.totalorder %s71, %s85
    %p87 = scmp.eq.s32.totalorder %s19, 0
    %p88 = por %p86, %p87
    %s90 = sadd.s32 %s89, 1
    %p93 = scmp.eq.s32.totalorder %s13, 1
    %p94 = scmp.ne.s32.totalorder %s89, %s91
    %p95 = scmp.eq.s32.totalorder %s13, 0
    %p96 = por %p94, %p95
    %p97 = scmp.ne.s32.totalorder %s89, %s91
    %p98 = scmp.eq.s32.totalorder %s18, 1
    %p99 = por %p97, %p98
    %p100 = scmp.ne.s32.totalorder %s91, %s92
    %p101 = scmp.eq.s32.totalorder %s18, 0
    %p102 = por %p100, %p101
    %p103 = scmp.ne.s32.totalorder %s91, %s92
    %p104 = scmp.eq.s32.totalorder %s19, 1
    %p105 = por %p103, %p104
    %p107 = scmp.ne.s32.totalorder %s92, %s106
    %p108 = scmp.eq.s32.totalorder %s19, 0
    %p109 = por %p107, %p108
    %s111 = sadd.s32 %s110, 1
    %p114 = scmp.eq.s32.totalorder %s13, 1
    %p115 = scmp.ne.s32.totalorder %s110, %s112
    %p116 = scmp.eq.s32.totalorder %s13, 0
    %p117 = por %p115, %p116
    %p118 = scmp.ne.s32.totalorder %s110, %s112
    %p119 = scmp.eq.s32.totalorder %s18, 1
    %p120 = por %p118, %p119
    %p121 = scmp.ne.s32.totalorder %s112, %s113
    %p122 = scmp.eq.s32.totalorder %s18, 0
    %p123 = por %p121, %p122
    %p124 = scmp.ne.s32.totalorder %s112, %s113
    %p125 = scmp.eq.s32.totalorder %s19, 1
    %p126 = por %p124, %p125
    %p128 = scmp.ne.s32.totalorder %s113, %s127
    %p129 = scmp.eq.s32.totalorder %s19, 0
    %p130 = por %p128, %p129
    %s131 = ssub.s32 %s13, %s20
    %p132 = scmp.eq.s32.totalorder %s131, 0
    %s134 = sadd.s32 %s133, 1
    %s135 = scalar_select %p132, %s133, %s134
    %p138 = pneg %p132
    %p139 = scmp.eq.s32.totalorder %s13, 1
    %p140 = por %p138, %p139
    %p141 = scmp.ne.s32.totalorder %s133, %s136
    %p142 = scmp.eq.s32.totalorder %s13, 0
    %p143 = por %p141, %p142
    %p144 = scmp.ne.s32.totalorder %s133, %s136
    %p145 = scmp.eq.s32.totalorder %s18, 1
    %p146 = por %p144, %p145
    %p147 = scmp.ne.s32.totalorder %s136, %s137
    %p148 = scmp.eq.s32.totalorder %s18, 0
    %p149 = por %p147, %p148
    %p150 = scmp.ne.s32.totalorder %s136, %s137
    %p151 = scmp.eq.s32.totalorder %s19, 1
    %p152 = por %p150, %p151
    %p154 = scmp.ne.s32.totalorder %s137, %s153
    %p155 = scmp.eq.s32.totalorder %s19, 0
    %p156 = por %p154, %p155
    %s157 = ssub.s32 %s13, %s20
    %p158 = scmp.eq.s32.totalorder %s157, 0
    %s160 = sadd.s32 %s159, 1
    %s161 = scalar_select %p158, %s159, %s160
    %p164 = pneg %p158
    %p165 = scmp.eq.s32.totalorder %s13, 1
    %p166 = por %p164, %p165
    %p167 = scmp.ne.s32.totalorder %s159, %s162
    %p168 = scmp.eq.s32.totalorder %s13, 0
    %p169 = por %p167, %p168
    %p170 = scmp.ne.s32.totalorder %s159, %s162
    %p171 = scmp.eq.s32.totalorder %s18, 1
    %p172 = por %p170, %p171
    %p173 = scmp.ne.s32.totalorder %s162, %s163
    %p174 = scmp.eq.s32.totalorder %s18, 0
    %p175 = por %p173, %p174
    %p176 = scmp.ne.s32.totalorder %s162, %s163
    %p177 = scmp.eq.s32.totalorder %s19, 1
    %p178 = por %p176, %p177
    %p180 = scmp.ne.s32.totalorder %s163, %s179
    %p181 = scmp.eq.s32.totalorder %s19, 0
    %p182 = por %p180, %p181
    %p183 = scmp.le.s32.totalorder 1, %s13
    %p184 = scmp.lt.s32.totalorder %s13, 3
    %p185 = pnand %p183, %p184
    %p186 = pneg %p185
    // Predicated region
    $region9: #{basic_block_pallas.4} parent=5 // pred_check
      _
    $region10: #{basic_block_pallas.4} parent=5 // pred_check_branch
      %188 = sbr.rel (%p185) target = $region12
    $region11: #{basic_block_pallas.4} parent=5 // pred_region
      %s189 = ssub.s32 %s13, 1
      // Predicated region
      $region13: #{basic_block_pallas.4} parent=11 // pred_check
        %p190 = pneg %p60
      $region14: #{basic_block_pallas.4} parent=11 // pred_check_branch
        %192 = sbr.rel (%p190) target = $region16
      $region15: #{basic_block_pallas.4} parent=11 // pred_region
        _
      $region16: #{basic_block_pallas.4} parent=11 // pred_fallthru
        _
      // Predicated region
      $region17: #{basic_block_pallas.4} parent=11 // pred_check
        %p193 = pneg %p81
      $region18: #{basic_block_pallas.4} parent=11 // pred_check_branch
        %195 = sbr.rel (%p193) target = $region20
      $region19: #{basic_block_pallas.4} parent=11 // pred_region
        _
      $region20: #{basic_block_pallas.4} parent=11 // pred_fallthru
        _
      // Predicated region
      $region21: #{basic_block_pallas.4} parent=11 // pred_check
        %p196 = pneg %p102
      $region22: #{basic_block_pallas.4} parent=11 // pred_check_branch
        %198 = sbr.rel (%p196) target = $region24
      $region23: #{basic_block_pallas.4} parent=11 // pred_region
        _
      $region24: #{basic_block_pallas.4} parent=11 // pred_fallthru
        _
      // Predicated region
      $region25: #{basic_block_pallas.4} parent=11 // pred_check
        %p199 = pneg %p123
      $region26: #{basic_block_pallas.4} parent=11 // pred_check_branch
        %201 = sbr.rel (%p199) target = $region28
      $region27: #{basic_block_pallas.4} parent=11 // pred_region
        _
      $region28: #{basic_block_pallas.4} parent=11 // pred_fallthru
        _
    $region12: #{basic_block_pallas.4} parent=5 // pred_fallthru
      _
    %p202 = scmp.lt.s32.totalorder %s13, 2
    // Predicated region
    $region29: #{basic_block_pallas.4} parent=5 // pred_check
      %p203 = pneg %p202
    $region30: #{basic_block_pallas.4} parent=5 // pred_check_branch
      %205 = sbr.rel (%p203) target = $region32
    $region31: #{basic_block_pallas.4} parent=5 // pred_region
      // Predicated region
      $region33: #{basic_block_pallas.4} parent=31 // pred_check
        %p206 = pneg %p33
      $region34: #{basic_block_pallas.4} parent=31 // pred_check_branch
        %208 = sbr.rel (%p206) target = $region36
      $region35: #{basic_block_pallas.4} parent=31 // pred_region
        %p209 = scmp.lt.s32.totalorder %s13, 1
        %s210 = scalar_select %p209, %s13, 1
        %s211 = smul.addr %s210, 6
        %s212 = smul.addr %s211, 4
        %s213 = scalar_lea.vmem %s0, %s212
      $region36: #{basic_block_pallas.4} parent=31 // pred_fallthru
        _
    $region32: #{basic_block_pallas.4} parent=5 // pred_fallthru
      _
    %p214 = scmp.le.s32.totalorder 1, %s13
    %p215 = scmp.lt.s32.totalorder %s13, 3
    %p216 = pnand %p214, %p215
    %p217 = pneg %p216
    // Predicated region
    $region37: #{basic_block_pallas.4} parent=5 // pred_check
      _
    $region38: #{basic_block_pallas.4} parent=5 // pred_check_branch
      %219 = sbr.rel (%p216) target = $region40
    $region39: #{basic_block_pallas.4} parent=5 // pred_region
      %s220 = ssub.s32 %s13, 1
      %p221 = scmp.lt.s32.totalorder %s18, 1
      %s222 = scalar_select %p221, %s18, 1
      %s223 = smul.addr %s222, 6
      %s224 = smul.addr %s223, 4
      %s225 = scalar_lea.vmem %s0, %s224
      %p226 = pneg %p39
      %p227 = pneg %p36
      %p228 = pneg %p60
      %p229 = pneg %p57
      %p230 = pneg %p81
      %p231 = pneg %p78
      %p232 = pneg %p102
      %p233 = pneg %p99
      %p234 = pneg %p123
      %p235 = pneg %p120
      %p236 = pneg %p149
      %p237 = pneg %p146
      %p238 = scmp.lt.s32.totalorder %s18, 1
      %s239 = scalar_select %p238, %s18, 1
      %s240 = smul.addr %s239, 6
      %s241 = smul.addr %s240, 4
      %s242 = scalar_lea.vmem %s5, %s241
      %p243 = pneg %p175
      %p244 = pneg %p172
      %p245 = scmp.lt.s32.totalorder %s18, 1
      %s246 = scalar_select %p245, %s18, 1
      %s247 = smul.addr %s246, 2
      %s248 = smul.addr %s247, 8
      %s249 = scalar_lea.vmem %s6, %s248
      %p250 = scmp.lt.s32.totalorder %s18, 1
      %s251 = scalar_select %p250, %s18, 1
      %s252 = smul.addr %s251, 6
      %s253 = smul.addr %s252, 4
      %s254 = scalar_lea.vmem %s0, %s253
      %p255 = scmp.lt.s32.totalorder %s18, 1
      %s256 = scalar_select %p255, %s18, 1
      %s257 = smul.addr %s256, 6
      %s258 = smul.addr %s257, 4
      %s259 = scalar_lea.vmem %s5, %s258
      %p260 = scmp.lt.s32.totalorder %s18, 1
      %s261 = scalar_select %p260, %s18, 1
      %s262 = smul.addr %s261, 2
      %s263 = smul.addr %s262, 8
      %s264 = scalar_lea.vmem %s6, %s263
      %v266 = vld [vmem:[%s254] sm:$0xff]
      %v267 = vld [vmem:[%s254 + $0x8] sm:$0xf]
      %v268 = vld [vmem:[%s254 + $0xc] sm:$0xff]
      %v269 = vld [vmem:[%s254 + $0x14] sm:$0xf]
      %v270 = vunpack.c.l.bf16 %v266
      %v271 = vunpack.c.h.bf16 %v266
      %v272 = vunpack.c.l.bf16 %v267
      %v273 = vunpack.c.l.bf16 %v268
      %v274 = vunpack.c.h.bf16 %v268
      %v275 = vunpack.c.l.bf16 %v269
      %v276 = vld [vmem:[%s3] sm:$0xff]
      %v277 = vld [vmem:[%s3 + $0x8] sm:$0xff]
      %279 = vset.pattern.permute.xlu0 0
      %280 = vperm.xlu0 %279, %v276
      %v281 = vpop.permute.xlu0 %280
      %284 = vset.pattern.permute.xlu0 0
      %285 = vperm.xlu0 %284, %v277
      %v286 = vpop.permute.xlu0 %285
      %v288 = vmul.f32 %v270, %v281
      %v289 = vmul.f32 %v271, %v281
      %v290 = vmul.f32 %v272, %v281
      %v291 = vmul.f32 %v273, %v286
      %v292 = vmul.f32 %v274, %v286
      %v293 = vmul.f32 %v275, %v286
      %v294 = vld [vmem:[%s4] sm:$0xff]
      %v295 = vld [vmem:[%s4 + $0x8] sm:$0xff]
      %297 = vset.pattern.permute.xlu0 0
      %298 = vperm.xlu0 %297, %v294
      %v299 = vpop.permute.xlu0 %298
      %302 = vset.pattern.permute.xlu0 0
      %303 = vperm.xlu0 %302, %v295
      %v304 = vpop.permute.xlu0 %303
      %v306 = vadd.f32 %v288, %v299
      %v307 = vadd.f32 %v289, %v299
      %v308 = vadd.f32 %v290, %v299
      %v309 = vadd.f32 %v291, %v304
      %v310 = vadd.f32 %v292, %v304
      %v311 = vadd.f32 %v293, %v304
      %v312 = vmax.f32 %v306, 0.0
      %v313 = vmax.f32 %v307, 0.0
      %v314 = vmax.f32 %v308, 0.0
      %v315 = vmax.f32 %v309, 0.0
      %v316 = vmax.f32 %v310, 0.0
      %v317 = vmax.f32 %v311, 0.0
      %v318 = vld [vmem:[%s2] sm:$0x7]
      %v320 = vlaneseq
      %v321 = vshrl.u32 %v320, 7
      %v322 = vsub.s32 0, %v321
      %v323 = vrot.slane %v318, %v322
      %v324 = vlaneseq
      %v325 = vshrl.u32 %v324, 7
      %v326 = vsub.s32 1, %v325
      %v327 = vrot.slane %v318, %v326
      %v328 = vlaneseq
      %v329 = vshrl.u32 %v328, 7
      %v330 = vsub.s32 2, %v329
      %v331 = vrot.slane %v318, %v330
      %v335 = vmul.f32 %v312, %v323
      %v336 = vmul.f32 %v313, %v327
      %v337 = vmul.f32 %v314, %v331
      %v338 = vmul.f32 %v315, %v323
      %v339 = vmul.f32 %v316, %v327
      %v340 = vmul.f32 %v317, %v331
      %v341 = vpack.c.bf16 %v338, %v335
      %v342 = vpack.c.bf16 %v339, %v336
      %v343 = vpack.c.bf16 %v340, %v337
      %v344 = vld [vmem:[%s1] sm:$0xf]
      %v345 = vld [vmem:[%s1 + $0x4] sm:$0xf]
      %s346 = scalar_lea.vmem %s1, 8
      %v347 = vld [vmem:[%s346] sm:$0xf]
      %v348 = vld [vmem:[%s346 + $0x4] sm:$0xf]
      %v351 = vunpack.c.l.b16 %v347
      %v352 = vunpack.c.l.b16 %v348
      %v353 = vpack.c.b16 %v352, %v351
      %357 = vrot.lane.b32.xlu0 %v341, 127
      %v358 = vpop.permute.xlu0 %357
      %359 = vrot.lane.b32.xlu0 %v342, 127
      %v360 = vpop.permute.xlu0 %359
      %361 = vrot.lane.b32.xlu0 %v343, 127
      %v362 = vpop.permute.xlu0 %361
      %vm363 = vcmask 1039360
      %v364 = vsel %vm363, %v358, %v360
      %v365 = vsel %vm363, %v360, %v362
      %vm369 = vcmask 130048
      %v371 = vsel %vm369, %v353, 0
      %373 = vmatprep.subr.bf16.mxu0 0
      %374 = vmatpush1.bf16.msra.mxu0 0
      %375 = vmatprep.subr.bf16.mxu0 0
      %376 = vmatpush1.bf16.msra.mxu0 0
      %377 = vmatprep.subr.bf16.mxu0 0
      %378 = vmatpush1.bf16.msra.mxu0 0
      %379 = vmatprep.subr.bf16.mxu0 0
      %380 = vmatpush1.bf16.msra.mxu0 0
      %381 = vmatprep.subr.bf16.mxu0 0
      %382 = vmatpush1.bf16.msra.mxu0 0
      %383 = vmatprep.subr.bf16.mxu0 0
      %384 = vmatpush1.bf16.msra.mxu0 0
      %385 = vmatprep.subr.bf16.mxu0 0
      %386 = vmatpush1.bf16.msra.mxu0 0
      %387 = vmatprep.subr.bf16.mxu0 %v365
      %388 = vmatpush1.bf16.msra.mxu0 %v364
      %389 = vmatprep.subr.bf16.mxu0 0
      %390 = vmatpush2.bf16.msra.mxu0 0
      %391 = vmatprep.subr.bf16.mxu0 0
      %392 = vmatpush2.bf16.msra.mxu0 0
      %393 = vmatprep.subr.bf16.mxu0 0
      %394 = vmatpush2.bf16.msra.mxu0 0
      %395 = vmatprep.subr.bf16.mxu0 0
      %396 = vmatpush2.bf16.msra.mxu0 0
      %397 = vmatprep.subr.bf16.mxu0 0
      %398 = vmatpush2.bf16.msra.mxu0 0
      %399 = vmatprep.subr.bf16.mxu0 0
      %400 = vmatpush2.bf16.msra.mxu0 0
      %401 = vmatprep.subr.bf16.mxu0 0
      %402 = vmatpush2.bf16.msra.mxu0 0
      %403 = vmatprep.subr.bf16.mxu0 0
      %404 = vmatpush2.bf16.msra.mxu0 0
      %405 = vmatprep.mubr.bf16.mxu0 0
      %406 = vmatmul.mubr.bf16.gmra.mxu0 %v371
      %v407 = vpop.f32.mrf.mxu0
      %v408 = vadd.f32 0.0, %v407
      %v409 = vpop.f32.mrf.mxu0
      %v410 = vadd.f32 0.0, %v409
      %v411 = vpop.f32.mrf.mxu0
      %v412 = vadd.f32 0.0, %v411
      %v413 = vpop.f32.mrf.mxu0
      %v414 = vadd.f32 0.0, %v413
      %415 = vdwg.mxu0
      %416 = vmatprep.subr.bf16.mxu0 0
      %417 = vmatpush1.bf16.msra.mxu0 0
      %418 = vmatprep.subr.bf16.mxu0 0
      %419 = vmatpush1.bf16.msra.mxu0 0
      %420 = vmatprep.subr.bf16.mxu0 0
      %421 = vmatpush1.bf16.msra.mxu0 0
      %422 = vmatprep.subr.bf16.mxu0 0
      %423 = vmatpush1.bf16.msra.mxu0 0
      %424 = vmatprep.subr.bf16.mxu0 0
      %425 = vmatpush1.bf16.msra.mxu0 0
      %426 = vmatprep.subr.bf16.mxu0 0
      %427 = vmatpush1.bf16.msra.mxu0 0
      %428 = vmatprep.subr.bf16.mxu0 0
      %429 = vmatpush1.bf16.msra.mxu0 0
      %430 = vmatprep.subr.bf16.mxu0 0
      %431 = vmatpush1.bf16.msra.mxu0 %v362
      %432 = vmatprep.subr.bf16.mxu0 0
      %433 = vmatpush2.bf16.msra.mxu0 0
      %434 = vmatprep.subr.bf16.mxu0 0
      %435 = vmatpush2.bf16.msra.mxu0 0
      %436 = vmatprep.subr.bf16.mxu0 0
      %437 = vmatpush2.bf16.msra.mxu0 0
      %438 = vmatprep.subr.bf16.mxu0 0
      %439 = vmatpush2.bf16.msra.mxu0 0
      %440 = vmatprep.subr.bf16.mxu0 0
      %441 = vmatpush2.bf16.msra.mxu0 0
      %442 = vmatprep.subr.bf16.mxu0 0
      %443 = vmatpush2.bf16.msra.mxu0 0
      %444 = vmatprep.subr.bf16.mxu0 0
      %445 = vmatpush2.bf16.msra.mxu0 0
      %446 = vmatprep.subr.bf16.mxu0 0
      %447 = vmatpush2.bf16.msra.mxu0 0
      %448 = vmatprep.mubr.bf16.mxu0 0
      %449 = vmatmul.mubr.bf16.gmra.mxu0 %v371
      %v450 = vpop.f32.mrf.mxu0
      %v451 = vadd.f32 0.0, %v450
      %v452 = vpop.f32.mrf.mxu0
      %v453 = vpop.f32.mrf.mxu0
      %v454 = vadd.f32 0.0, %v453
      %v455 = vpop.f32.mrf.mxu0
      %456 = vdwg.mxu0
      %v459 = vunpack.c.l.b16 %v344
      %v460 = vunpack.c.l.b16 %v345
      %v461 = vpack.c.b16 %v460, %v459
      %v463 = vsel %vm369, %v461, 0
      %465 = vmatprep.subr.bf16.mxu0 0
      %466 = vmatpush1.bf16.msra.mxu0 0
      %467 = vmatprep.subr.bf16.mxu0 0
      %468 = vmatpush1.bf16.msra.mxu0 0
      %469 = vmatprep.subr.bf16.mxu0 0
      %470 = vmatpush1.bf16.msra.mxu0 0
      %471 = vmatprep.subr.bf16.mxu0 0
      %472 = vmatpush1.bf16.msra.mxu0 0
      %473 = vmatprep.subr.bf16.mxu0 0
      %474 = vmatpush1.bf16.msra.mxu0 0
      %475 = vmatprep.subr.bf16.mxu0 0
      %476 = vmatpush1.bf16.msra.mxu0 0
      %477 = vmatprep.subr.bf16.mxu0 0
      %478 = vmatpush1.bf16.msra.mxu0 0
      %479 = vmatprep.subr.bf16.mxu0 %v342
      %480 = vmatpush1.bf16.msra.mxu0 %v341
      %481 = vmatprep.subr.bf16.mxu0 0
      %482 = vmatpush2.bf16.msra.mxu0 0
      %483 = vmatprep.subr.bf16.mxu0 0
      %484 = vmatpush2.bf16.msra.mxu0 0
      %485 = vmatprep.subr.bf16.mxu0 0
      %486 = vmatpush2.bf16.msra.mxu0 0
      %487 = vmatprep.subr.bf16.mxu0 0
      %488 = vmatpush2.bf16.msra.mxu0 0
      %489 = vmatprep.subr.bf16.mxu0 0
      %490 = vmatpush2.bf16.msra.mxu0 0
      %491 = vmatprep.subr.bf16.mxu0 0
      %492 = vmatpush2.bf16.msra.mxu0 0
      %493 = vmatprep.subr.bf16.mxu0 0
      %494 = vmatpush2.bf16.msra.mxu0 0
      %495 = vmatprep.subr.bf16.mxu0 0
      %496 = vmatpush2.bf16.msra.mxu0 0
      %497 = vmatprep.mubr.bf16.mxu0 0
      %498 = vmatmul.mubr.bf16.gmra.mxu0 %v463
      %v499 = vpop.f32.mrf.mxu0
      %v500 = vadd.f32 %v408, %v499
      %v501 = vpop.f32.mrf.mxu0
      %v502 = vadd.f32 %v410, %v501
      %v503 = vpop.f32.mrf.mxu0
      %v504 = vadd.f32 %v412, %v503
      %v505 = vpop.f32.mrf.mxu0
      %v506 = vadd.f32 %v414, %v505
      %507 = vdwg.mxu0
      %508 = vmatprep.subr.bf16.mxu0 0
      %509 = vmatpush1.bf16.msra.mxu0 0
      %510 = vmatprep.subr.bf16.mxu0 0
      %511 = vmatpush1.bf16.msra.mxu0 0
      %512 = vmatprep.subr.bf16.mxu0 0
      %513 = vmatpush1.bf16.msra.mxu0 0
      %514 = vmatprep.subr.bf16.mxu0 0
      %515 = vmatpush1.bf16.msra.mxu0 0
      %516 = vmatprep.subr.bf16.mxu0 0
      %517 = vmatpush1.bf16.msra.mxu0 0
      %518 = vmatprep.subr.bf16.mxu0 0
      %519 = vmatpush1.bf16.msra.mxu0 0
      %520 = vmatprep.subr.bf16.mxu0 0
      %521 = vmatpush1.bf16.msra.mxu0 0
      %522 = vmatprep.subr.bf16.mxu0 0
      %523 = vmatpush1.bf16.msra.mxu0 %v343
      %524 = vmatprep.subr.bf16.mxu0 0
      %525 = vmatpush2.bf16.msra.mxu0 0
      %526 = vmatprep.subr.bf16.mxu0 0
      %527 = vmatpush2.bf16.msra.mxu0 0
      %528 = vmatprep.subr.bf16.mxu0 0
      %529 = vmatpush2.bf16.msra.mxu0 0
      %530 = vmatprep.subr.bf16.mxu0 0
      %531 = vmatpush2.bf16.msra.mxu0 0
      %532 = vmatprep.subr.bf16.mxu0 0
      %533 = vmatpush2.bf16.msra.mxu0 0
      %534 = vmatprep.subr.bf16.mxu0 0
      %535 = vmatpush2.bf16.msra.mxu0 0
      %536 = vmatprep.subr.bf16.mxu0 0
      %537 = vmatpush2.bf16.msra.mxu0 0
      %538 = vmatprep.subr.bf16.mxu0 0
      %539 = vmatpush2.bf16.msra.mxu0 0
      %540 = vmatprep.mubr.bf16.mxu0 0
      %541 = vmatmul.mubr.bf16.gmra.mxu0 %v463
      %v542 = vpop.f32.mrf.mxu0
      %v543 = vadd.f32 %v451, %v542
      %v544 = vpop.f32.mrf.mxu0
      %v545 = vpop.f32.mrf.mxu0
      %v546 = vadd.f32 %v454, %v545
      %v547 = vpop.f32.mrf.mxu0
      %548 = vdwg.mxu0
      %s549 = scalar_lea.vmem %s1, 16
      %v550 = vld [vmem:[%s549] sm:$0xf]
      %v551 = vld [vmem:[%s549 + $0x4] sm:$0xf]
      %v554 = vunpack.c.l.b16 %v550
      %v555 = vunpack.c.l.b16 %v551
      %v556 = vpack.c.b16 %v555, %v554
      %557 = vrot.lane.b32.xlu0 %v341, 126
      %v558 = vpop.permute.xlu0 %557
      %559 = vrot.lane.b32.xlu0 %v342, 126
      %v560 = vpop.permute.xlu0 %559
      %561 = vrot.lane.b32.xlu0 %v343, 126
      %v562 = vpop.permute.xlu0 %561
      %vm563 = vcmask 1031168
      %v564 = vsel %vm563, %v558, %v560
      %v565 = vsel %vm563, %v560, %v562
      %v570 = vsel %vm369, %v556, 0
      %572 = vmatprep.subr.bf16.mxu0 0
      %573 = vmatpush1.bf16.msra.mxu0 0
      %574 = vmatprep.subr.bf16.mxu0 0
      %575 = vmatpush1.bf16.msra.mxu0 0
      %576 = vmatprep.subr.bf16.mxu0 0
      %577 = vmatpush1.bf16.msra.mxu0 0
      %578 = vmatprep.subr.bf16.mxu0 0
      %579 = vmatpush1.bf16.msra.mxu0 0
      %580 = vmatprep.subr.bf16.mxu0 0
      %581 = vmatpush1.bf16.msra.mxu0 0
      %582 = vmatprep.subr.bf16.mxu0 0
      %583 = vmatpush1.bf16.msra.mxu0 0
      %584 = vmatprep.subr.bf16.mxu0 0
      %585 = vmatpush1.bf16.msra.mxu0 0
      %586 = vmatprep.subr.bf16.mxu0 %v565
      %587 = vmatpush1.bf16.msra.mxu0 %v564
      %588 = vmatprep.subr.bf16.mxu0 0
      %589 = vmatpush2.bf16.msra.mxu0 0
      %590 = vmatprep.subr.bf16.mxu0 0
      %591 = vmatpush2.bf16.msra.mxu0 0
      %592 = vmatprep.subr.bf16.mxu0 0
      %593 = vmatpush2.bf16.msra.mxu0 0
      %594 = vmatprep.subr.bf16.mxu0 0
      %595 = vmatpush2.bf16.msra.mxu0 0
      %596 = vmatprep.subr.bf16.mxu0 0
      %597 = vmatpush2.bf16.msra.mxu0 0
      %598 = vmatprep.subr.bf16.mxu0 0
      %599 = vmatpush2.bf16.msra.mxu0 0
      %600 = vmatprep.subr.bf16.mxu0 0
      %601 = vmatpush2.bf16.msra.mxu0 0
      %602 = vmatprep.subr.bf16.mxu0 0
      %603 = vmatpush2.bf16.msra.mxu0 0
      %604 = vmatprep.mubr.bf16.mxu0 0
      %605 = vmatmul.mubr.bf16.gmra.mxu0 %v570
      %v606 = vpop.f32.mrf.mxu0
      %v607 = vadd.f32 0.0, %v606
      %v608 = vpop.f32.mrf.mxu0
      %v609 = vadd.f32 0.0, %v608
      %v610 = vpop.f32.mrf.mxu0
      %v611 = vadd.f32 0.0, %v610
      %v612 = vpop.f32.mrf.mxu0
      %v613 = vadd.f32 0.0, %v612
      %614 = vdwg.mxu0
      %615 = vmatprep.subr.bf16.mxu0 0
      %616 = vmatpush1.bf16.msra.mxu0 0
      %617 = vmatprep.subr.bf16.mxu0 0
      %618 = vmatpush1.bf16.msra.mxu0 0
      %619 = vmatprep.subr.bf16.mxu0 0
      %620 = vmatpush1.bf16.msra.mxu0 0
      %621 = vmatprep.subr.bf16.mxu0 0
      %622 = vmatpush1.bf16.msra.mxu0 0
      %623 = vmatprep.subr.bf16.mxu0 0
      %624 = vmatpush1.bf16.msra.mxu0 0
      %625 = vmatprep.subr.bf16.mxu0 0
      %626 = vmatpush1.bf16.msra.mxu0 0
      %627 = vmatprep.subr.bf16.mxu0 0
      %628 = vmatpush1.bf16.msra.mxu0 0
      %629 = vmatprep.subr.bf16.mxu0 0
      %630 = vmatpush1.bf16.msra.mxu0 %v562
      %631 = vmatprep.subr.bf16.mxu0 0
      %632 = vmatpush2.bf16.msra.mxu0 0
      %633 = vmatprep.subr.bf16.mxu0 0
      %634 = vmatpush2.bf16.msra.mxu0 0
      %635 = vmatprep.subr.bf16.mxu0 0
      %636 = vmatpush2.bf16.msra.mxu0 0
      %637 = vmatprep.subr.bf16.mxu0 0
      %638 = vmatpush2.bf16.msra.mxu0 0
      %639 = vmatprep.subr.bf16.mxu0 0
      %640 = vmatpush2.bf16.msra.mxu0 0
      %641 = vmatprep.subr.bf16.mxu0 0
      %642 = vmatpush2.bf16.msra.mxu0 0
      %643 = vmatprep.subr.bf16.mxu0 0
      %644 = vmatpush2.bf16.msra.mxu0 0
      %645 = vmatprep.subr.bf16.mxu0 0
      %646 = vmatpush2.bf16.msra.mxu0 0
      %647 = vmatprep.mubr.bf16.mxu0 0
      %648 = vmatmul.mubr.bf16.gmra.mxu0 %v570
      %v649 = vpop.f32.mrf.mxu0
      %v650 = vadd.f32 0.0, %v649
      %v651 = vpop.f32.mrf.mxu0
      %v652 = vpop.f32.mrf.mxu0
      %v653 = vadd.f32 0.0, %v652
      %v654 = vpop.f32.mrf.mxu0
      %655 = vdwg.mxu0
      %v656 = vadd.f32 %v500, %v607
      %v657 = vadd.f32 %v502, %v609
      %v658 = vadd.f32 %v543, %v650
      %v659 = vadd.f32 %v504, %v611
      %v660 = vadd.f32 %v506, %v613
      %v661 = vadd.f32 %v546, %v653
      %s662 = scalar_lea.vmem %s1, 24
      %v663 = vld [vmem:[%s662] sm:$0xf]
      %v664 = vld [vmem:[%s662 + $0x4] sm:$0xf]
      %v667 = vunpack.c.l.b16 %v663
      %v668 = vunpack.c.l.b16 %v664
      %v669 = vpack.c.b16 %v668, %v667
      %670 = vrot.lane.b32.xlu0 %v341, 110
      %v671 = vpop.permute.xlu0 %670
      %672 = vrot.lane.b32.xlu0 %v342, 110
      %v673 = vpop.permute.xlu0 %672
      %674 = vrot.lane.b32.xlu0 %v343, 110
      %v675 = vpop.permute.xlu0 %674
      %vm676 = vcmask 900096
      %v677 = vsel %vm676, %v671, %v673
      %v678 = vsel %vm676, %v673, %v675
      %v683 = vsel %vm369, %v669, 0
      %685 = vmatprep.subr.bf16.mxu0 0
      %686 = vmatpush1.bf16.msra.mxu0 0
      %687 = vmatprep.subr.bf16.mxu0 0
      %688 = vmatpush1.bf16.msra.mxu0 0
      %689 = vmatprep.subr.bf16.mxu0 0
      %690 = vmatpush1.bf16.msra.mxu0 0
      %691 = vmatprep.subr.bf16.mxu0 0
      %692 = vmatpush1.bf16.msra.mxu0 0
      %693 = vmatprep.subr.bf16.mxu0 0
      %694 = vmatpush1.bf16.msra.mxu0 0
      %695 = vmatprep.subr.bf16.mxu0 0
      %696 = vmatpush1.bf16.msra.mxu0 0
      %697 = vmatprep.subr.bf16.mxu0 0
      %698 = vmatpush1.bf16.msra.mxu0 0
      %699 = vmatprep.subr.bf16.mxu0 %v678
      %700 = vmatpush1.bf16.msra.mxu0 %v677
      %701 = vmatprep.subr.bf16.mxu0 0
      %702 = vmatpush2.bf16.msra.mxu0 0
      %703 = vmatprep.subr.bf16.mxu0 0
      %704 = vmatpush2.bf16.msra.mxu0 0
      %705 = vmatprep.subr.bf16.mxu0 0
      %706 = vmatpush2.bf16.msra.mxu0 0
      %707 = vmatprep.subr.bf16.mxu0 0
      %708 = vmatpush2.bf16.msra.mxu0 0
      %709 = vmatprep.subr.bf16.mxu0 0
      %710 = vmatpush2.bf16.msra.mxu0 0
      %711 = vmatprep.subr.bf16.mxu0 0
      %712 = vmatpush2.bf16.msra.mxu0 0
      %713 = vmatprep.subr.bf16.mxu0 0
      %714 = vmatpush2.bf16.msra.mxu0 0
      %715 = vmatprep.subr.bf16.mxu0 0
      %716 = vmatpush2.bf16.msra.mxu0 0
      %717 = vmatprep.mubr.bf16.mxu0 0
      %718 = vmatmul.mubr.bf16.gmra.mxu0 %v683
      %v719 = vpop.f32.mrf.mxu0
      %v720 = vadd.f32 0.0, %v719
      %v721 = vpop.f32.mrf.mxu0
      %v722 = vadd.f32 0.0, %v721
      %v723 = vpop.f32.mrf.mxu0
      %v724 = vadd.f32 0.0, %v723
      %v725 = vpop.f32.mrf.mxu0
      %v726 = vadd.f32 0.0, %v725
      %727 = vdwg.mxu0
      %728 = vmatprep.subr.bf16.mxu0 0
      %729 = vmatpush1.bf16.msra.mxu0 0
      %730 = vmatprep.subr.bf16.mxu0 0
      %731 = vmatpush1.bf16.msra.mxu0 0
      %732 = vmatprep.subr.bf16.mxu0 0
      %733 = vmatpush1.bf16.msra.mxu0 0
      %734 = vmatprep.subr.bf16.mxu0 0
      %735 = vmatpush1.bf16.msra.mxu0 0
      %736 = vmatprep.subr.bf16.mxu0 0
      %737 = vmatpush1.bf16.msra.mxu0 0
      %738 = vmatprep.subr.bf16.mxu0 0
      %739 = vmatpush1.bf16.msra.mxu0 0
      %740 = vmatprep.subr.bf16.mxu0 0
      %741 = vmatpush1.bf16.msra.mxu0 0
      %742 = vmatprep.subr.bf16.mxu0 0
      %743 = vmatpush1.bf16.msra.mxu0 %v675
      %744 = vmatprep.subr.bf16.mxu0 0
      %745 = vmatpush2.bf16.msra.mxu0 0
      %746 = vmatprep.subr.bf16.mxu0 0
      %747 = vmatpush2.bf16.msra.mxu0 0
      %748 = vmatprep.subr.bf16.mxu0 0
      %749 = vmatpush2.bf16.msra.mxu0 0
      %750 = vmatprep.subr.bf16.mxu0 0
      %751 = vmatpush2.bf16.msra.mxu0 0
      %752 = vmatprep.subr.bf16.mxu0 0
      %753 = vmatpush2.bf16.msra.mxu0 0
      %754 = vmatprep.subr.bf16.mxu0 0
      %755 = vmatpush2.bf16.msra.mxu0 0
      %756 = vmatprep.subr.bf16.mxu0 0
      %757 = vmatpush2.bf16.msra.mxu0 0
      %758 = vmatprep.subr.bf16.mxu0 0
      %759 = vmatpush2.bf16.msra.mxu0 0
      %760 = vmatprep.mubr.bf16.mxu0 0
      %761 = vmatmul.mubr.bf16.gmra.mxu0 %v683
      %v762 = vpop.f32.mrf.mxu0
      %v763 = vadd.f32 0.0, %v762
      %v764 = vpop.f32.mrf.mxu0
      %v765 = vpop.f32.mrf.mxu0
      %v766 = vadd.f32 0.0, %v765
      %v767 = vpop.f32.mrf.mxu0
      %768 = vdwg.mxu0
      %v769 = vadd.f32 %v656, %v720
      %v770 = vadd.f32 %v657, %v722
      %v771 = vadd.f32 %v658, %v763
      %v772 = vadd.f32 %v659, %v724
      %v773 = vadd.f32 %v660, %v726
      %v774 = vadd.f32 %v661, %v766
      %s775 = scalar_lea.vmem %s1, 32
      %v776 = vld [vmem:[%s775] sm:$0xf]
      %v777 = vld [vmem:[%s775 + $0x4] sm:$0xf]
      %v780 = vunpack.c.l.b16 %v776
      %v781 = vunpack.c.l.b16 %v777
      %v782 = vpack.c.b16 %v781, %v780
      %783 = vrot.lane.b32.xlu0 %v341, 109
      %v784 = vpop.permute.xlu0 %783
      %785 = vrot.lane.b32.xlu0 %v342, 109
      %v786 = vpop.permute.xlu0 %785
      %787 = vrot.lane.b32.xlu0 %v343, 109
      %v788 = vpop.permute.xlu0 %787
      %vm789 = vcmask 891904
      %v790 = vsel %vm789, %v784, %v786
      %v791 = vsel %vm789, %v786, %v788
      %v796 = vsel %vm369, %v782, 0
      %798 = vmatprep.subr.bf16.mxu0 0
      %799 = vmatpush1.bf16.msra.mxu0 0
      %800 = vmatprep.subr.bf16.mxu0 0
      %801 = vmatpush1.bf16.msra.mxu0 0
      %802 = vmatprep.subr.bf16.mxu0 0
      %803 = vmatpush1.bf16.msra.mxu0 0
      %804 = vmatprep.subr.bf16.mxu0 0
      %805 = vmatpush1.bf16.msra.mxu0 0
      %806 = vmatprep.subr.bf16.mxu0 0
      %807 = vmatpush1.bf16.msra.mxu0 0
      %808 = vmatprep.subr.bf16.mxu0 0
      %809 = vmatpush1.bf16.msra.mxu0 0
      %810 = vmatprep.subr.bf16.mxu0 0
      %811 = vmatpush1.bf16.msra.mxu0 0
      %812 = vmatprep.subr.bf16.mxu0 %v791
      %813 = vmatpush1.bf16.msra.mxu0 %v790
      %814 = vmatprep.subr.bf16.mxu0 0
      %815 = vmatpush2.bf16.msra.mxu0 0
      %816 = vmatprep.subr.bf16.mxu0 0
      %817 = vmatpush2.bf16.msra.mxu0 0
      %818 = vmatprep.subr.bf16.mxu0 0
      %819 = vmatpush2.bf16.msra.mxu0 0
      %820 = vmatprep.subr.bf16.mxu0 0
      %821 = vmatpush2.bf16.msra.mxu0 0
      %822 = vmatprep.subr.bf16.mxu0 0
      %823 = vmatpush2.bf16.msra.mxu0 0
      %824 = vmatprep.subr.bf16.mxu0 0
      %825 = vmatpush2.bf16.msra.mxu0 0
      %826 = vmatprep.subr.bf16.mxu0 0
      %827 = vmatpush2.bf16.msra.mxu0 0
      %828 = vmatprep.subr.bf16.mxu0 0
      %829 = vmatpush2.bf16.msra.mxu0 0
      %830 = vmatprep.mubr.bf16.mxu0 0
      %831 = vmatmul.mubr.bf16.gmra.mxu0 %v796
      %v832 = vpop.f32.mrf.mxu0
      %v833 = vadd.f32 0.0, %v832
      %v834 = vpop.f32.mrf.mxu0
      %v835 = vadd.f32 0.0, %v834
      %v836 = vpop.f32.mrf.mxu0
      %v837 = vadd.f32 0.0, %v836
      %v838 = vpop.f32.mrf.mxu0
      %v839 = vadd.f32 0.0, %v838
      %840 = vdwg.mxu0
      %841 = vmatprep.subr.bf16.mxu0 0
      %842 = vmatpush1.bf16.msra.mxu0 0
      %843 = vmatprep.subr.bf16.mxu0 0
      %844 = vmatpush1.bf16.msra.mxu0 0
      %845 = vmatprep.subr.bf16.mxu0 0
      %846 = vmatpush1.bf16.msra.mxu0 0
      %847 = vmatprep.subr.bf16.mxu0 0
      %848 = vmatpush1.bf16.msra.mxu0 0
      %849 = vmatprep.subr.bf16.mxu0 0
      %850 = vmatpush1.bf16.msra.mxu0 0
      %851 = vmatprep.subr.bf16.mxu0 0
      %852 = vmatpush1.bf16.msra.mxu0 0
      %853 = vmatprep.subr.bf16.mxu0 0
      %854 = vmatpush1.bf16.msra.mxu0 0
      %855 = vmatprep.subr.bf16.mxu0 0
      %856 = vmatpush1.bf16.msra.mxu0 %v788
      %857 = vmatprep.subr.bf16.mxu0 0
      %858 = vmatpush2.bf16.msra.mxu0 0
      %859 = vmatprep.subr.bf16.mxu0 0
      %860 = vmatpush2.bf16.msra.mxu0 0
      %861 = vmatprep.subr.bf16.mxu0 0
      %862 = vmatpush2.bf16.msra.mxu0 0
      %863 = vmatprep.subr.bf16.mxu0 0
      %864 = vmatpush2.bf16.msra.mxu0 0
      %865 = vmatprep.subr.bf16.mxu0 0
      %866 = vmatpush2.bf16.msra.mxu0 0
      %867 = vmatprep.subr.bf16.mxu0 0
      %868 = vmatpush2.bf16.msra.mxu0 0
      %869 = vmatprep.subr.bf16.mxu0 0
      %870 = vmatpush2.bf16.msra.mxu0 0
      %871 = vmatprep.subr.bf16.mxu0 0
      %872 = vmatpush2.bf16.msra.mxu0 0
      %873 = vmatprep.mubr.bf16.mxu0 0
      %874 = vmatmul.mubr.bf16.gmra.mxu0 %v796
      %v875 = vpop.f32.mrf.mxu0
      %v876 = vadd.f32 0.0, %v875
      %v877 = vpop.f32.mrf.mxu0
      %v878 = vpop.f32.mrf.mxu0
      %v879 = vadd.f32 0.0, %v878
      %v880 = vpop.f32.mrf.mxu0
      %881 = vdwg.mxu0
      %v882 = vadd.f32 %v769, %v833
      %v883 = vadd.f32 %v770, %v835
      %v884 = vadd.f32 %v771, %v876
      %v885 = vadd.f32 %v772, %v837
      %v886 = vadd.f32 %v773, %v839
      %v887 = vadd.f32 %v774, %v879
      %s888 = scalar_lea.vmem %s1, 40
      %v889 = vld [vmem:[%s888] sm:$0xf]
      %v890 = vld [vmem:[%s888 + $0x4] sm:$0xf]
      %v893 = vunpack.c.l.b16 %v889
      %v894 = vunpack.c.l.b16 %v890
      %v895 = vpack.c.b16 %v894, %v893
      %896 = vrot.lane.b32.xlu0 %v341, 108
      %v897 = vpop.permute.xlu0 %896
      %898 = vrot.lane.b32.xlu0 %v342, 108
      %v899 = vpop.permute.xlu0 %898
      %900 = vrot.lane.b32.xlu0 %v343, 108
      %v901 = vpop.permute.xlu0 %900
      %vm902 = vcmask 883712
      %v903 = vsel %vm902, %v897, %v899
      %v904 = vsel %vm902, %v899, %v901
      %v909 = vsel %vm369, %v895, 0
      %911 = vmatprep.subr.bf16.mxu0 0
      %912 = vmatpush1.bf16.msra.mxu0 0
      %913 = vmatprep.subr.bf16.mxu0 0
      %914 = vmatpush1.bf16.msra.mxu0 0
      %915 = vmatprep.subr.bf16.mxu0 0
      %916 = vmatpush1.bf16.msra.mxu0 0
      %917 = vmatprep.subr.bf16.mxu0 0
      %918 = vmatpush1.bf16.msra.mxu0 0
      %919 = vmatprep.subr.bf16.mxu0 0
      %920 = vmatpush1.bf16.msra.mxu0 0
      %921 = vmatprep.subr.bf16.mxu0 0
      %922 = vmatpush1.bf16.msra.mxu0 0
      %923 = vmatprep.subr.bf16.mxu0 0
      %924 = vmatpush1.bf16.msra.mxu0 0
      %925 = vmatprep.subr.bf16.mxu0 %v904
      %926 = vmatpush1.bf16.msra.mxu0 %v903
      %927 = vmatprep.subr.bf16.mxu0 0
      %928 = vmatpush2.bf16.msra.mxu0 0
      %929 = vmatprep.subr.bf16.mxu0 0
      %930 = vmatpush2.bf16.msra.mxu0 0
      %931 = vmatprep.subr.bf16.mxu0 0
      %932 = vmatpush2.bf16.msra.mxu0 0
      %933 = vmatprep.subr.bf16.mxu0 0
      %934 = vmatpush2.bf16.msra.mxu0 0
      %935 = vmatprep.subr.bf16.mxu0 0
      %936 = vmatpush2.bf16.msra.mxu0 0
      %937 = vmatprep.subr.bf16.mxu0 0
      %938 = vmatpush2.bf16.msra.mxu0 0
      %939 = vmatprep.subr.bf16.mxu0 0
      %940 = vmatpush2.bf16.msra.mxu0 0
      %941 = vmatprep.subr.bf16.mxu0 0
      %942 = vmatpush2.bf16.msra.mxu0 0
      %943 = vmatprep.mubr.bf16.mxu0 0
      %944 = vmatmul.mubr.bf16.gmra.mxu0 %v909
      %v945 = vpop.f32.mrf.mxu0
      %v946 = vadd.f32 0.0, %v945
      %v947 = vpop.f32.mrf.mxu0
      %v948 = vadd.f32 0.0, %v947
      %v949 = vpop.f32.mrf.mxu0
      %v950 = vadd.f32 0.0, %v949
      %v951 = vpop.f32.mrf.mxu0
      %v952 = vadd.f32 0.0, %v951
      %953 = vdwg.mxu0
      %954 = vmatprep.subr.bf16.mxu0 0
      %955 = vmatpush1.bf16.msra.mxu0 0
      %956 = vmatprep.subr.bf16.mxu0 0
      %957 = vmatpush1.bf16.msra.mxu0 0
      %958 = vmatprep.subr.bf16.mxu0 0
      %959 = vmatpush1.bf16.msra.mxu0 0
      %960 = vmatprep.subr.bf16.mxu0 0
      %961 = vmatpush1.bf16.msra.mxu0 0
      %962 = vmatprep.subr.bf16.mxu0 0
      %963 = vmatpush1.bf16.msra.mxu0 0
      %964 = vmatprep.subr.bf16.mxu0 0
      %965 = vmatpush1.bf16.msra.mxu0 0
      %966 = vmatprep.subr.bf16.mxu0 0
      %967 = vmatpush1.bf16.msra.mxu0 0
      %968 = vmatprep.subr.bf16.mxu0 0
      %969 = vmatpush1.bf16.msra.mxu0 %v901
      %970 = vmatprep.subr.bf16.mxu0 0
      %971 = vmatpush2.bf16.msra.mxu0 0
      %972 = vmatprep.subr.bf16.mxu0 0
      %973 = vmatpush2.bf16.msra.mxu0 0
      %974 = vmatprep.subr.bf16.mxu0 0
      %975 = vmatpush2.bf16.msra.mxu0 0
      %976 = vmatprep.subr.bf16.mxu0 0
      %977 = vmatpush2.bf16.msra.mxu0 0
      %978 = vmatprep.subr.bf16.mxu0 0
      %979 = vmatpush2.bf16.msra.mxu0 0
      %980 = vmatprep.subr.bf16.mxu0 0
      %981 = vmatpush2.bf16.msra.mxu0 0
      %982 = vmatprep.subr.bf16.mxu0 0
      %983 = vmatpush2.bf16.msra.mxu0 0
      %984 = vmatprep.subr.bf16.mxu0 0
      %985 = vmatpush2.bf16.msra.mxu0 0
      %986 = vmatprep.mubr.bf16.mxu0 0
      %987 = vmatmul.mubr.bf16.gmra.mxu0 %v909
      %v988 = vpop.f32.mrf.mxu0
      %v989 = vadd.f32 0.0, %v988
      %v990 = vpop.f32.mrf.mxu0
      %v991 = vpop.f32.mrf.mxu0
      %v992 = vadd.f32 0.0, %v991
      %v993 = vpop.f32.mrf.mxu0
      %994 = vdwg.mxu0
      %v995 = vadd.f32 %v882, %v946
      %v996 = vadd.f32 %v883, %v948
      %v997 = vadd.f32 %v884, %v989
      %v998 = vadd.f32 %v885, %v950
      %v999 = vadd.f32 %v886, %v952
      %v1000 = vadd.f32 %v887, %v992
      %s1001 = scalar_lea.vmem %s1, 48
      %v1002 = vld [vmem:[%s1001] sm:$0xf]
      %v1003 = vld [vmem:[%s1001 + $0x4] sm:$0xf]
      %v1006 = vunpack.c.l.b16 %v1002
      %v1007 = vunpack.c.l.b16 %v1003
      %v1008 = vpack.c.b16 %v1007, %v1006
      %1009 = vrot.lane.b32.xlu0 %v341, 92
      %v1010 = vpop.permute.xlu0 %1009
      %1011 = vrot.lane.b32.xlu0 %v342, 92
      %v1012 = vpop.permute.xlu0 %1011
      %1013 = vrot.lane.b32.xlu0 %v343, 92
      %v1014 = vpop.permute.xlu0 %1013
      %vm1015 = vcmask 752640
      %v1016 = vsel %vm1015, %v1010, %v1012
      %v1017 = vsel %vm1015, %v1012, %v1014
      %v1022 = vsel %vm369, %v1008, 0
      %1024 = vmatprep.subr.bf16.mxu0 0
      %1025 = vmatpush1.bf16.msra.mxu0 0
      %1026 = vmatprep.subr.bf16.mxu0 0
      %1027 = vmatpush1.bf16.msra.mxu0 0
      %1028 = vmatprep.subr.bf16.mxu0 0
      %1029 = vmatpush1.bf16.msra.mxu0 0
      %1030 = vmatprep.subr.bf16.mxu0 0
      %1031 = vmatpush1.bf16.msra.mxu0 0
      %1032 = vmatprep.subr.bf16.mxu0 0
      %1033 = vmatpush1.bf16.msra.mxu0 0
      %1034 = vmatprep.subr.bf16.mxu0 0
      %1035 = vmatpush1.bf16.msra.mxu0 0
      %1036 = vmatprep.subr.bf16.mxu0 0
      %1037 = vmatpush1.bf16.msra.mxu0 0
      %1038 = vmatprep.subr.bf16.mxu0 %v1017
      %1039 = vmatpush1.bf16.msra.mxu0 %v1016
      %1040 = vmatprep.subr.bf16.mxu0 0
      %1041 = vmatpush2.bf16.msra.mxu0 0
      %1042 = vmatprep.subr.bf16.mxu0 0
      %1043 = vmatpush2.bf16.msra.mxu0 0
      %1044 = vmatprep.subr.bf16.mxu0 0
      %1045 = vmatpush2.bf16.msra.mxu0 0
      %1046 = vmatprep.subr.bf16.mxu0 0
      %1047 = vmatpush2.bf16.msra.mxu0 0
      %1048 = vmatprep.subr.bf16.mxu0 0
      %1049 = vmatpush2.bf16.msra.mxu0 0
      %1050 = vmatprep.subr.bf16.mxu0 0
      %1051 = vmatpush2.bf16.msra.mxu0 0
      %1052 = vmatprep.subr.bf16.mxu0 0
      %1053 = vmatpush2.bf16.msra.mxu0 0
      %1054 = vmatprep.subr.bf16.mxu0 0
      %1055 = vmatpush2.bf16.msra.mxu0 0
      %1056 = vmatprep.mubr.bf16.mxu0 0
      %1057 = vmatmul.mubr.bf16.gmra.mxu0 %v1022
      %v1058 = vpop.f32.mrf.mxu0
      %v1059 = vadd.f32 0.0, %v1058
      %v1060 = vpop.f32.mrf.mxu0
      %v1061 = vadd.f32 0.0, %v1060
      %v1062 = vpop.f32.mrf.mxu0
      %v1063 = vadd.f32 0.0, %v1062
      %v1064 = vpop.f32.mrf.mxu0
      %v1065 = vadd.f32 0.0, %v1064
      %1066 = vdwg.mxu0
      %1067 = vmatprep.subr.bf16.mxu0 0
      %1068 = vmatpush1.bf16.msra.mxu0 0
      %1069 = vmatprep.subr.bf16.mxu0 0
      %1070 = vmatpush1.bf16.msra.mxu0 0
      %1071 = vmatprep.subr.bf16.mxu0 0
      %1072 = vmatpush1.bf16.msra.mxu0 0
      %1073 = vmatprep.subr.bf16.mxu0 0
      %1074 = vmatpush1.bf16.msra.mxu0 0
      %1075 = vmatprep.subr.bf16.mxu0 0
      %1076 = vmatpush1.bf16.msra.mxu0 0
      %1077 = vmatprep.subr.bf16.mxu0 0
      %1078 = vmatpush1.bf16.msra.mxu0 0
      %1079 = vmatprep.subr.bf16.mxu0 0
      %1080 = vmatpush1.bf16.msra.mxu0 0
      %1081 = vmatprep.subr.bf16.mxu0 0
      %1082 = vmatpush1.bf16.msra.mxu0 %v1014
      %1083 = vmatprep.subr.bf16.mxu0 0
      %1084 = vmatpush2.bf16.msra.mxu0 0
      %1085 = vmatprep.subr.bf16.mxu0 0
      %1086 = vmatpush2.bf16.msra.mxu0 0
      %1087 = vmatprep.subr.bf16.mxu0 0
      %1088 = vmatpush2.bf16.msra.mxu0 0
      %1089 = vmatprep.subr.bf16.mxu0 0
      %1090 = vmatpush2.bf16.msra.mxu0 0
      %1091 = vmatprep.subr.bf16.mxu0 0
      %1092 = vmatpush2.bf16.msra.mxu0 0
      %1093 = vmatprep.subr.bf16.mxu0 0
      %1094 = vmatpush2.bf16.msra.mxu0 0
      %1095 = vmatprep.subr.bf16.mxu0 0
      %1096 = vmatpush2.bf16.msra.mxu0 0
      %1097 = vmatprep.subr.bf16.mxu0 0
      %1098 = vmatpush2.bf16.msra.mxu0 0
      %1099 = vmatprep.mubr.bf16.mxu0 0
      %1100 = vmatmul.mubr.bf16.gmra.mxu0 %v1022
      %v1101 = vpop.f32.mrf.mxu0
      %v1102 = vadd.f32 0.0, %v1101
      %v1103 = vpop.f32.mrf.mxu0
      %v1104 = vpop.f32.mrf.mxu0
      %v1105 = vadd.f32 0.0, %v1104
      %v1106 = vpop.f32.mrf.mxu0
      %1107 = vdwg.mxu0
      %v1108 = vadd.f32 %v995, %v1059
      %v1109 = vadd.f32 %v996, %v1061
      %v1110 = vadd.f32 %v997, %v1102
      %v1111 = vadd.f32 %v998, %v1063
      %v1112 = vadd.f32 %v999, %v1065
      %v1113 = vadd.f32 %v1000, %v1105
      %s1114 = scalar_lea.vmem %s1, 56
      %v1115 = vld [vmem:[%s1114] sm:$0xf]
      %v1116 = vld [vmem:[%s1114 + $0x4] sm:$0xf]
      %v1119 = vunpack.c.l.b16 %v1115
      %v1120 = vunpack.c.l.b16 %v1116
      %v1121 = vpack.c.b16 %v1120, %v1119
      %1122 = vrot.lane.b32.xlu0 %v341, 91
      %v1123 = vpop.permute.xlu0 %1122
      %1124 = vrot.lane.b32.xlu0 %v342, 91
      %v1125 = vpop.permute.xlu0 %1124
      %1126 = vrot.lane.b32.xlu0 %v343, 91
      %v1127 = vpop.permute.xlu0 %1126
      %vm1128 = vcmask 744448
      %v1129 = vsel %vm1128, %v1123, %v1125
      %v1130 = vsel %vm1128, %v1125, %v1127
      %v1135 = vsel %vm369, %v1121, 0
      %1137 = vmatprep.subr.bf16.mxu0 0
      %1138 = vmatpush1.bf16.msra.mxu0 0
      %1139 = vmatprep.subr.bf16.mxu0 0
      %1140 = vmatpush1.bf16.msra.mxu0 0
      %1141 = vmatprep.subr.bf16.mxu0 0
      %1142 = vmatpush1.bf16.msra.mxu0 0
      %1143 = vmatprep.subr.bf16.mxu0 0
      %1144 = vmatpush1.bf16.msra.mxu0 0
      %1145 = vmatprep.subr.bf16.mxu0 0
      %1146 = vmatpush1.bf16.msra.mxu0 0
      %1147 = vmatprep.subr.bf16.mxu0 0
      %1148 = vmatpush1.bf16.msra.mxu0 0
      %1149 = vmatprep.subr.bf16.mxu0 0
      %1150 = vmatpush1.bf16.msra.mxu0 0
      %1151 = vmatprep.subr.bf16.mxu0 %v1130
      %1152 = vmatpush1.bf16.msra.mxu0 %v1129
      %1153 = vmatprep.subr.bf16.mxu0 0
      %1154 = vmatpush2.bf16.msra.mxu0 0
      %1155 = vmatprep.subr.bf16.mxu0 0
      %1156 = vmatpush2.bf16.msra.mxu0 0
      %1157 = vmatprep.subr.bf16.mxu0 0
      %1158 = vmatpush2.bf16.msra.mxu0 0
      %1159 = vmatprep.subr.bf16.mxu0 0
      %1160 = vmatpush2.bf16.msra.mxu0 0
      %1161 = vmatprep.subr.bf16.mxu0 0
      %1162 = vmatpush2.bf16.msra.mxu0 0
      %1163 = vmatprep.subr.bf16.mxu0 0
      %1164 = vmatpush2.bf16.msra.mxu0 0
      %1165 = vmatprep.subr.bf16.mxu0 0
      %1166 = vmatpush2.bf16.msra.mxu0 0
      %1167 = vmatprep.subr.bf16.mxu0 0
      %1168 = vmatpush2.bf16.msra.mxu0 0
      %1169 = vmatprep.mubr.bf16.mxu0 0
      %1170 = vmatmul.mubr.bf16.gmra.mxu0 %v1135
      %v1171 = vpop.f32.mrf.mxu0
      %v1172 = vadd.f32 0.0, %v1171
      %v1173 = vpop.f32.mrf.mxu0
      %v1174 = vadd.f32 0.0, %v1173
      %v1175 = vpop.f32.mrf.mxu0
      %v1176 = vadd.f32 0.0, %v1175
      %v1177 = vpop.f32.mrf.mxu0
      %v1178 = vadd.f32 0.0, %v1177
      %1179 = vdwg.mxu0
      %1180 = vmatprep.subr.bf16.mxu0 0
      %1181 = vmatpush1.bf16.msra.mxu0 0
      %1182 = vmatprep.subr.bf16.mxu0 0
      %1183 = vmatpush1.bf16.msra.mxu0 0
      %1184 = vmatprep.subr.bf16.mxu0 0
      %1185 = vmatpush1.bf16.msra.mxu0 0
      %1186 = vmatprep.subr.bf16.mxu0 0
      %1187 = vmatpush1.bf16.msra.mxu0 0
      %1188 = vmatprep.subr.bf16.mxu0 0
      %1189 = vmatpush1.bf16.msra.mxu0 0
      %1190 = vmatprep.subr.bf16.mxu0 0
      %1191 = vmatpush1.bf16.msra.mxu0 0
      %1192 = vmatprep.subr.bf16.mxu0 0
      %1193 = vmatpush1.bf16.msra.mxu0 0
      %1194 = vmatprep.subr.bf16.mxu0 0
      %1195 = vmatpush1.bf16.msra.mxu0 %v1127
      %1196 = vmatprep.subr.bf16.mxu0 0
      %1197 = vmatpush2.bf16.msra.mxu0 0
      %1198 = vmatprep.subr.bf16.mxu0 0
      %1199 = vmatpush2.bf16.msra.mxu0 0
      %1200 = vmatprep.subr.bf16.mxu0 0
      %1201 = vmatpush2.bf16.msra.mxu0 0
      %1202 = vmatprep.subr.bf16.mxu0 0
      %1203 = vmatpush2.bf16.msra.mxu0 0
      %1204 = vmatprep.subr.bf16.mxu0 0
      %1205 = vmatpush2.bf16.msra.mxu0 0
      %1206 = vmatprep.subr.bf16.mxu0 0
      %1207 = vmatpush2.bf16.msra.mxu0 0
      %1208 = vmatprep.subr.bf16.mxu0 0
      %1209 = vmatpush2.bf16.msra.mxu0 0
      %1210 = vmatprep.subr.bf16.mxu0 0
      %1211 = vmatpush2.bf16.msra.mxu0 0
      %1212 = vmatprep.mubr.bf16.mxu0 0
      %1213 = vmatmul.mubr.bf16.gmra.mxu0 %v1135
      %v1214 = vpop.f32.mrf.mxu0
      %v1215 = vadd.f32 0.0, %v1214
      %v1216 = vpop.f32.mrf.mxu0
      %v1217 = vpop.f32.mrf.mxu0
      %v1218 = vadd.f32 0.0, %v1217
      %v1219 = vpop.f32.mrf.mxu0
      %1220 = vdwg.mxu0
      %v1221 = vadd.f32 %v1108, %v1172
      %v1222 = vadd.f32 %v1109, %v1174
      %v1223 = vadd.f32 %v1110, %v1215
      %v1224 = vadd.f32 %v1111, %v1176
      %v1225 = vadd.f32 %v1112, %v1178
      %v1226 = vadd.f32 %v1113, %v1218
      %s1227 = scalar_lea.vmem %s1, 64
      %v1228 = vld [vmem:[%s1227] sm:$0xf]
      %v1229 = vld [vmem:[%s1227 + $0x4] sm:$0xf]
      %v1232 = vunpack.c.l.b16 %v1228
      %v1233 = vunpack.c.l.b16 %v1229
      %v1234 = vpack.c.b16 %v1233, %v1232
      %1235 = vrot.lane.b32.xlu0 %v341, 90
      %v1236 = vpop.permute.xlu0 %1235
      %1237 = vrot.lane.b32.xlu0 %v342, 90
      %v1238 = vpop.permute.xlu0 %1237
      %1239 = vrot.lane.b32.xlu0 %v343, 90
      %v1240 = vpop.permute.xlu0 %1239
      %vm1241 = vcmask 736256
      %v1242 = vsel %vm1241, %v1236, %v1238
      %v1243 = vsel %vm1241, %v1238, %v1240
      %v1248 = vsel %vm369, %v1234, 0
      %1250 = vmatprep.subr.bf16.mxu0 0
      %1251 = vmatpush1.bf16.msra.mxu0 0
      %1252 = vmatprep.subr.bf16.mxu0 0
      %1253 = vmatpush1.bf16.msra.mxu0 0
      %1254 = vmatprep.subr.bf16.mxu0 0
      %1255 = vmatpush1.bf16.msra.mxu0 0
      %1256 = vmatprep.subr.bf16.mxu0 0
      %1257 = vmatpush1.bf16.msra.mxu0 0
      %1258 = vmatprep.subr.bf16.mxu0 0
      %1259 = vmatpush1.bf16.msra.mxu0 0
      %1260 = vmatprep.subr.bf16.mxu0 0
      %1261 = vmatpush1.bf16.msra.mxu0 0
      %1262 = vmatprep.subr.bf16.mxu0 0
      %1263 = vmatpush1.bf16.msra.mxu0 0
      %1264 = vmatprep.subr.bf16.mxu0 %v1243
      %1265 = vmatpush1.bf16.msra.mxu0 %v1242
      %1266 = vmatprep.subr.bf16.mxu0 0
      %1267 = vmatpush2.bf16.msra.mxu0 0
      %1268 = vmatprep.subr.bf16.mxu0 0
      %1269 = vmatpush2.bf16.msra.mxu0 0
      %1270 = vmatprep.subr.bf16.mxu0 0
      %1271 = vmatpush2.bf16.msra.mxu0 0
      %1272 = vmatprep.subr.bf16.mxu0 0
      %1273 = vmatpush2.bf16.msra.mxu0 0
      %1274 = vmatprep.subr.bf16.mxu0 0
      %1275 = vmatpush2.bf16.msra.mxu0 0
      %1276 = vmatprep.subr.bf16.mxu0 0
      %1277 = vmatpush2.bf16.msra.mxu0 0
      %1278 = vmatprep.subr.bf16.mxu0 0
      %1279 = vmatpush2.bf16.msra.mxu0 0
      %1280 = vmatprep.subr.bf16.mxu0 0
      %1281 = vmatpush2.bf16.msra.mxu0 0
      %1282 = vmatprep.mubr.bf16.mxu0 0
      %1283 = vmatmul.mubr.bf16.gmra.mxu0 %v1248
      %v1284 = vpop.f32.mrf.mxu0
      %v1285 = vadd.f32 0.0, %v1284
      %v1286 = vpop.f32.mrf.mxu0
      %v1287 = vadd.f32 0.0, %v1286
      %v1288 = vpop.f32.mrf.mxu0
      %v1289 = vadd.f32 0.0, %v1288
      %v1290 = vpop.f32.mrf.mxu0
      %v1291 = vadd.f32 0.0, %v1290
      %1292 = vdwg.mxu0
      %1293 = vmatprep.subr.bf16.mxu0 0
      %1294 = vmatpush1.bf16.msra.mxu0 0
      %1295 = vmatprep.subr.bf16.mxu0 0
      %1296 = vmatpush1.bf16.msra.mxu0 0
      %1297 = vmatprep.subr.bf16.mxu0 0
      %1298 = vmatpush1.bf16.msra.mxu0 0
      %1299 = vmatprep.subr.bf16.mxu0 0
      %1300 = vmatpush1.bf16.msra.mxu0 0
      %1301 = vmatprep.subr.bf16.mxu0 0
      %1302 = vmatpush1.bf16.msra.mxu0 0
      %1303 = vmatprep.subr.bf16.mxu0 0
      %1304 = vmatpush1.bf16.msra.mxu0 0
      %1305 = vmatprep.subr.bf16.mxu0 0
      %1306 = vmatpush1.bf16.msra.mxu0 0
      %1307 = vmatprep.subr.bf16.mxu0 0
      %1308 = vmatpush1.bf16.msra.mxu0 %v1240
      %1309 = vmatprep.subr.bf16.mxu0 0
      %1310 = vmatpush2.bf16.msra.mxu0 0
      %1311 = vmatprep.subr.bf16.mxu0 0
      %1312 = vmatpush2.bf16.msra.mxu0 0
      %1313 = vmatprep.subr.bf16.mxu0 0
      %1314 = vmatpush2.bf16.msra.mxu0 0
      %1315 = vmatprep.subr.bf16.mxu0 0
      %1316 = vmatpush2.bf16.msra.mxu0 0
      %1317 = vmatprep.subr.bf16.mxu0 0
      %1318 = vmatpush2.bf16.msra.mxu0 0
      %1319 = vmatprep.subr.bf16.mxu0 0
      %1320 = vmatpush2.bf16.msra.mxu0 0
      %1321 = vmatprep.subr.bf16.mxu0 0
      %1322 = vmatpush2.bf16.msra.mxu0 0
      %1323 = vmatprep.subr.bf16.mxu0 0
      %1324 = vmatpush2.bf16.msra.mxu0 0
      %1325 = vmatprep.mubr.bf16.mxu0 0
      %1326 = vmatmul.mubr.bf16.gmra.mxu0 %v1248
      %v1327 = vpop.f32.mrf.mxu0
      %v1328 = vadd.f32 0.0, %v1327
      %v1329 = vpop.f32.mrf.mxu0
      %v1330 = vpop.f32.mrf.mxu0
      %v1331 = vadd.f32 0.0, %v1330
      %v1332 = vpop.f32.mrf.mxu0
      %1333 = vdwg.mxu0
      %v1334 = vadd.f32 %v1221, %v1285
      %v1335 = vadd.f32 %v1222, %v1287
      %v1336 = vadd.f32 %v1223, %v1328
      %v1337 = vadd.f32 %v1224, %v1289
      %v1338 = vadd.f32 %v1225, %v1291
      %v1339 = vadd.f32 %v1226, %v1331
      %1340 = vrot.lane.b32.xlu0 %v323, 109
      %v1341 = vpop.permute.xlu0 %1340
      %1342 = vrot.lane.b32.xlu0 %v327, 109
      %v1343 = vpop.permute.xlu0 %1342
      %1344 = vrot.lane.b32.xlu0 %v331, 109
      %v1345 = vpop.permute.xlu0 %1344
      %vm1346 = vcmask 891904
      %v1347 = vsel %vm1346, %v1341, %v1343
      %v1348 = vsel %vm1346, %v1343, %v1345
      %v1352 = vmul.f32 %v1334, %v1347
      %v1353 = vmul.f32 %v1335, %v1348
      %v1354 = vmul.f32 %v1336, %v1345
      %v1355 = vmul.f32 %v1337, %v1347
      %v1356 = vmul.f32 %v1338, %v1348
      %v1357 = vmul.f32 %v1339, %v1345
      %v1358 = vadd.f32 %v1352, %v1353
      %vm1359 = vcmask 556032
      %v1360 = vsel %vm1359, %v1354, 0.0
      %v1361 = vadd.f32 %v1358, %v1360
      %1362 = vadd.xlane.f32.xlu0 %v1361
      %v1363 = vpop.xlane.xlu0 %1362
      %v1364 = vadd.f32 %v1355, %v1356
      %v1365 = vsel %vm1359, %v1357, 0.0
      %v1366 = vadd.f32 %v1364, %v1365
      %1367 = vadd.xlane.f32.xlu0 %v1366
      %v1368 = vpop.xlane.xlu0 %1367
      %v1369 = vmul.f32 %v1363, 0.00390625
      %v1370 = vmul.f32 %v1368, 0.00390625
      %v1371 = vsub.f32 %v1334, %v1369
      %v1372 = vsub.f32 %v1335, %v1369
      %v1373 = vsub.f32 %v1336, %v1369
      %v1374 = vsub.f32 %v1337, %v1370
      %v1375 = vsub.f32 %v1338, %v1370
      %v1376 = vsub.f32 %v1339, %v1370
      %v1377 = vmul.f32 %v1371, %v1347
      %v1378 = vmul.f32 %v1372, %v1348
      %v1379 = vmul.f32 %v1373, %v1345
      %v1380 = vmul.f32 %v1374, %v1347
      %v1381 = vmul.f32 %v1375, %v1348
      %v1382 = vmul.f32 %v1376, %v1345
      %v1383 = vmul.f32 %v1377, %v1377
      %v1384 = vmul.f32 %v1378, %v1378
      %v1385 = vmul.f32 %v1379, %v1379
      %v1386 = vmul.f32 %v1380, %v1380
      %v1387 = vmul.f32 %v1381, %v1381
      %v1388 = vmul.f32 %v1382, %v1382
      %v1389 = vadd.f32 %v1383, %v1384
      %v1390 = vsel %vm1359, %v1385, 0.0
      %v1391 = vadd.f32 %v1389, %v1390
      %1392 = vadd.xlane.f32.xlu0 %v1391
      %v1393 = vpop.xlane.xlu0 %1392
      %v1394 = vadd.f32 %v1386, %v1387
      %v1395 = vsel %vm1359, %v1388, 0.0
      %v1396 = vadd.f32 %v1394, %v1395
      %1397 = vadd.xlane.f32.xlu0 %v1396
      %v1398 = vpop.xlane.xlu0 %1397
      %vm1399 = vcmask 7168
      %1400 = vst.msk [vmem:[%s264] sm:$0xff] %vm1399, %v1363
      %1401 = vst.msk [vmem:[%s264 + $0x8] sm:$0xff] %vm1399, %v1368
      %vm1402 = vcmask 15368
      %1403 = vst.msk [vmem:[%s264] sm:$0xff] %vm1402, %v1393
      %1404 = vst.msk [vmem:[%s264 + $0x8] sm:$0xff] %vm1402, %v1398
      %vm1405 = vcmask 150528
      %1406 = vst.msk [vmem:[%s259] sm:$0xf] %vm1405, 0
      %1407 = vst.msk [vmem:[%s259 + $0xc] sm:$0xf] %vm1405, 0
      %vm1408 = vcmask 1044152
      %1409 = vst.msk [vmem:[%s259 + $0x8] sm:$0xf] %vm1408, 0
      %1410 = vst.msk [vmem:[%s259 + $0x14] sm:$0xf] %vm1408, 0
      %v1411 = vpack.c.bf16 %v1337, %v1334
      %v1412 = vpack.c.bf16 %v1338, %v1335
      %v1413 = vpack.c.bf16 %v1339, %v1336
      %v1417 = vunpack.c.l.b16 %v1411
      %v1418 = vunpack.c.l.b16 %v1412
      %v1419 = vunpack.c.l.b16 %v1413
      %v1420 = vunpack.c.h.b16 %v1411
      %v1421 = vunpack.c.h.b16 %v1412
      %v1422 = vunpack.c.h.b16 %v1413
      %v1423 = vpack.c.b16 %v1418, %v1417
      %v1424 = vpack.c.b16 %v1419, %v1419
      %v1425 = vpack.c.b16 %v1421, %v1420
      %v1426 = vpack.c.b16 %v1422, %v1422
      %1427 = vrot.lane.b32.xlu0 %v1423, 19
      %v1428 = vpop.permute.xlu0 %1427
      %1429 = vrot.lane.b32.xlu0 %v1424, 19
      %v1430 = vpop.permute.xlu0 %1429
      %1431 = vrot.lane.b32.xlu0 %v1425, 19
      %v1432 = vpop.permute.xlu0 %1431
      %1433 = vrot.lane.b32.xlu0 %v1426, 19
      %v1434 = vpop.permute.xlu0 %1433
      %v1435 = vrot.slane %v1428, 4
      %v1436 = vrot.slane %v1432, 4
      %vm1437 = vcmask 154624
      %v1438 = vsel %vm1437, %v1435, %v1428
      %v1439 = vsel %vm1437, %v1435, %v1430
      %v1440 = vsel %vm1437, %v1436, %v1432
      %v1441 = vsel %vm1437, %v1436, %v1434
      %vm1446 = vcmask 1043608
      %vm1447 = vcmask 1047556
      %vm1448 = vmor %vm1447, %vm1446
      %1449 = vst.msk [vmem:[%s259] sm:$0xff] %vm1448, %v1438
      %vm1450 = vcmask 707584
      %1451 = vst.msk [vmem:[%s259 + $0x8] sm:$0xf] %vm1450, %v1439
      %1452 = vst.msk [vmem:[%s259 + $0xc] sm:$0xff] %vm1448, %v1440
      %1453 = vst.msk [vmem:[%s259 + $0x14] sm:$0xf] %vm1450, %v1441
      %p1454 = scmp.lt.s32.totalorder %s18, 1
      %s1455 = scalar_select %p1454, %s18, 1
      %s1456 = smul.addr %s1455, 6
      %s1457 = smul.addr %s1456, 4
      %s1458 = scalar_lea.vmem %s5, %s1457
      %p1459 = scmp.lt.s32.totalorder %s18, 1
      %s1460 = scalar_select %p1459, %s18, 1
      %s1461 = smul.addr %s1460, 2
      %s1462 = smul.addr %s1461, 8
      %s1463 = scalar_lea.vmem %s6, %s1462
      // Predicated region
      $region41: #{basic_block_pallas.4} parent=39 // pred_check
        %p1464 = pneg %p146
      $region42: #{basic_block_pallas.4} parent=39 // pred_check_branch
        %1466 = sbr.rel (%p1464) target = $region44
      $region43: #{basic_block_pallas.4} parent=39 // pred_region
        _
      $region44: #{basic_block_pallas.4} parent=39 // pred_fallthru
        _
      // Predicated region
      $region45: #{basic_block_pallas.4} parent=39 // pred_check
        %p1467 = pneg %p172
      $region46: #{basic_block_pallas.4} parent=39 // pred_check_branch
        %1469 = sbr.rel (%p1467) target = $region48
      $region47: #{basic_block_pallas.4} parent=39 // pred_region
        _
      $region48: #{basic_block_pallas.4} parent=39 // pred_fallthru
        _
    $region40: #{basic_block_pallas.4} parent=5 // pred_fallthru
      _
    %p1470 = scmp.le.s32.totalorder 2, %s13
    // Predicated region
    $region49: #{basic_block_pallas.4} parent=5 // pred_check
      %p1471 = pneg %p1470
    $region50: #{basic_block_pallas.4} parent=5 // pred_check_branch
      %1473 = sbr.rel (%p1471) target = $region52
    $region51: #{basic_block_pallas.4} parent=5 // pred_region
      %s1474 = ssub.s32 %s13, 2
      // Predicated region
      $region53: #{basic_block_pallas.4} parent=51 // pred_check
        %p1475 = pneg %p152
      $region54: #{basic_block_pallas.4} parent=51 // pred_check_branch
        %1477 = sbr.rel (%p1475) target = $region56
      $region55: #{basic_block_pallas.4} parent=51 // pred_region
        %p1478 = scmp.lt.s32.totalorder %s19, 1
        %s1479 = scalar_select %p1478, %s19, 1
        %s1480 = smul.addr %s1479, 6
        %s1481 = smul.addr %s1480, 4
        %s1482 = scalar_lea.vmem %s5, %s1481
      $region56: #{basic_block_pallas.4} parent=51 // pred_fallthru
        _
      // Predicated region
      $region57: #{basic_block_pallas.4} parent=51 // pred_check
        %p1483 = pneg %p178
      $region58: #{basic_block_pallas.4} parent=51 // pred_check_branch
        %1485 = sbr.rel (%p1483) target = $region60
      $region59: #{basic_block_pallas.4} parent=51 // pred_region
        %p1486 = scmp.lt.s32.totalorder %s19, 1
        %s1487 = scalar_select %p1486, %s19, 1
        %s1488 = smul.addr %s1487, 2
        %s1489 = smul.addr %s1488, 8
        %s1490 = scalar_lea.vmem %s6, %s1489
      $region60: #{basic_block_pallas.4} parent=51 // pred_fallthru
        _
    $region52: #{basic_block_pallas.4} parent=5 // pred_fallthru
      _
  $region6: #{basic_block_pallas.4} parent=0 // loop_footer
    %s17 = sadd.s32 1, %s13
  $region7: #{basic_block_pallas.4} parent=0 // loop_footer_branch
    %12 = sbr.rel target = $region3
  $region8: #{basic_block_pallas.4} parent=0 // loop_exit
    _

</llo_original>
